<compile_context>
chip_gen: v5e
topology: v5e:2x2
jax: 0.10.0
libtpu: 0.0.40
codegen_flags: <defaults>
</compile_context>

<pallas_src>
import functools

import jax
import jax.numpy as jnp
from jax.experimental import pallas as pl
from jax.experimental.pallas import tpu as pltpu


LAYER_DIMS = [6, 10, 64, 128, 256, 512, 256, 128, 64, 32, 1]
NUM_LAYERS = len(LAYER_DIMS) - 1  # 10


def _round_up(v, m):
    return ((v + m - 1) // m) * m


def _cdiv(a, b):
    return (a + b - 1) // b


# Slab geometry: layer i occupies rows
# [_ROW_OFFSETS[i] : _ROW_OFFSETS[i] + LAYER_DIMS[i+1]) of a (ROWS_TOTAL, IN_PAD)
# weight slab and of a (ROWS_TOTAL, 1) bias slab. Row offsets are multiples of
# 16 (bf16 sublane tile) so every static slice starts on a tile boundary.
_ROW_ALIGN = 16
_ROW_PAD = [_round_up(d, _ROW_ALIGN) for d in LAYER_DIMS[1:]]
_ROW_OFFSETS = []
_acc = 0
for _r in _ROW_PAD:
    _ROW_OFFSETS.append(_acc)
    _acc += _r
ROWS_TOTAL = _acc                                   # 1472
IN_PAD = _round_up(max(LAYER_DIMS[:-1]), 128)       # 512


def _mlp_kernel(x_ref, w_ref, b_ref, out_ref):
    """x_ref: (6, tile) f32; w_ref: (ROWS_TOTAL, IN_PAD) bf16, (out, in) layout;
    b_ref: (ROWS_TOTAL, 1) in the epilogue dtype; out_ref: (1, tile) f32."""
    epi = b_ref.dtype
    h = x_ref[...].astype(jnp.bfloat16)                          # (6, tile)
    for i in range(NUM_LAYERS - 1):
        off, out_d, in_d = _ROW_OFFSETS[i], LAYER_DIMS[i + 1], LAYER_DIMS[i]
        acc = jnp.dot(w_ref[off:off + out_d, :in_d], h,          # MXU, f32 acc
                      preferred_element_type=jnp.float32)        # (out, tile)
        # Fused bias + ReLU epilogue; activations stay resident in bf16.
        h = jnp.maximum(acc.astype(epi) + b_ref[off:off + out_d, :],
                        0.0).astype(jnp.bfloat16)
    # Final layer: (1, 32) @ (32, tile), bias + sigmoid in f32 (tiny).
    off, in_d = _ROW_OFFSETS[-1], LAYER_DIMS[-2]
    z = jnp.dot(w_ref[off:off + 1, :in_d], h,
                preferred_element_type=jnp.float32)              # (1, tile)
    out_ref[...] = jax.nn.sigmoid(
        z + b_ref[off:off + 1, :].astype(jnp.float32)).astype(out_ref.dtype)


def pack_params(params, *, bf16_epilogue=None):
    """Pack (w1, b1, ..., w10, b10) — PyTorch nn.Linear layout, w_i (out, in),
    b_i (out,) — into a bf16 weight slab and a bias slab (epilogue dtype)."""
    if bf16_epilogue is None:
        try:
            kind = jax.devices()[0].device_kind.lower()
        except Exception:
            kind = ""
        # v6e/v7x have bf16 VPUs; keep elementwise math in f32 on v5e & older.
        bf16_epilogue = ("v6" in kind) or ("v7" in kind)
    epi_dtype = jnp.bfloat16 if bf16_epilogue else jnp.float32

    w_rows, b_rows = [], []
    for i in range(NUM_LAYERS):
        out_d, in_d = LAYER_DIMS[i + 1], LAYER_DIMS[i]
        w = jnp.asarray(params[2 * i], jnp.float32)
        b = jnp.asarray(params[2 * i + 1], jnp.float32).reshape(-1, 1)
        assert w.shape == (out_d, in_d), (
            f"fc{i + 1}.weight must have nn.Linear layout (out, in)="
            f"{(out_d, in_d)}, got {w.shape}")
        assert b.shape == (out_d, 1), f"fc{i + 1}.bias must have shape ({out_d},)"
        w_rows.append(jnp.pad(w.astype(jnp.bfloat16),
                              ((0, _ROW_PAD[i] - out_d), (0, IN_PAD - in_d))))
        b_rows.append(jnp.pad(b.astype(epi_dtype),
                              ((0, _ROW_PAD[i] - out_d), (0, 0))))
    return jnp.concatenate(w_rows, axis=0), jnp.concatenate(b_rows, axis=0)


def _pick_tile(B, batch_tile=None):
    tile = 512 if batch_tile is None else batch_tile
    tile = min(tile, _round_up(B, 128))        # don't over-pad small batches
    if B >= 512:
        # v7x megacore: guarantee >= 2 steps on the "parallel" batch axis.
        tile = min(tile, _round_up(_cdiv(B, 2), 128))
    return max(128, _round_up(tile, 128))


@functools.partial(jax.jit, static_argnames=("tile",))
def _mlp_forward_impl(x, w_slab, b_slab, *, tile):
    B = x.shape[0]
    B_pad = _round_up(B, tile)
    xT = x.astype(jnp.float32).T                     # (6, B): batch on lanes
    if B_pad != B:
        xT = jnp.pad(xT, ((0, 0), (0, B_pad - B)))

    out = pl.pallas_call(
        _mlp_kernel,
        out_shape=jax.ShapeDtypeStruct((1, B_pad), jnp.float32),
        grid_spec=pltpu.PrefetchScalarGridSpec(
            num_scalar_prefetch=0,
            grid=(B_pad // tile,),
            in_specs=[
                pl.BlockSpec((LAYER_DIMS[0], tile), lambda i: (0, i)),
                pl.BlockSpec((ROWS_TOTAL, IN_PAD), lambda i: (0, 0)),
                pl.BlockSpec((ROWS_TOTAL, 1), lambda i: (0, 0)),
            ],
            out_specs=pl.BlockSpec((1, tile), lambda i: (0, i)),
        ),
        compiler_params=pltpu.CompilerParams(
            dimension_semantics=("parallel",),
        ),
    )(xT, w_slab, b_slab)
    return out[:, :B].T                              # (B, 1)


def mlp_forward(x, packed_params, *, batch_tile=None):
    """x: (B, 6) float32. packed_params: output of pack_params(...)."""
    w_slab, b_slab = packed_params
    tile = _pick_tile(x.shape[0], batch_tile)
    return _mlp_forward_impl(x, w_slab, b_slab, tile=tile)


def init_params(key):
    """nn.Linear default init U(-1/sqrt(fan_in), 1/sqrt(fan_in)); PyTorch
    layout: w (out, in), b (out,)."""
    params = []
    for i in range(NUM_LAYERS):
        fan_in, fan_out = LAYER_DIMS[i], LAYER_DIMS[i + 1]
        key, kw, kb = jax.random.split(key, 3)
        bound = 1.0 / float(fan_in) ** 0.5
        w = jax.random.uniform(kw, (fan_out, fan_in), jnp.float32, -bound, bound)
        b = jax.random.uniform(kb, (fan_out,), jnp.float32, -bound, bound)
        params += [w, b]
    return tuple(params)


def reference_forward(x, params):
    """Pure-JAX f32 reference matching the PyTorch forward."""
    h = x
    for i in range(NUM_LAYERS):
        w, b = params[2 * i], params[2 * i + 1]
        h = h @ w.T + b
        h = jnp.maximum(h, 0.0) if i < NUM_LAYERS - 1 else jax.nn.sigmoid(h)
    return h


if __name__ == "__main__":
    key = jax.random.PRNGKey(0)
    key, kx1, kx2 = jax.random.split(key, 3)
    params = init_params(key)
    packed = pack_params(params)     # one-time param packing (resident slabs)

    # 512 rows -> tile 256, 2 "parallel" grid steps (both TensorCores on v7x).
    x_big = jax.random.normal(kx1, (512, 6), jnp.float32)
    out_big = jax.block_until_ready(mlp_forward(x_big, packed))
    ref_big = reference_forward(x_big, params)
    assert out_big.shape == (512, 1)
    assert jnp.max(jnp.abs(out_big - ref_big)) < 2e-2, "mismatch vs reference (big)"

    # Small ragged batch: exercises the padding path (8 -> tile 128, 1 step).
    x_small = jax.random.normal(kx2, (8, 6), jnp.float32)
    out_small = jax.block_until_ready(mlp_forward(x_small, packed))
    ref_small = reference_forward(x_small, params)
    assert out_small.shape == (8, 1)
    assert jnp.max(jnp.abs(out_small - ref_small)) < 2e-2, "mismatch vs reference (small)"

    print("KERNEL_OK")
</pallas_src>

<mosaic_0001>
module attributes {stable_mosaic.version = 11 : i64} {
  func.func @_mlp_kernel(%arg0: i32, %arg1: memref<6x256xf32, #tpu.memory_space<vmem>>, %arg2: memref<1472x512xbf16, #tpu.memory_space<vmem>>, %arg3: memref<1472x1xf32, #tpu.memory_space<vmem>>, %arg4: memref<1x256xf32, #tpu.memory_space<vmem>>) attributes {dimension_semantics = [#tpu.dimension_semantics<parallel>], iteration_bounds = array<i64: 2>, scalar_prefetch = 0 : i64, scratch_operands = 0 : i64, tpu.core_type = #tpu.core_type<tc>, window_params = [{transform_indices = @transform_0, window_bounds = array<i64: 6, 256>}, {pipeline_mode = #tpu.pipeline_mode<synchronous>, transform_indices = @transform_1, window_bounds = array<i64: 1472, 512>}, {pipeline_mode = #tpu.pipeline_mode<synchronous>, transform_indices = @transform_2, window_bounds = array<i64: 1472, 1>}, {transform_indices = @transform_3, window_bounds = array<i64: 1, 256>}]} {
    %c0 = arith.constant 0 : index
    %c0_0 = arith.constant 0 : index
    %0 = vector.load %arg1[%c0, %c0_0] : memref<6x256xf32, #tpu.memory_space<vmem>>, vector<6x256xf32>
    %1 = arith.truncf %0 : vector<6x256xf32> to vector<6x256xbf16>
    %c0_1 = arith.constant 0 : index
    %c0_2 = arith.constant 0 : index
    %2 = vector.load %arg2[%c0_1, %c0_2] : memref<1472x512xbf16, #tpu.memory_space<vmem>>, vector<10x6xbf16>
    %cst = arith.constant dense<0.000000e+00> : vector<10x256xf32>
    %3 = tpu.matmul %2, %1, %cst {dimension_numbers = #tpu.dot_dimension_numbers<[1], [0], [0], [1], [0, 0, 1, 1], [], []>} : vector<10x6xbf16>, vector<6x256xbf16>, vector<10x256xf32> -> vector<10x256xf32>
    %c0_3 = arith.constant 0 : index
    %c0_4 = arith.constant 0 : index
    %4 = vector.load %arg3[%c0_3, %c0_4] : memref<1472x1xf32, #tpu.memory_space<vmem>>, vector<10x1xf32>
    %5 = vector.broadcast %4 : vector<10x1xf32> to vector<10x256xf32>
    %6 = arith.addf %3, %5 : vector<10x256xf32>
    %cst_5 = arith.constant 0.000000e+00 : f32
    %7 = vector.broadcast %cst_5 : f32 to vector<10x256xf32>
    %8 = arith.maximumf %6, %7 : vector<10x256xf32>
    %9 = arith.truncf %8 : vector<10x256xf32> to vector<10x256xbf16>
    %c16 = arith.constant 16 : index
    %c0_6 = arith.constant 0 : index
    %10 = vector.load %arg2[%c16, %c0_6] : memref<1472x512xbf16, #tpu.memory_space<vmem>>, vector<64x10xbf16>
    %cst_7 = arith.constant dense<0.000000e+00> : vector<64x256xf32>
    %11 = tpu.matmul %10, %9, %cst_7 {dimension_numbers = #tpu.dot_dimension_numbers<[1], [0], [0], [1], [0, 0, 1, 1], [], []>} : vector<64x10xbf16>, vector<10x256xbf16>, vector<64x256xf32> -> vector<64x256xf32>
    %c16_8 = arith.constant 16 : index
    %c0_9 = arith.constant 0 : index
    %12 = vector.load %arg3[%c16_8, %c0_9] : memref<1472x1xf32, #tpu.memory_space<vmem>>, vector<64x1xf32>
    %13 = vector.broadcast %12 : vector<64x1xf32> to vector<64x256xf32>
    %14 = arith.addf %11, %13 : vector<64x256xf32>
    %cst_10 = arith.constant 0.000000e+00 : f32
    %15 = vector.broadcast %cst_10 : f32 to vector<64x256xf32>
    %16 = arith.maximumf %14, %15 : vector<64x256xf32>
    %17 = arith.truncf %16 : vector<64x256xf32> to vector<64x256xbf16>
    %c80 = arith.constant 80 : index
    %c0_11 = arith.constant 0 : index
    %18 = vector.load %arg2[%c80, %c0_11] : memref<1472x512xbf16, #tpu.memory_space<vmem>>, vector<128x64xbf16>
    %cst_12 = arith.constant dense<0.000000e+00> : vector<128x256xf32>
    %19 = tpu.matmul %18, %17, %cst_12 {dimension_numbers = #tpu.dot_dimension_numbers<[1], [0], [0], [1], [0, 0, 1, 1], [], []>} : vector<128x64xbf16>, vector<64x256xbf16>, vector<128x256xf32> -> vector<128x256xf32>
    %c80_13 = arith.constant 80 : index
    %c0_14 = arith.constant 0 : index
    %20 = vector.load %arg3[%c80_13, %c0_14] : memref<1472x1xf32, #tpu.memory_space<vmem>>, vector<128x1xf32>
    %21 = vector.broadcast %20 : vector<128x1xf32> to vector<128x256xf32>
    %22 = arith.addf %19, %21 : vector<128x256xf32>
    %cst_15 = arith.constant 0.000000e+00 : f32
    %23 = vector.broadcast %cst_15 : f32 to vector<128x256xf32>
    %24 = arith.maximumf %22, %23 : vector<128x256xf32>
    %25 = arith.truncf %24 : vector<128x256xf32> to vector<128x256xbf16>
    %c208 = arith.constant 208 : index
    %c0_16 = arith.constant 0 : index
    %26 = vector.load %arg2[%c208, %c0_16] : memref<1472x512xbf16, #tpu.memory_space<vmem>>, vector<256x128xbf16>
    %cst_17 = arith.constant dense<0.000000e+00> : vector<256x256xf32>
    %27 = tpu.matmul %26, %25, %cst_17 {dimension_numbers = #tpu.dot_dimension_numbers<[1], [0], [0], [1], [0, 0, 1, 1], [], []>} : vector<256x128xbf16>, vector<128x256xbf16>, vector<256x256xf32> -> vector<256x256xf32>
    %c208_18 = arith.constant 208 : index
    %c0_19 = arith.constant 0 : index
    %28 = vector.load %arg3[%c208_18, %c0_19] : memref<1472x1xf32, #tpu.memory_space<vmem>>, vector<256x1xf32>
    %29 = vector.broadcast %28 : vector<256x1xf32> to vector<256x256xf32>
    %30 = arith.addf %27, %29 : vector<256x256xf32>
    %cst_20 = arith.constant 0.000000e+00 : f32
    %31 = vector.broadcast %cst_20 : f32 to vector<256x256xf32>
    %32 = arith.maximumf %30, %31 : vector<256x256xf32>
    %33 = arith.truncf %32 : vector<256x256xf32> to vector<256x256xbf16>
    %c464 = arith.constant 464 : index
    %c0_21 = arith.constant 0 : index
    %34 = vector.load %arg2[%c464, %c0_21] : memref<1472x512xbf16, #tpu.memory_space<vmem>>, vector<512x256xbf16>
    %cst_22 = arith.constant dense<0.000000e+00> : vector<512x256xf32>
    %35 = tpu.matmul %34, %33, %cst_22 {dimension_numbers = #tpu.dot_dimension_numbers<[1], [0], [0], [1], [0, 0, 1, 1], [], []>} : vector<512x256xbf16>, vector<256x256xbf16>, vector<512x256xf32> -> vector<512x256xf32>
    %c464_23 = arith.constant 464 : index
    %c0_24 = arith.constant 0 : index
    %36 = vector.load %arg3[%c464_23, %c0_24] : memref<1472x1xf32, #tpu.memory_space<vmem>>, vector<512x1xf32>
    %37 = vector.broadcast %36 : vector<512x1xf32> to vector<512x256xf32>
    %38 = arith.addf %35, %37 : vector<512x256xf32>
    %cst_25 = arith.constant 0.000000e+00 : f32
    %39 = vector.broadcast %cst_25 : f32 to vector<512x256xf32>
    %40 = arith.maximumf %38, %39 : vector<512x256xf32>
    %41 = arith.truncf %40 : vector<512x256xf32> to vector<512x256xbf16>
    %c976 = arith.constant 976 : index
    %c0_26 = arith.constant 0 : index
    %42 = vector.load %arg2[%c976, %c0_26] : memref<1472x512xbf16, #tpu.memory_space<vmem>>, vector<256x512xbf16>
    %cst_27 = arith.constant dense<0.000000e+00> : vector<256x256xf32>
    %43 = tpu.matmul %42, %41, %cst_27 {dimension_numbers = #tpu.dot_dimension_numbers<[1], [0], [0], [1], [0, 0, 1, 1], [], []>} : vector<256x512xbf16>, vector<512x256xbf16>, vector<256x256xf32> -> vector<256x256xf32>
    %c976_28 = arith.constant 976 : index
    %c0_29 = arith.constant 0 : index
    %44 = vector.load %arg3[%c976_28, %c0_29] : memref<1472x1xf32, #tpu.memory_space<vmem>>, vector<256x1xf32>
    %45 = vector.broadcast %44 : vector<256x1xf32> to vector<256x256xf32>
    %46 = arith.addf %43, %45 : vector<256x256xf32>
    %cst_30 = arith.constant 0.000000e+00 : f32
    %47 = vector.broadcast %cst_30 : f32 to vector<256x256xf32>
    %48 = arith.maximumf %46, %47 : vector<256x256xf32>
    %49 = arith.truncf %48 : vector<256x256xf32> to vector<256x256xbf16>
    %c1232 = arith.constant 1232 : index
    %c0_31 = arith.constant 0 : index
    %50 = vector.load %arg2[%c1232, %c0_31] : memref<1472x512xbf16, #tpu.memory_space<vmem>>, vector<128x256xbf16>
    %cst_32 = arith.constant dense<0.000000e+00> : vector<128x256xf32>
    %51 = tpu.matmul %50, %49, %cst_32 {dimension_numbers = #tpu.dot_dimension_numbers<[1], [0], [0], [1], [0, 0, 1, 1], [], []>} : vector<128x256xbf16>, vector<256x256xbf16>, vector<128x256xf32> -> vector<128x256xf32>
    %c1232_33 = arith.constant 1232 : index
    %c0_34 = arith.constant 0 : index
    %52 = vector.load %arg3[%c1232_33, %c0_34] : memref<1472x1xf32, #tpu.memory_space<vmem>>, vector<128x1xf32>
    %53 = vector.broadcast %52 : vector<128x1xf32> to vector<128x256xf32>
    %54 = arith.addf %51, %53 : vector<128x256xf32>
    %cst_35 = arith.constant 0.000000e+00 : f32
    %55 = vector.broadcast %cst_35 : f32 to vector<128x256xf32>
    %56 = arith.maximumf %54, %55 : vector<128x256xf32>
    %57 = arith.truncf %56 : vector<128x256xf32> to vector<128x256xbf16>
    %c1360 = arith.constant 1360 : index
    %c0_36 = arith.constant 0 : index
    %58 = vector.load %arg2[%c1360, %c0_36] : memref<1472x512xbf16, #tpu.memory_space<vmem>>, vector<64x128xbf16>
    %cst_37 = arith.constant dense<0.000000e+00> : vector<64x256xf32>
    %59 = tpu.matmul %58, %57, %cst_37 {dimension_numbers = #tpu.dot_dimension_numbers<[1], [0], [0], [1], [0, 0, 1, 1], [], []>} : vector<64x128xbf16>, vector<128x256xbf16>, vector<64x256xf32> -> vector<64x256xf32>
    %c1360_38 = arith.constant 1360 : index
    %c0_39 = arith.constant 0 : index
    %60 = vector.load %arg3[%c1360_38, %c0_39] : memref<1472x1xf32, #tpu.memory_space<vmem>>, vector<64x1xf32>
    %61 = vector.broadcast %60 : vector<64x1xf32> to vector<64x256xf32>
    %62 = arith.addf %59, %61 : vector<64x256xf32>
    %cst_40 = arith.constant 0.000000e+00 : f32
    %63 = vector.broadcast %cst_40 : f32 to vector<64x256xf32>
    %64 = arith.maximumf %62, %63 : vector<64x256xf32>
    %65 = arith.truncf %64 : vector<64x256xf32> to vector<64x256xbf16>
    %c1424 = arith.constant 1424 : index
    %c0_41 = arith.constant 0 : index
    %66 = vector.load %arg2[%c1424, %c0_41] : memref<1472x512xbf16, #tpu.memory_space<vmem>>, vector<32x64xbf16>
    %cst_42 = arith.constant dense<0.000000e+00> : vector<32x256xf32>
    %67 = tpu.matmul %66, %65, %cst_42 {dimension_numbers = #tpu.dot_dimension_numbers<[1], [0], [0], [1], [0, 0, 1, 1], [], []>} : vector<32x64xbf16>, vector<64x256xbf16>, vector<32x256xf32> -> vector<32x256xf32>
    %c1424_43 = arith.constant 1424 : index
    %c0_44 = arith.constant 0 : index
    %68 = vector.load %arg3[%c1424_43, %c0_44] : memref<1472x1xf32, #tpu.memory_space<vmem>>, vector<32x1xf32>
    %69 = vector.broadcast %68 : vector<32x1xf32> to vector<32x256xf32>
    %70 = arith.addf %67, %69 : vector<32x256xf32>
    %cst_45 = arith.constant 0.000000e+00 : f32
    %71 = vector.broadcast %cst_45 : f32 to vector<32x256xf32>
    %72 = arith.maximumf %70, %71 : vector<32x256xf32>
    %73 = arith.truncf %72 : vector<32x256xf32> to vector<32x256xbf16>
    %c1456 = arith.constant 1456 : index
    %c0_46 = arith.constant 0 : index
    %74 = vector.load %arg2[%c1456, %c0_46] : memref<1472x512xbf16, #tpu.memory_space<vmem>>, vector<1x32xbf16>
    %cst_47 = arith.constant dense<0.000000e+00> : vector<1x256xf32>
    %75 = tpu.matmul %74, %73, %cst_47 {dimension_numbers = #tpu.dot_dimension_numbers<[1], [0], [0], [1], [0, 0, 1, 1], [], []>} : vector<1x32xbf16>, vector<32x256xbf16>, vector<1x256xf32> -> vector<1x256xf32>
    %c1456_48 = arith.constant 1456 : index
    %c0_49 = arith.constant 0 : index
    %76 = vector.load %arg3[%c1456_48, %c0_49] : memref<1472x1xf32, #tpu.memory_space<vmem>>, vector<1x1xf32>
    %77 = vector.broadcast %76 : vector<1x1xf32> to vector<1x256xf32>
    %78 = arith.addf %75, %77 : vector<1x256xf32>
    %79 = arith.negf %78 : vector<1x256xf32>
    %80 = math.exp %79 : vector<1x256xf32>
    %cst_50 = arith.constant 1.000000e+00 : f32
    %81 = vector.broadcast %cst_50 : f32 to vector<1x256xf32>
    %82 = arith.addf %81, %80 : vector<1x256xf32>
    %83 = arith.divf %81, %82 : vector<1x256xf32>
    %c0_51 = arith.constant 0 : index
    %c0_52 = arith.constant 0 : index
    %84 = vector.load %arg4[%c0_51, %c0_52] : memref<1x256xf32, #tpu.memory_space<vmem>>, vector<1x256xf32>
    tpu.vector_store %arg4[%c0_51, %c0_52], %83 {strides = array<i32>} : memref<1x256xf32, #tpu.memory_space<vmem>>, vector<1x256xf32>,
    return
  }
  func.func @transform_0(%arg0: i32) -> (i32, i32) {
    %c0_i32 = arith.constant 0 : i32
    %c0_i32_0 = arith.constant 0 : i32
    return %c0_i32, %arg0 : i32, i32
  }
  func.func @transform_1(%arg0: i32) -> (i32, i32) {
    %c0_i32 = arith.constant 0 : i32
    %c0_i32_0 = arith.constant 0 : i32
    %c0_i32_1 = arith.constant 0 : i32
    return %c0_i32, %c0_i32_0 : i32, i32
  }
  func.func @transform_2(%arg0: i32) -> (i32, i32) {
    %c0_i32 = arith.constant 0 : i32
    %c0_i32_0 = arith.constant 0 : i32
    %c0_i32_1 = arith.constant 0 : i32
    return %c0_i32, %c0_i32_0 : i32, i32
  }
  func.func @transform_3(%arg0: i32) -> (i32, i32) {
    %c0_i32 = arith.constant 0 : i32
    %c0_i32_0 = arith.constant 0 : i32
    return %c0_i32, %arg0 : i32, i32
  }
}

</mosaic_0001>

<llo_original>
// kernel: _mlp_forward_impl.1
$region0: #{_mlp_forward_impl.1}
  #allocation0 [shape = 'u32[]', space=smem, size = 0x4, offset = 0x4, fixed_abs, tag = 'smem constant byte address 0x4 - core index']
  #allocation1 [shape = 'u32[72,128]{1,0:T(1,128)}', space=vmem, size = 0x9000, scoped, tag = 'internal scratch']
  %s0 = inlined_call_operand.hbm [shape: f32[6,512], index: 0, kind: input, shape index: {}]
  %s1 = inlined_call_operand.hbm [shape: bf16[1472,512], index: 1, kind: input, shape index: {}]
  %s2 = inlined_call_operand.vmem [shape: f32[1472,1], index: 2, kind: input, shape index: {}]
  %s3 = inlined_call_operand.hbm [shape: f32[1,512], index: 3, kind: output, shape index: {}]
  %s4 = sld [smem:[#allocation0]]
  $region53: #{_mlp_forward_impl.1} parent=0
    _
  %s6 = ssub.s32 1, %s4
  %s7 = scalar_select 0, %s6, %s4
  $region1: #{_mlp_forward_impl.1} parent=0
    #allocation2 [shape = 'u8[16384]{0}', space=vmem, size = 0x4000, scoped, tag = 'input window, operand 0']
    #allocation3 [shape = 's32[2]{0}', space=sflag, size = 0x8, scoped, tag = 'scoped memory for _mlp_forward_impl.1']
    #allocation4 [shape = 's32[2]{0}', space=sflag, size = 0x8, scoped, tag = 'scoped memory for _mlp_forward_impl.1']
    #allocation5 [shape = 'u8[1507328]{0}', space=vmem, size = 0x170000, scoped, tag = 'input window, operand 1, single buffered']
    #allocation6 [shape = 's32[1]{0}', space=sflag, size = 0x4, scoped, tag = 'scoped memory for _mlp_forward_impl.1']
    #allocation7 [shape = 'u8[2048]{0}', space=vmem, size = 0x800, scoped, tag = 'output window, operand 0']
    %8 = vsyncpa [#allocation3], 0
    %s9 = scalar_lea.sflag [#allocation3], 1
    %10 = vsyncpa %s9, 0
    %11 = vsyncpa [#allocation6], 0
    %12 = vsyncpa [#allocation4], 0
    %s13 = scalar_lea.sflag [#allocation4], 1
    %14 = vsyncpa %s13, 0
    loop: start=0, step=1, limit=4
    $region2: #{_mlp_forward_impl.1} parent=1 // loop_pre_header
      _
    $region3: #{_mlp_forward_impl.1} parent=1 // loop_header
      %s16 = sphi 0, %s20
      %p17 = scmp.ge.s32.totalorder %s16, 4
      %s26 = sphi 0, %s28
      %s29 = sphi 0, %s26
      %s30 = sphi 0, %s29
      %s46 = sphi 0, %s30
      %s50 = sphi 0, %s50
      %s52 = sphi 0, %s50
      %s53 = sphi 0, %s52
      %s67 = sphi 0, %s53
      %s71 = sphi 0, %s71
      %s73 = sphi 0, %s71
      %s74 = sphi 0, %s73
      %s88 = sphi 0, %s74
      %s94 = sphi 0, %s96
      %s97 = sphi 0, %s94
      %s98 = sphi 0, %s97
      %s114 = sphi 0, %s98
    $region4: #{_mlp_forward_impl.1} parent=1 // loop_header_branch
      %19 = sbr.rel (%p17) target = $region8
    $region5: #{_mlp_forward_impl.1} parent=1 // loop_body
      %s21 = ssub.s32 %s16, 1
      %s22 = ssub.s32 %s16, 2
      %s23 = sadd.s32 %s16, 1
      %s24 = ssub.s32 %s16, %s23
      %p25 = scmp.eq.s32.totalorder %s24, 0
      %s27 = sadd.s32 %s26, 1
      %s28 = scalar_select %p25, %s26, %s27
      %p31 = pneg %p25
      %p32 = scmp.eq.s32.totalorder %s16, 1
      %p33 = por %p31, %p32
      %p34 = scmp.ne.s32.totalorder %s26, %s29
      %p35 = scmp.eq.s32.totalorder %s16, 0
      %p36 = por %p34, %p35
      %p37 = scmp.ne.s32.totalorder %s26, %s29
      %p38 = scmp.eq.s32.totalorder %s21, 1
      %p39 = por %p37, %p38
      %p40 = scmp.ne.s32.totalorder %s29, %s30
      %p41 = scmp.eq.s32.totalorder %s21, 0
      %p42 = por %p40, %p41
      %p43 = scmp.ne.s32.totalorder %s29, %s30
      %p44 = scmp.eq.s32.totalorder %s22, 1
      %p45 = por %p43, %p44
      %p47 = scmp.ne.s32.totalorder %s30, %s46
      %p48 = scmp.eq.s32.totalorder %s22, 0
      %p49 = por %p47, %p48
      %s51 = sadd.s32 %s50, 1
      %p54 = scmp.eq.s32.totalorder %s16, 1
      %p55 = scmp.ne.s32.totalorder %s50, %s52
      %p56 = scmp.eq.s32.totalorder %s16, 0
      %p57 = por %p55, %p56
      %p58 = scmp.ne.s32.totalorder %s50, %s52
      %p59 = scmp.eq.s32.totalorder %s21, 1
      %p60 = por %p58, %p59
      %p61 = scmp.ne.s32.totalorder %s52, %s53
      %p62 = scmp.eq.s32.totalorder %s21, 0
      %p63 = por %p61, %p62
      %p64 = scmp.ne.s32.totalorder %s52, %s53
      %p65 = scmp.eq.s32.totalorder %s22, 1
      %p66 = por %p64, %p65
      %p68 = scmp.ne.s32.totalorder %s53, %s67
      %p69 = scmp.eq.s32.totalorder %s22, 0
      %p70 = por %p68, %p69
      %s72 = sadd.s32 %s71, 1
      %p75 = scmp.eq.s32.totalorder %s16, 1
      %p76 = scmp.ne.s32.totalorder %s71, %s73
      %p77 = scmp.eq.s32.totalorder %s16, 0
      %p78 = por %p76, %p77
      %p79 = scmp.ne.s32.totalorder %s71, %s73
      %p80 = scmp.eq.s32.totalorder %s21, 1
      %p81 = por %p79, %p80
      %p82 = scmp.ne.s32.totalorder %s73, %s74
      %p83 = scmp.eq.s32.totalorder %s21, 0
      %p84 = por %p82, %p83
      %p85 = scmp.ne.s32.totalorder %s73, %s74
      %p86 = scmp.eq.s32.totalorder %s22, 1
      %p87 = por %p85, %p86
      %p89 = scmp.ne.s32.totalorder %s74, %s88
      %p90 = scmp.eq.s32.totalorder %s22, 0
      %p91 = por %p89, %p90
      %s92 = ssub.s32 %s16, %s23
      %p93 = scmp.eq.s32.totalorder %s92, 0
      %s95 = sadd.s32 %s94, 1
      %s96 = scalar_select %p93, %s94, %s95
      %p99 = pneg %p93
      %p100 = scmp.eq.s32.totalorder %s16, 1
      %p101 = por %p99, %p100
      %p102 = scmp.ne.s32.totalorder %s94, %s97
      %p103 = scmp.eq.s32.totalorder %s16, 0
      %p104 = por %p102, %p103
      %p105 = scmp.ne.s32.totalorder %s94, %s97
      %p106 = scmp.eq.s32.totalorder %s21, 1
      %p107 = por %p105, %p106
      %p108 = scmp.ne.s32.totalorder %s97, %s98
      %p109 = scmp.eq.s32.totalorder %s21, 0
      %p110 = por %p108, %p109
      %p111 = scmp.ne.s32.totalorder %s97, %s98
      %p112 = scmp.eq.s32.totalorder %s22, 1
      %p113 = por %p111, %p112
      %p115 = scmp.ne.s32.totalorder %s98, %s114
      %p116 = scmp.eq.s32.totalorder %s22, 0
      %p117 = por %p115, %p116
      %p118 = scmp.le.s32.totalorder 1, %s16
      %p119 = scmp.lt.s32.totalorder %s16, 3
      %p120 = pnand %p118, %p119
      %p121 = pneg %p120
      // Predicated region
      $region9: #{_mlp_forward_impl.1} parent=5 // pred_check
        _
      $region10: #{_mlp_forward_impl.1} parent=5 // pred_check_branch
        %123 = sbr.rel (%p120) target = $region12
      $region11: #{_mlp_forward_impl.1} parent=5 // pred_region
        %s124 = ssub.s32 %s16, 1
        // Predicated region
        $region13: #{_mlp_forward_impl.1} parent=11 // pred_check
          %p125 = pneg %p63
        $region14: #{_mlp_forward_impl.1} parent=11 // pred_check_branch
          %127 = sbr.rel (%p125) target = $region16
        $region15: #{_mlp_forward_impl.1} parent=11 // pred_region
          %129 = vsyncadd [#allocation6], 0
          %s130 = sshll.u32 %s1, 4
          %s131 = int_to_ptr.hbm [resolvable:$true] %s130
          %s132 = sshll.u32 [#allocation5], 4
          %s133 = int_to_ptr.vmem [resolvable:$true] %s132
          %138 = dma.hbm_to_vmem [thread:$0]  %s131, 47104, %s133, [#allocation6], 256, 256, 16
        $region16: #{_mlp_forward_impl.1} parent=11 // pred_fallthru
          _
        // Predicated region
        $region17: #{_mlp_forward_impl.1} parent=11 // pred_check
          %p139 = pneg %p84
        $region18: #{_mlp_forward_impl.1} parent=11 // pred_check_branch
          %141 = sbr.rel (%p139) target = $region20
        $region19: #{_mlp_forward_impl.1} parent=11 // pred_region
          _
        $region20: #{_mlp_forward_impl.1} parent=11 // pred_fallthru
          _
      $region12: #{_mlp_forward_impl.1} parent=5 // pred_fallthru
        _
      %p142 = scmp.lt.s32.totalorder %s16, 2
      // Predicated region
      $region21: #{_mlp_forward_impl.1} parent=5 // pred_check
        %p143 = pneg %p142
      $region22: #{_mlp_forward_impl.1} parent=5 // pred_check_branch
        %145 = sbr.rel (%p143) target = $region24
      $region23: #{_mlp_forward_impl.1} parent=5 // pred_region
        // Predicated region
        $region25: #{_mlp_forward_impl.1} parent=23 // pred_check
          %p146 = pneg %p36
        $region26: #{_mlp_forward_impl.1} parent=23 // pred_check_branch
          %148 = sbr.rel (%p146) target = $region28
        $region27: #{_mlp_forward_impl.1} parent=23 // pred_region
          %s149 = sand.u32 %s26, 1
          %s150 = scalar_lea.sflag [#allocation3], %s149
          %s151 = sand.u32 %s26, 1
          %s152 = smul.addr %s151, 16
          %s153 = scalar_lea.vmem [#allocation2], %s152
          %s154 = smul.u32 2, %s16
          %156 = vsyncadd %s150, 0
          %s157 = smul.addr %s154, 8
          %s158 = scalar_lea.hbm %s0, %s157
          %s160 = sshll.u32 %s158, 4
          %s161 = int_to_ptr.hbm [resolvable:$true] %s160
          %s162 = sshll.u32 %s153, 4
          %s163 = int_to_ptr.vmem [resolvable:$true] %s162
          %165 = dma.hbm_to_vmem [thread:$0]  %s161, 256, %s163, %s150
        $region28: #{_mlp_forward_impl.1} parent=23 // pred_fallthru
          _
      $region24: #{_mlp_forward_impl.1} parent=5 // pred_fallthru
        _
      %p166 = scmp.le.s32.totalorder 1, %s16
      %p167 = scmp.lt.s32.totalorder %s16, 3
      %p168 = pnand %p166, %p167
      %p169 = pneg %p168
      // Predicated region
      $region29: #{_mlp_forward_impl.1} parent=5 // pred_check
        _
      $region30: #{_mlp_forward_impl.1} parent=5 // pred_check_branch
        %171 = sbr.rel (%p168) target = $region32
      $region31: #{_mlp_forward_impl.1} parent=5 // pred_region
        %s172 = ssub.s32 %s16, 1
        %s173 = sand.u32 %s29, 1
        %s174 = scalar_lea.sflag [#allocation3], %s173
        %s175 = sand.u32 %s29, 1
        %s176 = smul.addr %s175, 16
        %s177 = scalar_lea.vmem [#allocation2], %s176
        // Predicated region
        $region33: #{_mlp_forward_impl.1} parent=31 // pred_check
          %p178 = pneg %p42
        $region34: #{_mlp_forward_impl.1} parent=31 // pred_check_branch
          %180 = sbr.rel (%p178) target = $region36
        $region35: #{_mlp_forward_impl.1} parent=31 // pred_region
          %182 = dma.done %s174, 256
        $region36: #{_mlp_forward_impl.1} parent=31 // pred_fallthru
          _
        // Predicated region
        $region37: #{_mlp_forward_impl.1} parent=31 // pred_check
          %p183 = pneg %p63
        $region38: #{_mlp_forward_impl.1} parent=31 // pred_check_branch
          %185 = sbr.rel (%p183) target = $region40
        $region39: #{_mlp_forward_impl.1} parent=31 // pred_region
          %187 = dma.done [#allocation6], 47104
        $region40: #{_mlp_forward_impl.1} parent=31 // pred_fallthru
          _
        %s188 = sand.u32 %s29, 1
        %s189 = scalar_lea.sflag [#allocation3], %s188
        %s190 = sand.u32 %s29, 1
        %s191 = smul.addr %s190, 16
        %s192 = scalar_lea.vmem [#allocation2], %s191
        %p193 = pneg %p42
        %p194 = pneg %p39
        %p195 = pneg %p63
        %p196 = pneg %p60
        %p197 = pneg %p84
        %p198 = pneg %p81
        %p199 = pneg %p110
        %p200 = pneg %p107
        %s201 = sand.u32 %s97, 1
        %s202 = scalar_lea.sflag [#allocation4], %s201
        %s203 = sand.u32 %s97, 1
        %s204 = smul.addr %s203, 2
        %s205 = scalar_lea.vmem [#allocation7], %s204
        %s206 = smul.u32 2, %s21
        %s207 = smul.u32 2, %s21
        %v209 = vld [vmem:[%s177] sm:$0x3f]
        %v210 = vld [vmem:[%s177 + $0x8] sm:$0x3f]
        %v211 = vpack.c.bf16 %v209, %v209
        %v212 = vpack.c.bf16 %v210, %v210
        %v213 = vld [vmem:[#allocation5] sm:$0xf]
        %v214 = vld [vmem:[#allocation5 + $0x10] sm:$0x1]
        %v215 = vld [vmem:[%s2] sm:$0xff]
        %v216 = vld [vmem:[%s2 + $0x8] sm:$0x3]
        %218 = vset.pattern.permute.xlu0 0
        %219 = vperm.xlu0 %218, %v215
        %v220 = vpop.permute.xlu0 %219
        %223 = vset.pattern.permute.xlu0 0
        %224 = vperm.xlu0 %223, %v216
        %v225 = vpop.permute.xlu0 %224
        %v229 = vunpack.c.l.b16 %v213
        %v230 = vunpack.c.l.b16 %v214
        %v231 = vpack.c.b16 %v230, %v229
        %vm232 = vcmask 48128
        %v234 = vsel %vm232, %v231, 0
        %vm236 = vcmask 1042432
        %v238 = vsel %vm236, %v211, 0
        %v241 = vsel %vm236, %v212, 0
        %243 = vmatpush.bf16.msra.mxu0 0
        %244 = vmatpush.bf16.msra.mxu0 0
        %245 = vmatpush.bf16.msra.mxu0 0
        %246 = vmatpush.bf16.msra.mxu0 0
        %247 = vmatpush.bf16.msra.mxu0 0
        %248 = vmatpush.bf16.msra.mxu0 0
        %249 = vmatpush.bf16.msra.mxu0 0
        %250 = vmatpush.bf16.msra.mxu0 %v238
        %251 = vmatmul.bf16.gmra.mxu0 %v234
        %v252 = vpop.f32.mrf.mxu0
        %v253 = vadd.f32 %v220, %v252
        %v254 = vpop.f32.mrf.mxu0
        %v255 = vadd.f32 %v225, %v254
        %256 = vdwg.mxu0
        %257 = vmatpush.bf16.msra.mxu0 0
        %258 = vmatpush.bf16.msra.mxu0 0
        %259 = vmatpush.bf16.msra.mxu0 0
        %260 = vmatpush.bf16.msra.mxu0 0
        %261 = vmatpush.bf16.msra.mxu0 0
        %262 = vmatpush.bf16.msra.mxu0 0
        %263 = vmatpush.bf16.msra.mxu0 0
        %264 = vmatpush.bf16.msra.mxu0 %v241
        %265 = vmatmul.bf16.gmra.mxu0 %v234
        %v266 = vpop.f32.mrf.mxu0
        %v267 = vadd.f32 %v220, %v266
        %v268 = vpop.f32.mrf.mxu0
        %v269 = vadd.f32 %v225, %v268
        %270 = vdwg.mxu0
        %v271 = vmax.f32 %v253, 0.0
        %v272 = vmax.f32 %v267, 0.0
        %v273 = vmax.f32 %v255, 0.0
        %v274 = vmax.f32 %v269, 0.0
        %v275 = vpack.c.bf16 %v273, %v271
        %v276 = vpack.c.bf16 %v274, %v272
        %v277 = vld [vmem:[#allocation5 + $0x20] sm:$0xf]
        %v278 = vld [vmem:[#allocation5 + $0x30] sm:$0xf]
        %v279 = vld [vmem:[#allocation5 + $0x40] sm:$0xf]
        %v280 = vld [vmem:[#allocation5 + $0x50] sm:$0xf]
        %v281 = vld [vmem:[#allocation5 + $0x60] sm:$0xf]
        %v282 = vld [vmem:[#allocation5 + $0x70] sm:$0xf]
        %v283 = vld [vmem:[#allocation5 + $0x80] sm:$0xf]
        %v284 = vld [vmem:[#allocation5 + $0x90] sm:$0xf]
        %v285 = vld [vmem:[%s2 + $0x10] sm:$0xff]
        %v286 = vld [vmem:[%s2 + $0x18] sm:$0xff]
        %v287 = vld [vmem:[%s2 + $0x20] sm:$0xff]
        %v288 = vld [vmem:[%s2 + $0x28] sm:$0xff]
        %v289 = vld [vmem:[%s2 + $0x30] sm:$0xff]
        %v290 = vld [vmem:[%s2 + $0x38] sm:$0xff]
        %v291 = vld [vmem:[%s2 + $0x40] sm:$0xff]
        %v292 = vld [vmem:[%s2 + $0x48] sm:$0xff]
        %294 = vset.pattern.permute.xlu0 0
        %295 = vperm.xlu0 %294, %v285
        %v296 = vpop.permute.xlu0 %295
        %299 = vset.pattern.permute.xlu0 0
        %300 = vperm.xlu0 %299, %v286
        %v301 = vpop.permute.xlu0 %300
        %304 = vset.pattern.permute.xlu0 0
        %305 = vperm.xlu0 %304, %v287
        %v306 = vpop.permute.xlu0 %305
        %309 = vset.pattern.permute.xlu0 0
        %310 = vperm.xlu0 %309, %v288
        %v311 = vpop.permute.xlu0 %310
        %314 = vset.pattern.permute.xlu0 0
        %315 = vperm.xlu0 %314, %v289
        %v316 = vpop.permute.xlu0 %315
        %319 = vset.pattern.permute.xlu0 0
        %320 = vperm.xlu0 %319, %v290
        %v321 = vpop.permute.xlu0 %320
        %324 = vset.pattern.permute.xlu0 0
        %325 = vperm.xlu0 %324, %v291
        %v326 = vpop.permute.xlu0 %325
        %329 = vset.pattern.permute.xlu0 0
        %330 = vperm.xlu0 %329, %v292
        %v331 = vpop.permute.xlu0 %330
        %v341 = vunpack.c.l.b16 %v277
        %v342 = vunpack.c.l.b16 %v278
        %v343 = vunpack.c.l.b16 %v279
        %v344 = vunpack.c.l.b16 %v280
        %v345 = vunpack.c.l.b16 %v281
        %v346 = vunpack.c.l.b16 %v282
        %v347 = vunpack.c.l.b16 %v283
        %v348 = vunpack.c.l.b16 %v284
        %v349 = vpack.c.b16 %v342, %v341
        %v350 = vpack.c.b16 %v344, %v343
        %v351 = vpack.c.b16 %v346, %v345
        %v352 = vpack.c.b16 %v348, %v347
        %vm353 = vcmask 80896
        %v355 = vsel %vm353, %v349, 0
        %v358 = vsel %vm353, %v350, 0
        %v361 = vsel %vm353, %v351, 0
        %v364 = vsel %vm353, %v352, 0
        %vm366 = vcmask 1044480
        %v368 = vsel %vm366, %v275, 0
        %v371 = vsel %vm366, %v276, 0
        %373 = vmatpush.bf16.msra.mxu0 0
        %374 = vmatpush.bf16.msra.mxu0 0
        %375 = vmatpush.bf16.msra.mxu0 0
        %376 = vmatpush.bf16.msra.mxu0 0
        %377 = vmatpush.bf16.msra.mxu0 0
        %378 = vmatpush.bf16.msra.mxu0 0
        %379 = vmatpush.bf16.msra.mxu0 0
        %380 = vmatpush.bf16.msra.mxu0 %v368
        %381 = vmatmul.bf16.gmra.mxu0 %v355
        %v382 = vpop.f32.mrf.mxu0
        %v383 = vadd.f32 %v296, %v382
        %v384 = vpop.f32.mrf.mxu0
        %v385 = vadd.f32 %v301, %v384
        %386 = vmatmul.bf16.gmra.mxu0 %v358
        %v387 = vpop.f32.mrf.mxu0
        %v388 = vadd.f32 %v306, %v387
        %v389 = vpop.f32.mrf.mxu0
        %v390 = vadd.f32 %v311, %v389
        %391 = vmatmul.bf16.gmra.mxu0 %v361
        %v392 = vpop.f32.mrf.mxu0
        %v393 = vadd.f32 %v316, %v392
        %v394 = vpop.f32.mrf.mxu0
        %v395 = vadd.f32 %v321, %v394
        %396 = vmatmul.bf16.gmra.mxu0 %v364
        %v397 = vpop.f32.mrf.mxu0
        %v398 = vadd.f32 %v326, %v397
        %v399 = vpop.f32.mrf.mxu0
        %v400 = vadd.f32 %v331, %v399
        %401 = vdwg.mxu0
        %402 = vmatpush.bf16.msra.mxu0 0
        %403 = vmatpush.bf16.msra.mxu0 0
        %404 = vmatpush.bf16.msra.mxu0 0
        %405 = vmatpush.bf16.msra.mxu0 0
        %406 = vmatpush.bf16.msra.mxu0 0
        %407 = vmatpush.bf16.msra.mxu0 0
        %408 = vmatpush.bf16.msra.mxu0 0
        %409 = vmatpush.bf16.msra.mxu0 %v371
        %410 = vmatmul.bf16.gmra.mxu0 %v355
        %v411 = vpop.f32.mrf.mxu0
        %v412 = vadd.f32 %v296, %v411
        %v413 = vpop.f32.mrf.mxu0
        %v414 = vadd.f32 %v301, %v413
        %415 = vmatmul.bf16.gmra.mxu0 %v358
        %v416 = vpop.f32.mrf.mxu0
        %v417 = vadd.f32 %v306, %v416
        %v418 = vpop.f32.mrf.mxu0
        %v419 = vadd.f32 %v311, %v418
        %420 = vmatmul.bf16.gmra.mxu0 %v361
        %v421 = vpop.f32.mrf.mxu0
        %v422 = vadd.f32 %v316, %v421
        %v423 = vpop.f32.mrf.mxu0
        %v424 = vadd.f32 %v321, %v423
        %425 = vmatmul.bf16.gmra.mxu0 %v364
        %v426 = vpop.f32.mrf.mxu0
        %v427 = vadd.f32 %v326, %v426
        %v428 = vpop.f32.mrf.mxu0
        %v429 = vadd.f32 %v331, %v428
        %430 = vdwg.mxu0
        %v431 = vmax.f32 %v383, 0.0
        %v432 = vmax.f32 %v412, 0.0
        %v433 = vmax.f32 %v385, 0.0
        %v434 = vmax.f32 %v414, 0.0
        %v435 = vmax.f32 %v388, 0.0
        %v436 = vmax.f32 %v417, 0.0
        %v437 = vmax.f32 %v390, 0.0
        %v438 = vmax.f32 %v419, 0.0
        %v439 = vmax.f32 %v393, 0.0
        %v440 = vmax.f32 %v422, 0.0
        %v441 = vmax.f32 %v395, 0.0
        %v442 = vmax.f32 %v424, 0.0
        %v443 = vmax.f32 %v398, 0.0
        %v444 = vmax.f32 %v427, 0.0
        %v445 = vmax.f32 %v400, 0.0
        %v446 = vmax.f32 %v429, 0.0
        %v447 = vpack.c.bf16 %v433, %v431
        %v448 = vpack.c.bf16 %v434, %v432
        %v449 = vpack.c.bf16 %v437, %v435
        %v450 = vpack.c.bf16 %v438, %v436
        %v451 = vpack.c.bf16 %v441, %v439
        %v452 = vpack.c.bf16 %v442, %v440
        %v453 = vpack.c.bf16 %v445, %v443
        %v454 = vpack.c.bf16 %v446, %v444
        %v455 = vld [vmem:[#allocation5 + $0xa0] sm:$0xf]
        %v456 = vld [vmem:[#allocation5 + $0xb0] sm:$0xf]
        %v457 = vld [vmem:[#allocation5 + $0xc0] sm:$0xf]
        %v458 = vld [vmem:[#allocation5 + $0xd0] sm:$0xf]
        %v459 = vld [vmem:[#allocation5 + $0xe0] sm:$0xf]
        %v460 = vld [vmem:[#allocation5 + $0xf0] sm:$0xf]
        %v461 = vld [vmem:[#allocation5 + $0x100] sm:$0xf]
        %v462 = vld [vmem:[#allocation5 + $0x110] sm:$0xf]
        %v463 = vld [vmem:[#allocation5 + $0x120] sm:$0xf]
        %v464 = vld [vmem:[#allocation5 + $0x130] sm:$0xf]
        %v465 = vld [vmem:[#allocation5 + $0x140] sm:$0xf]
        %v466 = vld [vmem:[#allocation5 + $0x150] sm:$0xf]
        %v467 = vld [vmem:[#allocation5 + $0x160] sm:$0xf]
        %v468 = vld [vmem:[#allocation5 + $0x170] sm:$0xf]
        %v469 = vld [vmem:[#allocation5 + $0x180] sm:$0xf]
        %v470 = vld [vmem:[#allocation5 + $0x190] sm:$0xf]
        %v471 = vld [vmem:[%s2 + $0x50] sm:$0xff]
        %v472 = vld [vmem:[%s2 + $0x58] sm:$0xff]
        %v473 = vld [vmem:[%s2 + $0x60] sm:$0xff]
        %v474 = vld [vmem:[%s2 + $0x68] sm:$0xff]
        %v475 = vld [vmem:[%s2 + $0x70] sm:$0xff]
        %v476 = vld [vmem:[%s2 + $0x78] sm:$0xff]
        %v477 = vld [vmem:[%s2 + $0x80] sm:$0xff]
        %v478 = vld [vmem:[%s2 + $0x88] sm:$0xff]
        %v479 = vld [vmem:[%s2 + $0x90] sm:$0xff]
        %v480 = vld [vmem:[%s2 + $0x98] sm:$0xff]
        %v481 = vld [vmem:[%s2 + $0xa0] sm:$0xff]
        %v482 = vld [vmem:[%s2 + $0xa8] sm:$0xff]
        %v483 = vld [vmem:[%s2 + $0xb0] sm:$0xff]
        %v484 = vld [vmem:[%s2 + $0xb8] sm:$0xff]
        %v485 = vld [vmem:[%s2 + $0xc0] sm:$0xff]
        %v486 = vld [vmem:[%s2 + $0xc8] sm:$0xff]
        %488 = vset.pattern.permute.xlu0 0
        %489 = vperm.xlu0 %488, %v471
        %v490 = vpop.permute.xlu0 %489
        %493 = vset.pattern.permute.xlu0 0
        %494 = vperm.xlu0 %493, %v472
        %v495 = vpop.permute.xlu0 %494
        %498 = vset.pattern.permute.xlu0 0
        %499 = vperm.xlu0 %498, %v473
        %v500 = vpop.permute.xlu0 %499
        %503 = vset.pattern.permute.xlu0 0
        %504 = vperm.xlu0 %503, %v474
        %v505 = vpop.permute.xlu0 %504
        %508 = vset.pattern.permute.xlu0 0
        %509 = vperm.xlu0 %508, %v475
        %v510 = vpop.permute.xlu0 %509
        %513 = vset.pattern.permute.xlu0 0
        %514 = vperm.xlu0 %513, %v476
        %v515 = vpop.permute.xlu0 %514
        %518 = vset.pattern.permute.xlu0 0
        %519 = vperm.xlu0 %518, %v477
        %v520 = vpop.permute.xlu0 %519
        %523 = vset.pattern.permute.xlu0 0
        %524 = vperm.xlu0 %523, %v478
        %v525 = vpop.permute.xlu0 %524
        %528 = vset.pattern.permute.xlu0 0
        %529 = vperm.xlu0 %528, %v479
        %v530 = vpop.permute.xlu0 %529
        %533 = vset.pattern.permute.xlu0 0
        %534 = vperm.xlu0 %533, %v480
        %v535 = vpop.permute.xlu0 %534
        %538 = vset.pattern.permute.xlu0 0
        %539 = vperm.xlu0 %538, %v481
        %v540 = vpop.permute.xlu0 %539
        %543 = vset.pattern.permute.xlu0 0
        %544 = vperm.xlu0 %543, %v482
        %v545 = vpop.permute.xlu0 %544
        %548 = vset.pattern.permute.xlu0 0
        %549 = vperm.xlu0 %548, %v483
        %v550 = vpop.permute.xlu0 %549
        %553 = vset.pattern.permute.xlu0 0
        %554 = vperm.xlu0 %553, %v484
        %v555 = vpop.permute.xlu0 %554
        %558 = vset.pattern.permute.xlu0 0
        %559 = vperm.xlu0 %558, %v485
        %v560 = vpop.permute.xlu0 %559
        %563 = vset.pattern.permute.xlu0 0
        %564 = vperm.xlu0 %563, %v486
        %v565 = vpop.permute.xlu0 %564
        %v583 = vunpack.c.l.b16 %v455
        %v584 = vunpack.c.l.b16 %v456
        %v585 = vunpack.c.l.b16 %v457
        %v586 = vunpack.c.l.b16 %v458
        %v587 = vunpack.c.l.b16 %v459
        %v588 = vunpack.c.l.b16 %v460
        %v589 = vunpack.c.l.b16 %v461
        %v590 = vunpack.c.l.b16 %v462
        %v591 = vunpack.c.l.b16 %v463
        %v592 = vunpack.c.l.b16 %v464
        %v593 = vunpack.c.l.b16 %v465
        %v594 = vunpack.c.l.b16 %v466
        %v595 = vunpack.c.l.b16 %v467
        %v596 = vunpack.c.l.b16 %v468
        %v597 = vunpack.c.l.b16 %v469
        %v598 = vunpack.c.l.b16 %v470
        %v599 = vpack.c.b16 %v584, %v583
        %v600 = vpack.c.b16 %v586, %v585
        %v601 = vpack.c.b16 %v588, %v587
        %v602 = vpack.c.b16 %v590, %v589
        %v603 = vpack.c.b16 %v592, %v591
        %v604 = vpack.c.b16 %v594, %v593
        %v605 = vpack.c.b16 %v596, %v595
        %v606 = vpack.c.b16 %v598, %v597
        %vm607 = vcmask 523264
        %v609 = vsel %vm607, %v599, 0
        %v612 = vsel %vm607, %v600, 0
        %v615 = vsel %vm607, %v601, 0
        %v618 = vsel %vm607, %v602, 0
        %v621 = vsel %vm607, %v603, 0
        %v624 = vsel %vm607, %v604, 0
        %v627 = vsel %vm607, %v605, 0
        %v630 = vsel %vm607, %v606, 0
        %632 = vmatpush.bf16.msra.mxu0 0
        %633 = vmatpush.bf16.msra.mxu0 0
        %634 = vmatpush.bf16.msra.mxu0 0
        %635 = vmatpush.bf16.msra.mxu0 0
        %636 = vmatpush.bf16.msra.mxu0 %v453
        %637 = vmatpush.bf16.msra.mxu0 %v451
        %638 = vmatpush.bf16.msra.mxu0 %v449
        %639 = vmatpush.bf16.msra.mxu0 %v447
        %640 = vmatmul.bf16.gmra.mxu0 %v609
        %v641 = vpop.f32.mrf.mxu0
        %v642 = vadd.f32 %v490, %v641
        %v643 = vpop.f32.mrf.mxu0
        %v644 = vadd.f32 %v495, %v643
        %645 = vmatmul.bf16.gmra.mxu0 %v612
        %v646 = vpop.f32.mrf.mxu0
        %v647 = vadd.f32 %v500, %v646
        %v648 = vpop.f32.mrf.mxu0
        %v649 = vadd.f32 %v505, %v648
        %650 = vmatmul.bf16.gmra.mxu0 %v615
        %v651 = vpop.f32.mrf.mxu0
        %v652 = vadd.f32 %v510, %v651
        %v653 = vpop.f32.mrf.mxu0
        %v654 = vadd.f32 %v515, %v653
        %655 = vmatmul.bf16.gmra.mxu0 %v618
        %v656 = vpop.f32.mrf.mxu0
        %v657 = vadd.f32 %v520, %v656
        %v658 = vpop.f32.mrf.mxu0
        %v659 = vadd.f32 %v525, %v658
        %660 = vmatmul.bf16.gmra.mxu0 %v621
        %v661 = vpop.f32.mrf.mxu0
        %v662 = vadd.f32 %v530, %v661
        %v663 = vpop.f32.mrf.mxu0
        %v664 = vadd.f32 %v535, %v663
        %665 = vmatmul.bf16.gmra.mxu0 %v624
        %v666 = vpop.f32.mrf.mxu0
        %v667 = vadd.f32 %v540, %v666
        %v668 = vpop.f32.mrf.mxu0
        %v669 = vadd.f32 %v545, %v668
        %670 = vmatmul.bf16.gmra.mxu0 %v627
        %v671 = vpop.f32.mrf.mxu0
        %v672 = vadd.f32 %v550, %v671
        %v673 = vpop.f32.mrf.mxu0
        %v674 = vadd.f32 %v555, %v673
        %675 = vmatmul.bf16.gmra.mxu0 %v630
        %v676 = vpop.f32.mrf.mxu0
        %v677 = vadd.f32 %v560, %v676
        %v678 = vpop.f32.mrf.mxu0
        %v679 = vadd.f32 %v565, %v678
        %680 = vdwg.mxu0
        %681 = vmatpush.bf16.msra.mxu0 0
        %682 = vmatpush.bf16.msra.mxu0 0
        %683 = vmatpush.bf16.msra.mxu0 0
        %684 = vmatpush.bf16.msra.mxu0 0
        %685 = vmatpush.bf16.msra.mxu0 %v454
        %686 = vmatpush.bf16.msra.mxu0 %v452
        %687 = vmatpush.bf16.msra.mxu0 %v450
        %688 = vmatpush.bf16.msra.mxu0 %v448
        %689 = vmatmul.bf16.gmra.mxu0 %v609
        %v690 = vpop.f32.mrf.mxu0
        %v691 = vadd.f32 %v490, %v690
        %v692 = vpop.f32.mrf.mxu0
        %v693 = vadd.f32 %v495, %v692
        %694 = vmatmul.bf16.gmra.mxu0 %v612
        %v695 = vpop.f32.mrf.mxu0
        %v696 = vadd.f32 %v500, %v695
        %v697 = vpop.f32.mrf.mxu0
        %v698 = vadd.f32 %v505, %v697
        %699 = vmatmul.bf16.gmra.mxu0 %v615
        %v700 = vpop.f32.mrf.mxu0
        %v701 = vadd.f32 %v510, %v700
        %v702 = vpop.f32.mrf.mxu0
        %v703 = vadd.f32 %v515, %v702
        %704 = vmatmul.bf16.gmra.mxu0 %v618
        %v705 = vpop.f32.mrf.mxu0
        %v706 = vadd.f32 %v520, %v705
        %v707 = vpop.f32.mrf.mxu0
        %v708 = vadd.f32 %v525, %v707
        %709 = vmatmul.bf16.gmra.mxu0 %v621
        %v710 = vpop.f32.mrf.mxu0
        %v711 = vadd.f32 %v530, %v710
        %v712 = vpop.f32.mrf.mxu0
        %v713 = vadd.f32 %v535, %v712
        %714 = vmatmul.bf16.gmra.mxu0 %v624
        %v715 = vpop.f32.mrf.mxu0
        %v716 = vadd.f32 %v540, %v715
        %v717 = vpop.f32.mrf.mxu0
        %v718 = vadd.f32 %v545, %v717
        %719 = vmatmul.bf16.gmra.mxu0 %v627
        %v720 = vpop.f32.mrf.mxu0
        %v721 = vadd.f32 %v550, %v720
        %v722 = vpop.f32.mrf.mxu0
        %v723 = vadd.f32 %v555, %v722
        %724 = vmatmul.bf16.gmra.mxu0 %v630
        %v725 = vpop.f32.mrf.mxu0
        %v726 = vadd.f32 %v560, %v725
        %v727 = vpop.f32.mrf.mxu0
        %v728 = vadd.f32 %v565, %v727
        %729 = vdwg.mxu0
        %v730 = vmax.f32 %v642, 0.0
        %v731 = vmax.f32 %v691, 0.0
        %v732 = vmax.f32 %v644, 0.0
        %v733 = vmax.f32 %v693, 0.0
        %v734 = vmax.f32 %v647, 0.0
        %v735 = vmax.f32 %v696, 0.0
        %v736 = vmax.f32 %v649, 0.0
        %v737 = vmax.f32 %v698, 0.0
        %v738 = vmax.f32 %v652, 0.0
        %v739 = vmax.f32 %v701, 0.0
        %v740 = vmax.f32 %v654, 0.0
        %v741 = vmax.f32 %v703, 0.0
        %v742 = vmax.f32 %v657, 0.0
        %v743 = vmax.f32 %v706, 0.0
        %v744 = vmax.f32 %v659, 0.0
        %v745 = vmax.f32 %v708, 0.0
        %v746 = vmax.f32 %v662, 0.0
        %v747 = vmax.f32 %v711, 0.0
        %v748 = vmax.f32 %v664, 0.0
        %v749 = vmax.f32 %v713, 0.0
        %v750 = vmax.f32 %v667, 0.0
        %v751 = vmax.f32 %v716, 0.0
        %v752 = vmax.f32 %v669, 0.0
        %v753 = vmax.f32 %v718, 0.0
        %v754 = vmax.f32 %v672, 0.0
        %v755 = vmax.f32 %v721, 0.0
        %v756 = vmax.f32 %v674, 0.0
        %v757 = vmax.f32 %v723, 0.0
        %v758 = vmax.f32 %v677, 0.0
        %v759 = vmax.f32 %v726, 0.0
        %v760 = vmax.f32 %v679, 0.0
        %v761 = vmax.f32 %v728, 0.0
        %v762 = vpack.c.bf16 %v732, %v730
        %v763 = vpack.c.bf16 %v733, %v731
        %v764 = vpack.c.bf16 %v736, %v734
        %v765 = vpack.c.bf16 %v737, %v735
        %v766 = vpack.c.bf16 %v740, %v738
        %v767 = vpack.c.bf16 %v741, %v739
        %v768 = vpack.c.bf16 %v744, %v742
        %v769 = vpack.c.bf16 %v745, %v743
        %v770 = vpack.c.bf16 %v748, %v746
        %v771 = vpack.c.bf16 %v749, %v747
        %v772 = vpack.c.bf16 %v752, %v750
        %v773 = vpack.c.bf16 %v753, %v751
        %v774 = vpack.c.bf16 %v756, %v754
        %v775 = vpack.c.bf16 %v757, %v755
        %v776 = vpack.c.bf16 %v760, %v758
        %v777 = vpack.c.bf16 %v761, %v759
        %v778 = vld [vmem:[#allocation5 + $0x1a0] sm:$0xf]
        %v779 = vld [vmem:[#allocation5 + $0x1b0] sm:$0xf]
        %v780 = vld [vmem:[#allocation5 + $0x1c0] sm:$0xf]
        %v781 = vld [vmem:[#allocation5 + $0x1d0] sm:$0xf]
        %v782 = vld [vmem:[#allocation5 + $0x1e0] sm:$0xf]
        %v783 = vld [vmem:[#allocation5 + $0x1f0] sm:$0xf]
        %v784 = vld [vmem:[#allocation5 + $0x200] sm:$0xf]
        %v785 = vld [vmem:[#allocation5 + $0x210] sm:$0xf]
        %v786 = vld [vmem:[#allocation5 + $0x220] sm:$0xf]
        %v787 = vld [vmem:[#allocation5 + $0x230] sm:$0xf]
        %v788 = vld [vmem:[#allocation5 + $0x240] sm:$0xf]
        %v789 = vld [vmem:[#allocation5 + $0x250] sm:$0xf]
        %v790 = vld [vmem:[#allocation5 + $0x260] sm:$0xf]
        %v791 = vld [vmem:[#allocation5 + $0x270] sm:$0xf]
        %v792 = vld [vmem:[#allocation5 + $0x280] sm:$0xf]
        %v793 = vld [vmem:[#allocation5 + $0x290] sm:$0xf]
        %v794 = vld [vmem:[#allocation5 + $0x2a0] sm:$0xf]
        %v795 = vld [vmem:[#allocation5 + $0x2b0] sm:$0xf]
        %v796 = vld [vmem:[#allocation5 + $0x2c0] sm:$0xf]
        %v797 = vld [vmem:[#allocation5 + $0x2d0] sm:$0xf]
        %v798 = vld [vmem:[#allocation5 + $0x2e0] sm:$0xf]
        %v799 = vld [vmem:[#allocation5 + $0x2f0] sm:$0xf]
        %v800 = vld [vmem:[#allocation5 + $0x300] sm:$0xf]
        %v801 = vld [vmem:[#allocation5 + $0x310] sm:$0xf]
        %v802 = vld [vmem:[#allocation5 + $0x320] sm:$0xf]
        %v803 = vld [vmem:[#allocation5 + $0x330] sm:$0xf]
        %v804 = vld [vmem:[#allocation5 + $0x340] sm:$0xf]
        %v805 = vld [vmem:[#allocation5 + $0x350] sm:$0xf]
        %v806 = vld [vmem:[#allocation5 + $0x360] sm:$0xf]
        %v807 = vld [vmem:[#allocation5 + $0x370] sm:$0xf]
        %v808 = vld [vmem:[#allocation5 + $0x380] sm:$0xf]
        %v809 = vld [vmem:[#allocation5 + $0x390] sm:$0xf]
        %v810 = vld [vmem:[%s2 + $0xd0] sm:$0xff]
        %v811 = vld [vmem:[%s2 + $0xd8] sm:$0xff]
        %v812 = vld [vmem:[%s2 + $0xe0] sm:$0xff]
        %v813 = vld [vmem:[%s2 + $0xe8] sm:$0xff]
        %v814 = vld [vmem:[%s2 + $0xf0] sm:$0xff]
        %v815 = vld [vmem:[%s2 + $0xf8] sm:$0xff]
        %v816 = vld [vmem:[%s2 + $0x100] sm:$0xff]
        %v817 = vld [vmem:[%s2 + $0x108] sm:$0xff]
        %v818 = vld [vmem:[%s2 + $0x110] sm:$0xff]
        %v819 = vld [vmem:[%s2 + $0x118] sm:$0xff]
        %v820 = vld [vmem:[%s2 + $0x120] sm:$0xff]
        %v821 = vld [vmem:[%s2 + $0x128] sm:$0xff]
        %v822 = vld [vmem:[%s2 + $0x130] sm:$0xff]
        %v823 = vld [vmem:[%s2 + $0x138] sm:$0xff]
        %v824 = vld [vmem:[%s2 + $0x140] sm:$0xff]
        %v825 = vld [vmem:[%s2 + $0x148] sm:$0xff]
        %v826 = vld [vmem:[%s2 + $0x150] sm:$0xff]
        %v827 = vld [vmem:[%s2 + $0x158] sm:$0xff]
        %v828 = vld [vmem:[%s2 + $0x160] sm:$0xff]
        %v829 = vld [vmem:[%s2 + $0x168] sm:$0xff]
        %v830 = vld [vmem:[%s2 + $0x170] sm:$0xff]
        %v831 = vld [vmem:[%s2 + $0x178] sm:$0xff]
        %v832 = vld [vmem:[%s2 + $0x180] sm:$0xff]
        %v833 = vld [vmem:[%s2 + $0x188] sm:$0xff]
        %v834 = vld [vmem:[%s2 + $0x190] sm:$0xff]
        %v835 = vld [vmem:[%s2 + $0x198] sm:$0xff]
        %v836 = vld [vmem:[%s2 + $0x1a0] sm:$0xff]
        %v837 = vld [vmem:[%s2 + $0x1a8] sm:$0xff]
        %v838 = vld [vmem:[%s2 + $0x1b0] sm:$0xff]
        %v839 = vld [vmem:[%s2 + $0x1b8] sm:$0xff]
        %v840 = vld [vmem:[%s2 + $0x1c0] sm:$0xff]
        %v841 = vld [vmem:[%s2 + $0x1c8] sm:$0xff]
        %843 = vset.pattern.permute.xlu0 0
        %844 = vperm.xlu0 %843, %v810
        %v845 = vpop.permute.xlu0 %844
        %848 = vset.pattern.permute.xlu0 0
        %849 = vperm.xlu0 %848, %v811
        %v850 = vpop.permute.xlu0 %849
        %853 = vset.pattern.permute.xlu0 0
        %854 = vperm.xlu0 %853, %v812
        %v855 = vpop.permute.xlu0 %854
        %858 = vset.pattern.permute.xlu0 0
        %859 = vperm.xlu0 %858, %v813
        %v860 = vpop.permute.xlu0 %859
        %863 = vset.pattern.permute.xlu0 0
        %864 = vperm.xlu0 %863, %v814
        %v865 = vpop.permute.xlu0 %864
        %868 = vset.pattern.permute.xlu0 0
        %869 = vperm.xlu0 %868, %v815
        %v870 = vpop.permute.xlu0 %869
        %873 = vset.pattern.permute.xlu0 0
        %874 = vperm.xlu0 %873, %v816
        %v875 = vpop.permute.xlu0 %874
        %878 = vset.pattern.permute.xlu0 0
        %879 = vperm.xlu0 %878, %v817
        %v880 = vpop.permute.xlu0 %879
        %883 = vset.pattern.permute.xlu0 0
        %884 = vperm.xlu0 %883, %v818
        %v885 = vpop.permute.xlu0 %884
        %888 = vset.pattern.permute.xlu0 0
        %889 = vperm.xlu0 %888, %v819
        %v890 = vpop.permute.xlu0 %889
        %893 = vset.pattern.permute.xlu0 0
        %894 = vperm.xlu0 %893, %v820
        %v895 = vpop.permute.xlu0 %894
        %898 = vset.pattern.permute.xlu0 0
        %899 = vperm.xlu0 %898, %v821
        %v900 = vpop.permute.xlu0 %899
        %903 = vset.pattern.permute.xlu0 0
        %904 = vperm.xlu0 %903, %v822
        %v905 = vpop.permute.xlu0 %904
        %908 = vset.pattern.permute.xlu0 0
        %909 = vperm.xlu0 %908, %v823
        %v910 = vpop.permute.xlu0 %909
        %913 = vset.pattern.permute.xlu0 0
        %914 = vperm.xlu0 %913, %v824
        %v915 = vpop.permute.xlu0 %914
        %918 = vset.pattern.permute.xlu0 0
        %919 = vperm.xlu0 %918, %v825
        %v920 = vpop.permute.xlu0 %919
        %923 = vset.pattern.permute.xlu0 0
        %924 = vperm.xlu0 %923, %v826
        %v925 = vpop.permute.xlu0 %924
        %928 = vset.pattern.permute.xlu0 0
        %929 = vperm.xlu0 %928, %v827
        %v930 = vpop.permute.xlu0 %929
        %933 = vset.pattern.permute.xlu0 0
        %934 = vperm.xlu0 %933, %v828
        %v935 = vpop.permute.xlu0 %934
        %938 = vset.pattern.permute.xlu0 0
        %939 = vperm.xlu0 %938, %v829
        %v940 = vpop.permute.xlu0 %939
        %943 = vset.pattern.permute.xlu0 0
        %944 = vperm.xlu0 %943, %v830
        %v945 = vpop.permute.xlu0 %944
        %948 = vset.pattern.permute.xlu0 0
        %949 = vperm.xlu0 %948, %v831
        %v950 = vpop.permute.xlu0 %949
        %953 = vset.pattern.permute.xlu0 0
        %954 = vperm.xlu0 %953, %v832
        %v955 = vpop.permute.xlu0 %954
        %958 = vset.pattern.permute.xlu0 0
        %959 = vperm.xlu0 %958, %v833
        %v960 = vpop.permute.xlu0 %959
        %963 = vset.pattern.permute.xlu0 0
        %964 = vperm.xlu0 %963, %v834
        %v965 = vpop.permute.xlu0 %964
        %968 = vset.pattern.permute.xlu0 0
        %969 = vperm.xlu0 %968, %v835
        %v970 = vpop.permute.xlu0 %969
        %973 = vset.pattern.permute.xlu0 0
        %974 = vperm.xlu0 %973, %v836
        %v975 = vpop.permute.xlu0 %974
        %978 = vset.pattern.permute.xlu0 0
        %979 = vperm.xlu0 %978, %v837
        %v980 = vpop.permute.xlu0 %979
        %983 = vset.pattern.permute.xlu0 0
        %984 = vperm.xlu0 %983, %v838
        %v985 = vpop.permute.xlu0 %984
        %988 = vset.pattern.permute.xlu0 0
        %989 = vperm.xlu0 %988, %v839
        %v990 = vpop.permute.xlu0 %989
        %993 = vset.pattern.permute.xlu0 0
        %994 = vperm.xlu0 %993, %v840
        %v995 = vpop.permute.xlu0 %994
        %998 = vset.pattern.permute.xlu0 0
        %999 = vperm.xlu0 %998, %v841
        %v1000 = vpop.permute.xlu0 %999
        %v1034 = vunpack.c.l.b16 %v778
        %v1035 = vunpack.c.l.b16 %v779
        %v1036 = vunpack.c.l.b16 %v780
        %v1037 = vunpack.c.l.b16 %v781
        %v1038 = vunpack.c.l.b16 %v782
        %v1039 = vunpack.c.l.b16 %v783
        %v1040 = vunpack.c.l.b16 %v784
        %v1041 = vunpack.c.l.b16 %v785
        %v1042 = vunpack.c.l.b16 %v786
        %v1043 = vunpack.c.l.b16 %v787
        %v1044 = vunpack.c.l.b16 %v788
        %v1045 = vunpack.c.l.b16 %v789
        %v1046 = vunpack.c.l.b16 %v790
        %v1047 = vunpack.c.l.b16 %v791
        %v1048 = vunpack.c.l.b16 %v792
        %v1049 = vunpack.c.l.b16 %v793
        %v1050 = vunpack.c.l.b16 %v794
        %v1051 = vunpack.c.l.b16 %v795
        %v1052 = vunpack.c.l.b16 %v796
        %v1053 = vunpack.c.l.b16 %v797
        %v1054 = vunpack.c.l.b16 %v798
        %v1055 = vunpack.c.l.b16 %v799
        %v1056 = vunpack.c.l.b16 %v800
        %v1057 = vunpack.c.l.b16 %v801
        %v1058 = vunpack.c.l.b16 %v802
        %v1059 = vunpack.c.l.b16 %v803
        %v1060 = vunpack.c.l.b16 %v804
        %v1061 = vunpack.c.l.b16 %v805
        %v1062 = vunpack.c.l.b16 %v806
        %v1063 = vunpack.c.l.b16 %v807
        %v1064 = vunpack.c.l.b16 %v808
        %v1065 = vunpack.c.l.b16 %v809
        %v1066 = vpack.c.b16 %v1035, %v1034
        %v1067 = vpack.c.b16 %v1037, %v1036
        %v1068 = vpack.c.b16 %v1039, %v1038
        %v1069 = vpack.c.b16 %v1041, %v1040
        %v1070 = vpack.c.b16 %v1043, %v1042
        %v1071 = vpack.c.b16 %v1045, %v1044
        %v1072 = vpack.c.b16 %v1047, %v1046
        %v1073 = vpack.c.b16 %v1049, %v1048
        %v1074 = vpack.c.b16 %v1051, %v1050
        %v1075 = vpack.c.b16 %v1053, %v1052
        %v1076 = vpack.c.b16 %v1055, %v1054
        %v1077 = vpack.c.b16 %v1057, %v1056
        %v1078 = vpack.c.b16 %v1059, %v1058
        %v1079 = vpack.c.b16 %v1061, %v1060
        %v1080 = vpack.c.b16 %v1063, %v1062
        %v1081 = vpack.c.b16 %v1065, %v1064
        %1098 = vmatpush.bf16.msra.mxu0 %v776
        %1099 = vmatpush.bf16.msra.mxu0 %v774
        %1100 = vmatpush.bf16.msra.mxu0 %v772
        %1101 = vmatpush.bf16.msra.mxu0 %v770
        %1102 = vmatpush.bf16.msra.mxu0 %v768
        %1103 = vmatpush.bf16.msra.mxu0 %v766
        %1104 = vmatpush.bf16.msra.mxu0 %v764
        %1105 = vmatpush.bf16.msra.mxu0 %v762
        %1106 = vmatmul.bf16.gmra.mxu0 %v1066
        %v1107 = vpop.f32.mrf.mxu0
        %v1108 = vadd.f32 %v845, %v1107
        %v1109 = vpop.f32.mrf.mxu0
        %v1110 = vadd.f32 %v850, %v1109
        %1111 = vmatmul.bf16.gmra.mxu0 %v1067
        %v1112 = vpop.f32.mrf.mxu0
        %v1113 = vadd.f32 %v855, %v1112
        %v1114 = vpop.f32.mrf.mxu0
        %v1115 = vadd.f32 %v860, %v1114
        %1116 = vmatmul.bf16.gmra.mxu0 %v1068
        %v1117 = vpop.f32.mrf.mxu0
        %v1118 = vadd.f32 %v865, %v1117
        %v1119 = vpop.f32.mrf.mxu0
        %v1120 = vadd.f32 %v870, %v1119
        %1121 = vmatmul.bf16.gmra.mxu0 %v1069
        %v1122 = vpop.f32.mrf.mxu0
        %v1123 = vadd.f32 %v875, %v1122
        %v1124 = vpop.f32.mrf.mxu0
        %v1125 = vadd.f32 %v880, %v1124
        %1126 = vmatmul.bf16.gmra.mxu0 %v1070
        %v1127 = vpop.f32.mrf.mxu0
        %v1128 = vadd.f32 %v885, %v1127
        %v1129 = vpop.f32.mrf.mxu0
        %v1130 = vadd.f32 %v890, %v1129
        %1131 = vmatmul.bf16.gmra.mxu0 %v1071
        %v1132 = vpop.f32.mrf.mxu0
        %v1133 = vadd.f32 %v895, %v1132
        %v1134 = vpop.f32.mrf.mxu0
        %v1135 = vadd.f32 %v900, %v1134
        %1136 = vmatmul.bf16.gmra.mxu0 %v1072
        %v1137 = vpop.f32.mrf.mxu0
        %v1138 = vadd.f32 %v905, %v1137
        %v1139 = vpop.f32.mrf.mxu0
        %v1140 = vadd.f32 %v910, %v1139
        %1141 = vmatmul.bf16.gmra.mxu0 %v1073
        %v1142 = vpop.f32.mrf.mxu0
        %v1143 = vadd.f32 %v915, %v1142
        %v1144 = vpop.f32.mrf.mxu0
        %v1145 = vadd.f32 %v920, %v1144
        %1146 = vmatmul.bf16.gmra.mxu0 %v1074
        %v1147 = vpop.f32.mrf.mxu0
        %v1148 = vadd.f32 %v925, %v1147
        %v1149 = vpop.f32.mrf.mxu0
        %v1150 = vadd.f32 %v930, %v1149
        %1151 = vmatmul.bf16.gmra.mxu0 %v1075
        %v1152 = vpop.f32.mrf.mxu0
        %v1153 = vadd.f32 %v935, %v1152
        %v1154 = vpop.f32.mrf.mxu0
        %v1155 = vadd.f32 %v940, %v1154
        %1156 = vmatmul.bf16.gmra.mxu0 %v1076
        %v1157 = vpop.f32.mrf.mxu0
        %v1158 = vadd.f32 %v945, %v1157
        %v1159 = vpop.f32.mrf.mxu0
        %v1160 = vadd.f32 %v950, %v1159
        %1161 = vmatmul.bf16.gmra.mxu0 %v1077
        %v1162 = vpop.f32.mrf.mxu0
        %v1163 = vadd.f32 %v955, %v1162
        %v1164 = vpop.f32.mrf.mxu0
        %v1165 = vadd.f32 %v960, %v1164
        %1166 = vmatmul.bf16.gmra.mxu0 %v1078
        %v1167 = vpop.f32.mrf.mxu0
        %v1168 = vadd.f32 %v965, %v1167
        %v1169 = vpop.f32.mrf.mxu0
        %v1170 = vadd.f32 %v970, %v1169
        %1171 = vmatmul.bf16.gmra.mxu0 %v1079
        %v1172 = vpop.f32.mrf.mxu0
        %v1173 = vadd.f32 %v975, %v1172
        %v1174 = vpop.f32.mrf.mxu0
        %v1175 = vadd.f32 %v980, %v1174
        %1176 = vmatmul.bf16.gmra.mxu0 %v1080
        %v1177 = vpop.f32.mrf.mxu0
        %v1178 = vadd.f32 %v985, %v1177
        %v1179 = vpop.f32.mrf.mxu0
        %v1180 = vadd.f32 %v990, %v1179
        %1181 = vmatmul.bf16.gmra.mxu0 %v1081
        %v1182 = vpop.f32.mrf.mxu0
        %v1183 = vadd.f32 %v995, %v1182
        %v1184 = vpop.f32.mrf.mxu0
        %v1185 = vadd.f32 %v1000, %v1184
        %1186 = vdwg.mxu0
        %1187 = vmatpush.bf16.msra.mxu0 %v777
        %1188 = vmatpush.bf16.msra.mxu0 %v775
        %1189 = vmatpush.bf16.msra.mxu0 %v773
        %1190 = vmatpush.bf16.msra.mxu0 %v771
        %1191 = vmatpush.bf16.msra.mxu0 %v769
        %1192 = vmatpush.bf16.msra.mxu0 %v767
        %1193 = vmatpush.bf16.msra.mxu0 %v765
        %1194 = vmatpush.bf16.msra.mxu0 %v763
        %1195 = vmatmul.bf16.gmra.mxu0 %v1066
        %v1196 = vpop.f32.mrf.mxu0
        %v1197 = vadd.f32 %v845, %v1196
        %v1198 = vpop.f32.mrf.mxu0
        %v1199 = vadd.f32 %v850, %v1198
        %1200 = vmatmul.bf16.gmra.mxu0 %v1067
        %v1201 = vpop.f32.mrf.mxu0
        %v1202 = vadd.f32 %v855, %v1201
        %v1203 = vpop.f32.mrf.mxu0
        %v1204 = vadd.f32 %v860, %v1203
        %1205 = vmatmul.bf16.gmra.mxu0 %v1068
        %v1206 = vpop.f32.mrf.mxu0
        %v1207 = vadd.f32 %v865, %v1206
        %v1208 = vpop.f32.mrf.mxu0
        %v1209 = vadd.f32 %v870, %v1208
        %1210 = vmatmul.bf16.gmra.mxu0 %v1069
        %v1211 = vpop.f32.mrf.mxu0
        %v1212 = vadd.f32 %v875, %v1211
        %v1213 = vpop.f32.mrf.mxu0
        %v1214 = vadd.f32 %v880, %v1213
        %1215 = vmatmul.bf16.gmra.mxu0 %v1070
        %v1216 = vpop.f32.mrf.mxu0
        %v1217 = vadd.f32 %v885, %v1216
        %v1218 = vpop.f32.mrf.mxu0
        %v1219 = vadd.f32 %v890, %v1218
        %1220 = vmatmul.bf16.gmra.mxu0 %v1071
        %v1221 = vpop.f32.mrf.mxu0
        %v1222 = vadd.f32 %v895, %v1221
        %v1223 = vpop.f32.mrf.mxu0
        %v1224 = vadd.f32 %v900, %v1223
        %1225 = vmatmul.bf16.gmra.mxu0 %v1072
        %v1226 = vpop.f32.mrf.mxu0
        %v1227 = vadd.f32 %v905, %v1226
        %v1228 = vpop.f32.mrf.mxu0
        %v1229 = vadd.f32 %v910, %v1228
        %1230 = vmatmul.bf16.gmra.mxu0 %v1073
        %v1231 = vpop.f32.mrf.mxu0
        %v1232 = vadd.f32 %v915, %v1231
        %v1233 = vpop.f32.mrf.mxu0
        %v1234 = vadd.f32 %v920, %v1233
        %1235 = vmatmul.bf16.gmra.mxu0 %v1074
        %v1236 = vpop.f32.mrf.mxu0
        %v1237 = vadd.f32 %v925, %v1236
        %v1238 = vpop.f32.mrf.mxu0
        %v1239 = vadd.f32 %v930, %v1238
        %1240 = vmatmul.bf16.gmra.mxu0 %v1075
        %v1241 = vpop.f32.mrf.mxu0
        %v1242 = vadd.f32 %v935, %v1241
        %v1243 = vpop.f32.mrf.mxu0
        %v1244 = vadd.f32 %v940, %v1243
        %1245 = vmatmul.bf16.gmra.mxu0 %v1076
        %v1246 = vpop.f32.mrf.mxu0
        %v1247 = vadd.f32 %v945, %v1246
        %v1248 = vpop.f32.mrf.mxu0
        %v1249 = vadd.f32 %v950, %v1248
        %1250 = vmatmul.bf16.gmra.mxu0 %v1077
        %v1251 = vpop.f32.mrf.mxu0
        %v1252 = vadd.f32 %v955, %v1251
        %v1253 = vpop.f32.mrf.mxu0
        %v1254 = vadd.f32 %v960, %v1253
        %1255 = vmatmul.bf16.gmra.mxu0 %v1078
        %v1256 = vpop.f32.mrf.mxu0
        %v1257 = vadd.f32 %v965, %v1256
        %v1258 = vpop.f32.mrf.mxu0
        %v1259 = vadd.f32 %v970, %v1258
        %1260 = vmatmul.bf16.gmra.mxu0 %v1079
        %v1261 = vpop.f32.mrf.mxu0
        %v1262 = vadd.f32 %v975, %v1261
        %v1263 = vpop.f32.mrf.mxu0
        %v1264 = vadd.f32 %v980, %v1263
        %1265 = vmatmul.bf16.gmra.mxu0 %v1080
        %v1266 = vpop.f32.mrf.mxu0
        %v1267 = vadd.f32 %v985, %v1266
        %v1268 = vpop.f32.mrf.mxu0
        %v1269 = vadd.f32 %v990, %v1268
        %1270 = vmatmul.bf16.gmra.mxu0 %v1081
        %v1271 = vpop.f32.mrf.mxu0
        %v1272 = vadd.f32 %v995, %v1271
        %v1273 = vpop.f32.mrf.mxu0
        %v1274 = vadd.f32 %v1000, %v1273
        %1275 = vdwg.mxu0
        %v1276 = vmax.f32 %v1108, 0.0
        %v1277 = vmax.f32 %v1197, 0.0
        %v1278 = vmax.f32 %v1110, 0.0
        %v1279 = vmax.f32 %v1199, 0.0
        %v1280 = vmax.f32 %v1113, 0.0
        %v1281 = vmax.f32 %v1202, 0.0
        %v1282 = vmax.f32 %v1115, 0.0
        %v1283 = vmax.f32 %v1204, 0.0
        %v1284 = vmax.f32 %v1118, 0.0
        %v1285 = vmax.f32 %v1207, 0.0
        %v1286 = vmax.f32 %v1120, 0.0
        %v1287 = vmax.f32 %v1209, 0.0
        %v1288 = vmax.f32 %v1123, 0.0
        %v1289 = vmax.f32 %v1212, 0.0
        %v1290 = vmax.f32 %v1125, 0.0
        %v1291 = vmax.f32 %v1214, 0.0
        %v1292 = vmax.f32 %v1128, 0.0
        %v1293 = vmax.f32 %v1217, 0.0
        %v1294 = vmax.f32 %v1130, 0.0
        %v1295 = vmax.f32 %v1219, 0.0
        %v1296 = vmax.f32 %v1133, 0.0
        %v1297 = vmax.f32 %v1222, 0.0
        %v1298 = vmax.f32 %v1135, 0.0
        %v1299 = vmax.f32 %v1224, 0.0
        %v1300 = vmax.f32 %v1138, 0.0
        %v1301 = vmax.f32 %v1227, 0.0
        %v1302 = vmax.f32 %v1140, 0.0
        %v1303 = vmax.f32 %v1229, 0.0
        %v1304 = vmax.f32 %v1143, 0.0
        %v1305 = vmax.f32 %v1232, 0.0
        %v1306 = vmax.f32 %v1145, 0.0
        %v1307 = vmax.f32 %v1234, 0.0
        %v1308 = vmax.f32 %v1148, 0.0
        %v1309 = vmax.f32 %v1237, 0.0
        %v1310 = vmax.f32 %v1150, 0.0
        %v1311 = vmax.f32 %v1239, 0.0
        %v1312 = vmax.f32 %v1153, 0.0
        %v1313 = vmax.f32 %v1242, 0.0
        %v1314 = vmax.f32 %v1155, 0.0
        %v1315 = vmax.f32 %v1244, 0.0
        %v1316 = vmax.f32 %v1158, 0.0
        %v1317 = vmax.f32 %v1247, 0.0
        %v1318 = vmax.f32 %v1160, 0.0
        %v1319 = vmax.f32 %v1249, 0.0
        %v1320 = vmax.f32 %v1163, 0.0
        %v1321 = vmax.f32 %v1252, 0.0
        %v1322 = vmax.f32 %v1165, 0.0
        %v1323 = vmax.f32 %v1254, 0.0
        %v1324 = vmax.f32 %v1168, 0.0
        %v1325 = vmax.f32 %v1257, 0.0
        %v1326 = vmax.f32 %v1170, 0.0
        %v1327 = vmax.f32 %v1259, 0.0
        %v1328 = vmax.f32 %v1173, 0.0
        %v1329 = vmax.f32 %v1262, 0.0
        %v1330 = vmax.f32 %v1175, 0.0
        %v1331 = vmax.f32 %v1264, 0.0
        %v1332 = vmax.f32 %v1178, 0.0
        %v1333 = vmax.f32 %v1267, 0.0
        %v1334 = vmax.f32 %v1180, 0.0
        %v1335 = vmax.f32 %v1269, 0.0
        %v1336 = vmax.f32 %v1183, 0.0
        %v1337 = vmax.f32 %v1272, 0.0
        %v1338 = vmax.f32 %v1185, 0.0
        %v1339 = vmax.f32 %v1274, 0.0
        %v1340 = vpack.c.bf16 %v1278, %v1276
        %v1341 = vpack.c.bf16 %v1279, %v1277
        %v1342 = vpack.c.bf16 %v1282, %v1280
        %v1343 = vpack.c.bf16 %v1283, %v1281
        %v1344 = vpack.c.bf16 %v1286, %v1284
        %v1345 = vpack.c.bf16 %v1287, %v1285
        %v1346 = vpack.c.bf16 %v1290, %v1288
        %v1347 = vpack.c.bf16 %v1291, %v1289
        %v1348 = vpack.c.bf16 %v1294, %v1292
        %v1349 = vpack.c.bf16 %v1295, %v1293
        %v1350 = vpack.c.bf16 %v1298, %v1296
        %v1351 = vpack.c.bf16 %v1299, %v1297
        %v1352 = vpack.c.bf16 %v1302, %v1300
        %v1353 = vpack.c.bf16 %v1303, %v1301
        %v1354 = vpack.c.bf16 %v1306, %v1304
        %v1355 = vpack.c.bf16 %v1307, %v1305
        %v1356 = vpack.c.bf16 %v1310, %v1308
        %v1357 = vpack.c.bf16 %v1311, %v1309
        %v1358 = vpack.c.bf16 %v1314, %v1312
        %v1359 = vpack.c.bf16 %v1315, %v1313
        %v1360 = vpack.c.bf16 %v1318, %v1316
        %v1361 = vpack.c.bf16 %v1319, %v1317
        %v1362 = vpack.c.bf16 %v1322, %v1320
        %v1363 = vpack.c.bf16 %v1323, %v1321
        %v1364 = vpack.c.bf16 %v1326, %v1324
        %v1365 = vpack.c.bf16 %v1327, %v1325
        %v1366 = vpack.c.bf16 %v1330, %v1328
        %v1367 = vpack.c.bf16 %v1331, %v1329
        %v1368 = vpack.c.bf16 %v1334, %v1332
        %v1369 = vpack.c.bf16 %v1335, %v1333
        %v1370 = vpack.c.bf16 %v1338, %v1336
        %v1371 = vpack.c.bf16 %v1339, %v1337
        %v1372 = vld [vmem:[#allocation5 + $0x3a0] sm:$0xff]
        %v1373 = vld [vmem:[#allocation5 + $0x3b0] sm:$0xff]
        %v1374 = vld [vmem:[#allocation5 + $0x3c0] sm:$0xff]
        %v1375 = vld [vmem:[#allocation5 + $0x3d0] sm:$0xff]
        %v1376 = vld [vmem:[#allocation5 + $0x3e0] sm:$0xff]
        %v1377 = vld [vmem:[#allocation5 + $0x3f0] sm:$0xff]
        %v1378 = vld [vmem:[#allocation5 + $0x400] sm:$0xff]
        %v1379 = vld [vmem:[#allocation5 + $0x410] sm:$0xff]
        %v1380 = vld [vmem:[#allocation5 + $0x420] sm:$0xff]
        %v1381 = vld [vmem:[#allocation5 + $0x430] sm:$0xff]
        %v1382 = vld [vmem:[#allocation5 + $0x440] sm:$0xff]
        %v1383 = vld [vmem:[#allocation5 + $0x450] sm:$0xff]
        %v1384 = vld [vmem:[#allocation5 + $0x460] sm:$0xff]
        %v1385 = vld [vmem:[#allocation5 + $0x470] sm:$0xff]
        %v1386 = vld [vmem:[#allocation5 + $0x480] sm:$0xff]
        %v1387 = vld [vmem:[#allocation5 + $0x490] sm:$0xff]
        %v1388 = vld [vmem:[#allocation5 + $0x4a0] sm:$0xff]
        %v1389 = vld [vmem:[#allocation5 + $0x4b0] sm:$0xff]
        %v1390 = vld [vmem:[#allocation5 + $0x4c0] sm:$0xff]
        %v1391 = vld [vmem:[#allocation5 + $0x4d0] sm:$0xff]
        %v1392 = vld [vmem:[#allocation5 + $0x4e0] sm:$0xff]
        %v1393 = vld [vmem:[#allocation5 + $0x4f0] sm:$0xff]
        %v1394 = vld [vmem:[#allocation5 + $0x500] sm:$0xff]
        %v1395 = vld [vmem:[#allocation5 + $0x510] sm:$0xff]
        %v1396 = vld [vmem:[#allocation5 + $0x520] sm:$0xff]
        %v1397 = vld [vmem:[#allocation5 + $0x530] sm:$0xff]
        %v1398 = vld [vmem:[#allocation5 + $0x540] sm:$0xff]
        %v1399 = vld [vmem:[#allocation5 + $0x550] sm:$0xff]
        %v1400 = vld [vmem:[#allocation5 + $0x560] sm:$0xff]
        %v1401 = vld [vmem:[#allocation5 + $0x570] sm:$0xff]
        %v1402 = vld [vmem:[#allocation5 + $0x580] sm:$0xff]
        %v1403 = vld [vmem:[#allocation5 + $0x590] sm:$0xff]
        %v1404 = vld [vmem:[#allocation5 + $0x5a0] sm:$0xff]
        %v1405 = vld [vmem:[#allocation5 + $0x5b0] sm:$0xff]
        %v1406 = vld [vmem:[#allocation5 + $0x5c0] sm:$0xff]
        %v1407 = vld [vmem:[#allocation5 + $0x5d0] sm:$0xff]
        %v1408 = vld [vmem:[#allocation5 + $0x5e0] sm:$0xff]
        %v1409 = vld [vmem:[#allocation5 + $0x5f0] sm:$0xff]
        %v1410 = vld [vmem:[#allocation5 + $0x600] sm:$0xff]
        %v1411 = vld [vmem:[#allocation5 + $0x610] sm:$0xff]
        %v1412 = vld [vmem:[#allocation5 + $0x620] sm:$0xff]
        %v1413 = vld [vmem:[#allocation5 + $0x630] sm:$0xff]
        %v1414 = vld [vmem:[#allocation5 + $0x640] sm:$0xff]
        %v1415 = vld [vmem:[#allocation5 + $0x650] sm:$0xff]
        %v1416 = vld [vmem:[#allocation5 + $0x660] sm:$0xff]
        %v1417 = vld [vmem:[#allocation5 + $0x670] sm:$0xff]
        %v1418 = vld [vmem:[#allocation5 + $0x680] sm:$0xff]
        %v1419 = vld [vmem:[#allocation5 + $0x690] sm:$0xff]
        %v1420 = vld [vmem:[#allocation5 + $0x6a0] sm:$0xff]
        %v1421 = vld [vmem:[#allocation5 + $0x6b0] sm:$0xff]
        %v1422 = vld [vmem:[#allocation5 + $0x6c0] sm:$0xff]
        %v1423 = vld [vmem:[#allocation5 + $0x6d0] sm:$0xff]
        %v1424 = vld [vmem:[#allocation5 + $0x6e0] sm:$0xff]
        %v1425 = vld [vmem:[#allocation5 + $0x6f0] sm:$0xff]
        %v1426 = vld [vmem:[#allocation5 + $0x700] sm:$0xff]
        %v1427 = vld [vmem:[#allocation5 + $0x710] sm:$0xff]
        %v1428 = vld [vmem:[#allocation5 + $0x720] sm:$0xff]
        %v1429 = vld [vmem:[#allocation5 + $0x730] sm:$0xff]
        %v1430 = vld [vmem:[#allocation5 + $0x740] sm:$0xff]
        %v1431 = vld [vmem:[#allocation5 + $0x750] sm:$0xff]
        %v1432 = vld [vmem:[#allocation5 + $0x760] sm:$0xff]
        %v1433 = vld [vmem:[#allocation5 + $0x770] sm:$0xff]
        %v1434 = vld [vmem:[#allocation5 + $0x780] sm:$0xff]
        %v1435 = vld [vmem:[#allocation5 + $0x790] sm:$0xff]
        %v1436 = vld [vmem:[%s2 + $0x1d0] sm:$0xff]
        %v1437 = vld [vmem:[%s2 + $0x1d8] sm:$0xff]
        %v1438 = vld [vmem:[%s2 + $0x1e0] sm:$0xff]
        %v1439 = vld [vmem:[%s2 + $0x1e8] sm:$0xff]
        %v1440 = vld [vmem:[%s2 + $0x1f0] sm:$0xff]
        %v1441 = vld [vmem:[%s2 + $0x1f8] sm:$0xff]
        %v1442 = vld [vmem:[%s2 + $0x200] sm:$0xff]
        %v1443 = vld [vmem:[%s2 + $0x208] sm:$0xff]
        %v1444 = vld [vmem:[%s2 + $0x210] sm:$0xff]
        %v1445 = vld [vmem:[%s2 + $0x218] sm:$0xff]
        %v1446 = vld [vmem:[%s2 + $0x220] sm:$0xff]
        %v1447 = vld [vmem:[%s2 + $0x228] sm:$0xff]
        %v1448 = vld [vmem:[%s2 + $0x230] sm:$0xff]
        %v1449 = vld [vmem:[%s2 + $0x238] sm:$0xff]
        %v1450 = vld [vmem:[%s2 + $0x240] sm:$0xff]
        %v1451 = vld [vmem:[%s2 + $0x248] sm:$0xff]
        %v1452 = vld [vmem:[%s2 + $0x250] sm:$0xff]
        %v1453 = vld [vmem:[%s2 + $0x258] sm:$0xff]
        %v1454 = vld [vmem:[%s2 + $0x260] sm:$0xff]
        %v1455 = vld [vmem:[%s2 + $0x268] sm:$0xff]
        %v1456 = vld [vmem:[%s2 + $0x270] sm:$0xff]
        %v1457 = vld [vmem:[%s2 + $0x278] sm:$0xff]
        %v1458 = vld [vmem:[%s2 + $0x280] sm:$0xff]
        %v1459 = vld [vmem:[%s2 + $0x288] sm:$0xff]
        %v1460 = vld [vmem:[%s2 + $0x290] sm:$0xff]
        %v1461 = vld [vmem:[%s2 + $0x298] sm:$0xff]
        %v1462 = vld [vmem:[%s2 + $0x2a0] sm:$0xff]
        %v1463 = vld [vmem:[%s2 + $0x2a8] sm:$0xff]
        %v1464 = vld [vmem:[%s2 + $0x2b0] sm:$0xff]
        %v1465 = vld [vmem:[%s2 + $0x2b8] sm:$0xff]
        %v1466 = vld [vmem:[%s2 + $0x2c0] sm:$0xff]
        %v1467 = vld [vmem:[%s2 + $0x2c8] sm:$0xff]
        %v1468 = vld [vmem:[%s2 + $0x2d0] sm:$0xff]
        %v1469 = vld [vmem:[%s2 + $0x2d8] sm:$0xff]
        %v1470 = vld [vmem:[%s2 + $0x2e0] sm:$0xff]
        %v1471 = vld [vmem:[%s2 + $0x2e8] sm:$0xff]
        %v1472 = vld [vmem:[%s2 + $0x2f0] sm:$0xff]
        %v1473 = vld [vmem:[%s2 + $0x2f8] sm:$0xff]
        %v1474 = vld [vmem:[%s2 + $0x300] sm:$0xff]
        %v1475 = vld [vmem:[%s2 + $0x308] sm:$0xff]
        %v1476 = vld [vmem:[%s2 + $0x310] sm:$0xff]
        %v1477 = vld [vmem:[%s2 + $0x318] sm:$0xff]
        %v1478 = vld [vmem:[%s2 + $0x320] sm:$0xff]
        %v1479 = vld [vmem:[%s2 + $0x328] sm:$0xff]
        %v1480 = vld [vmem:[%s2 + $0x330] sm:$0xff]
        %v1481 = vld [vmem:[%s2 + $0x338] sm:$0xff]
        %v1482 = vld [vmem:[%s2 + $0x340] sm:$0xff]
        %v1483 = vld [vmem:[%s2 + $0x348] sm:$0xff]
        %v1484 = vld [vmem:[%s2 + $0x350] sm:$0xff]
        %v1485 = vld [vmem:[%s2 + $0x358] sm:$0xff]
        %v1486 = vld [vmem:[%s2 + $0x360] sm:$0xff]
        %v1487 = vld [vmem:[%s2 + $0x368] sm:$0xff]
        %v1488 = vld [vmem:[%s2 + $0x370] sm:$0xff]
        %v1489 = vld [vmem:[%s2 + $0x378] sm:$0xff]
        %v1490 = vld [vmem:[%s2 + $0x380] sm:$0xff]
        %v1491 = vld [vmem:[%s2 + $0x388] sm:$0xff]
        %v1492 = vld [vmem:[%s2 + $0x390] sm:$0xff]
        %v1493 = vld [vmem:[%s2 + $0x398] sm:$0xff]
        %v1494 = vld [vmem:[%s2 + $0x3a0] sm:$0xff]
        %v1495 = vld [vmem:[%s2 + $0x3a8] sm:$0xff]
        %v1496 = vld [vmem:[%s2 + $0x3b0] sm:$0xff]
        %v1497 = vld [vmem:[%s2 + $0x3b8] sm:$0xff]
        %v1498 = vld [vmem:[%s2 + $0x3c0] sm:$0xff]
        %v1499 = vld [vmem:[%s2 + $0x3c8] sm:$0xff]
        %1501 = vset.pattern.permute.xlu0 0
        %1502 = vperm.xlu0 %1501, %v1436
        %v1503 = vpop.permute.xlu0 %1502
        %1506 = vset.pattern.permute.xlu0 0
        %1507 = vperm.xlu0 %1506, %v1437
        %v1508 = vpop.permute.xlu0 %1507
        %1511 = vset.pattern.permute.xlu0 0
        %1512 = vperm.xlu0 %1511, %v1438
        %v1513 = vpop.permute.xlu0 %1512
        %1516 = vset.pattern.permute.xlu0 0
        %1517 = vperm.xlu0 %1516, %v1439
        %v1518 = vpop.permute.xlu0 %1517
        %1521 = vset.pattern.permute.xlu0 0
        %1522 = vperm.xlu0 %1521, %v1440
        %v1523 = vpop.permute.xlu0 %1522
        %1526 = vset.pattern.permute.xlu0 0
        %1527 = vperm.xlu0 %1526, %v1441
        %v1528 = vpop.permute.xlu0 %1527
        %1531 = vset.pattern.permute.xlu0 0
        %1532 = vperm.xlu0 %1531, %v1442
        %v1533 = vpop.permute.xlu0 %1532
        %1536 = vset.pattern.permute.xlu0 0
        %1537 = vperm.xlu0 %1536, %v1443
        %v1538 = vpop.permute.xlu0 %1537
        %1541 = vset.pattern.permute.xlu0 0
        %1542 = vperm.xlu0 %1541, %v1444
        %v1543 = vpop.permute.xlu0 %1542
        %1546 = vset.pattern.permute.xlu0 0
        %1547 = vperm.xlu0 %1546, %v1445
        %v1548 = vpop.permute.xlu0 %1547
        %1551 = vset.pattern.permute.xlu0 0
        %1552 = vperm.xlu0 %1551, %v1446
        %v1553 = vpop.permute.xlu0 %1552
        %1556 = vset.pattern.permute.xlu0 0
        %1557 = vperm.xlu0 %1556, %v1447
        %v1558 = vpop.permute.xlu0 %1557
        %1561 = vset.pattern.permute.xlu0 0
        %1562 = vperm.xlu0 %1561, %v1448
        %v1563 = vpop.permute.xlu0 %1562
        %1566 = vset.pattern.permute.xlu0 0
        %1567 = vperm.xlu0 %1566, %v1449
        %v1568 = vpop.permute.xlu0 %1567
        %1571 = vset.pattern.permute.xlu0 0
        %1572 = vperm.xlu0 %1571, %v1450
        %v1573 = vpop.permute.xlu0 %1572
        %1576 = vset.pattern.permute.xlu0 0
        %1577 = vperm.xlu0 %1576, %v1451
        %v1578 = vpop.permute.xlu0 %1577
        %1581 = vset.pattern.permute.xlu0 0
        %1582 = vperm.xlu0 %1581, %v1452
        %v1583 = vpop.permute.xlu0 %1582
        %1586 = vset.pattern.permute.xlu0 0
        %1587 = vperm.xlu0 %1586, %v1453
        %v1588 = vpop.permute.xlu0 %1587
        %1591 = vset.pattern.permute.xlu0 0
        %1592 = vperm.xlu0 %1591, %v1454
        %v1593 = vpop.permute.xlu0 %1592
        %1596 = vset.pattern.permute.xlu0 0
        %1597 = vperm.xlu0 %1596, %v1455
        %v1598 = vpop.permute.xlu0 %1597
        %1601 = vset.pattern.permute.xlu0 0
        %1602 = vperm.xlu0 %1601, %v1456
        %v1603 = vpop.permute.xlu0 %1602
        %1606 = vset.pattern.permute.xlu0 0
        %1607 = vperm.xlu0 %1606, %v1457
        %v1608 = vpop.permute.xlu0 %1607
        %1611 = vset.pattern.permute.xlu0 0
        %1612 = vperm.xlu0 %1611, %v1458
        %v1613 = vpop.permute.xlu0 %1612
        %1616 = vset.pattern.permute.xlu0 0
        %1617 = vperm.xlu0 %1616, %v1459
        %v1618 = vpop.permute.xlu0 %1617
        %1621 = vset.pattern.permute.xlu0 0
        %1622 = vperm.xlu0 %1621, %v1460
        %v1623 = vpop.permute.xlu0 %1622
        %1626 = vset.pattern.permute.xlu0 0
        %1627 = vperm.xlu0 %1626, %v1461
        %v1628 = vpop.permute.xlu0 %1627
        %1631 = vset.pattern.permute.xlu0 0
        %1632 = vperm.xlu0 %1631, %v1462
        %v1633 = vpop.permute.xlu0 %1632
        %1636 = vset.pattern.permute.xlu0 0
        %1637 = vperm.xlu0 %1636, %v1463
        %v1638 = vpop.permute.xlu0 %1637
        %1641 = vset.pattern.permute.xlu0 0
        %1642 = vperm.xlu0 %1641, %v1464
        %v1643 = vpop.permute.xlu0 %1642
        %1646 = vset.pattern.permute.xlu0 0
        %1647 = vperm.xlu0 %1646, %v1465
        %v1648 = vpop.permute.xlu0 %1647
        %1651 = vset.pattern.permute.xlu0 0
        %1652 = vperm.xlu0 %1651, %v1466
        %v1653 = vpop.permute.xlu0 %1652
        %1656 = vset.pattern.permute.xlu0 0
        %1657 = vperm.xlu0 %1656, %v1467
        %v1658 = vpop.permute.xlu0 %1657
        %1661 = vset.pattern.permute.xlu0 0
        %1662 = vperm.xlu0 %1661, %v1468
        %v1663 = vpop.permute.xlu0 %1662
        %1666 = vset.pattern.permute.xlu0 0
        %1667 = vperm.xlu0 %1666, %v1469
        %v1668 = vpop.permute.xlu0 %1667
        %1671 = vset.pattern.permute.xlu0 0
        %1672 = vperm.xlu0 %1671, %v1470
        %v1673 = vpop.permute.xlu0 %1672
        %1676 = vset.pattern.permute.xlu0 0
        %1677 = vperm.xlu0 %1676, %v1471
        %v1678 = vpop.permute.xlu0 %1677
        %1681 = vset.pattern.permute.xlu0 0
        %1682 = vperm.xlu0 %1681, %v1472
        %v1683 = vpop.permute.xlu0 %1682
        %1686 = vset.pattern.permute.xlu0 0
        %1687 = vperm.xlu0 %1686, %v1473
        %v1688 = vpop.permute.xlu0 %1687
        %1691 = vset.pattern.permute.xlu0 0
        %1692 = vperm.xlu0 %1691, %v1474
        %v1693 = vpop.permute.xlu0 %1692
        %1696 = vset.pattern.permute.xlu0 0
        %1697 = vperm.xlu0 %1696, %v1475
        %v1698 = vpop.permute.xlu0 %1697
        %1701 = vset.pattern.permute.xlu0 0
        %1702 = vperm.xlu0 %1701, %v1476
        %v1703 = vpop.permute.xlu0 %1702
        %1706 = vset.pattern.permute.xlu0 0
        %1707 = vperm.xlu0 %1706, %v1477
        %v1708 = vpop.permute.xlu0 %1707
        %1711 = vset.pattern.permute.xlu0 0
        %1712 = vperm.xlu0 %1711, %v1478
        %v1713 = vpop.permute.xlu0 %1712
        %1716 = vset.pattern.permute.xlu0 0
        %1717 = vperm.xlu0 %1716, %v1479
        %v1718 = vpop.permute.xlu0 %1717
        %1721 = vset.pattern.permute.xlu0 0
        %1722 = vperm.xlu0 %1721, %v1480
        %v1723 = vpop.permute.xlu0 %1722
        %1726 = vset.pattern.permute.xlu0 0
        %1727 = vperm.xlu0 %1726, %v1481
        %v1728 = vpop.permute.xlu0 %1727
        %1731 = vset.pattern.permute.xlu0 0
        %1732 = vperm.xlu0 %1731, %v1482
        %v1733 = vpop.permute.xlu0 %1732
        %1736 = vset.pattern.permute.xlu0 0
        %1737 = vperm.xlu0 %1736, %v1483
        %v1738 = vpop.permute.xlu0 %1737
        %1741 = vset.pattern.permute.xlu0 0
        %1742 = vperm.xlu0 %1741, %v1484
        %v1743 = vpop.permute.xlu0 %1742
        %1746 = vset.pattern.permute.xlu0 0
        %1747 = vperm.xlu0 %1746, %v1485
        %v1748 = vpop.permute.xlu0 %1747
        %1751 = vset.pattern.permute.xlu0 0
        %1752 = vperm.xlu0 %1751, %v1486
        %v1753 = vpop.permute.xlu0 %1752
        %1756 = vset.pattern.permute.xlu0 0
        %1757 = vperm.xlu0 %1756, %v1487
        %v1758 = vpop.permute.xlu0 %1757
        %1761 = vset.pattern.permute.xlu0 0
        %1762 = vperm.xlu0 %1761, %v1488
        %v1763 = vpop.permute.xlu0 %1762
        %1766 = vset.pattern.permute.xlu0 0
        %1767 = vperm.xlu0 %1766, %v1489
        %v1768 = vpop.permute.xlu0 %1767
        %1771 = vset.pattern.permute.xlu0 0
        %1772 = vperm.xlu0 %1771, %v1490
        %v1773 = vpop.permute.xlu0 %1772
        %1776 = vset.pattern.permute.xlu0 0
        %1777 = vperm.xlu0 %1776, %v1491
        %v1778 = vpop.permute.xlu0 %1777
        %1781 = vset.pattern.permute.xlu0 0
        %1782 = vperm.xlu0 %1781, %v1492
        %v1783 = vpop.permute.xlu0 %1782
        %1786 = vset.pattern.permute.xlu0 0
        %1787 = vperm.xlu0 %1786, %v1493
        %v1788 = vpop.permute.xlu0 %1787
        %1791 = vset.pattern.permute.xlu0 0
        %1792 = vperm.xlu0 %1791, %v1494
        %v1793 = vpop.permute.xlu0 %1792
        %1796 = vset.pattern.permute.xlu0 0
        %1797 = vperm.xlu0 %1796, %v1495
        %v1798 = vpop.permute.xlu0 %1797
        %1801 = vset.pattern.permute.xlu0 0
        %1802 = vperm.xlu0 %1801, %v1496
        %v1803 = vpop.permute.xlu0 %1802
        %1806 = vset.pattern.permute.xlu0 0
        %1807 = vperm.xlu0 %1806, %v1497
        %v1808 = vpop.permute.xlu0 %1807
        %1811 = vset.pattern.permute.xlu0 0
        %1812 = vperm.xlu0 %1811, %v1498
        %v1813 = vpop.permute.xlu0 %1812
        %1816 = vset.pattern.permute.xlu0 0
        %1817 = vperm.xlu0 %1816, %v1499
        %v1818 = vpop.permute.xlu0 %1817
        %v1884 = vunpack.c.l.b16 %v1372
        %v1885 = vunpack.c.h.b16 %v1372
        %v1886 = vunpack.c.l.b16 %v1373
        %v1887 = vunpack.c.h.b16 %v1373
        %v1888 = vunpack.c.l.b16 %v1374
        %v1889 = vunpack.c.h.b16 %v1374
        %v1890 = vunpack.c.l.b16 %v1375
        %v1891 = vunpack.c.h.b16 %v1375
        %v1892 = vunpack.c.l.b16 %v1376
        %v1893 = vunpack.c.h.b16 %v1376
        %v1894 = vunpack.c.l.b16 %v1377
        %v1895 = vunpack.c.h.b16 %v1377
        %v1896 = vunpack.c.l.b16 %v1378
        %v1897 = vunpack.c.h.b16 %v1378
        %v1898 = vunpack.c.l.b16 %v1379
        %v1899 = vunpack.c.h.b16 %v1379
        %v1900 = vunpack.c.l.b16 %v1380
        %v1901 = vunpack.c.h.b16 %v1380
        %v1902 = vunpack.c.l.b16 %v1381
        %v1903 = vunpack.c.h.b16 %v1381
        %v1904 = vunpack.c.l.b16 %v1382
        %v1905 = vunpack.c.h.b16 %v1382
        %v1906 = vunpack.c.l.b16 %v1383
        %v1907 = vunpack.c.h.b16 %v1383
        %v1908 = vunpack.c.l.b16 %v1384
        %v1909 = vunpack.c.h.b16 %v1384
        %v1910 = vunpack.c.l.b16 %v1385
        %v1911 = vunpack.c.h.b16 %v1385
        %v1912 = vunpack.c.l.b16 %v1386
        %v1913 = vunpack.c.h.b16 %v1386
        %v1914 = vunpack.c.l.b16 %v1387
        %v1915 = vunpack.c.h.b16 %v1387
        %v1916 = vunpack.c.l.b16 %v1388
        %v1917 = vunpack.c.h.b16 %v1388
        %v1918 = vunpack.c.l.b16 %v1389
        %v1919 = vunpack.c.h.b16 %v1389
        %v1920 = vunpack.c.l.b16 %v1390
        %v1921 = vunpack.c.h.b16 %v1390
        %v1922 = vunpack.c.l.b16 %v1391
        %v1923 = vunpack.c.h.b16 %v1391
        %v1924 = vunpack.c.l.b16 %v1392
        %v1925 = vunpack.c.h.b16 %v1392
        %v1926 = vunpack.c.l.b16 %v1393
        %v1927 = vunpack.c.h.b16 %v1393
        %v1928 = vunpack.c.l.b16 %v1394
        %v1929 = vunpack.c.h.b16 %v1394
        %v1930 = vunpack.c.l.b16 %v1395
        %v1931 = vunpack.c.h.b16 %v1395
        %v1932 = vunpack.c.l.b16 %v1396
        %v1933 = vunpack.c.h.b16 %v1396
        %v1934 = vunpack.c.l.b16 %v1397
        %v1935 = vunpack.c.h.b16 %v1397
        %v1936 = vunpack.c.l.b16 %v1398
        %v1937 = vunpack.c.h.b16 %v1398
        %v1938 = vunpack.c.l.b16 %v1399
        %v1939 = vunpack.c.h.b16 %v1399
        %v1940 = vunpack.c.l.b16 %v1400
        %v1941 = vunpack.c.h.b16 %v1400
        %v1942 = vunpack.c.l.b16 %v1401
        %v1943 = vunpack.c.h.b16 %v1401
        %v1944 = vunpack.c.l.b16 %v1402
        %v1945 = vunpack.c.h.b16 %v1402
        %v1946 = vunpack.c.l.b16 %v1403
        %v1947 = vunpack.c.h.b16 %v1403
        %v1948 = vunpack.c.l.b16 %v1404
        %v1949 = vunpack.c.h.b16 %v1404
        %v1950 = vunpack.c.l.b16 %v1405
        %v1951 = vunpack.c.h.b16 %v1405
        %v1952 = vunpack.c.l.b16 %v1406
        %v1953 = vunpack.c.h.b16 %v1406
        %v1954 = vunpack.c.l.b16 %v1407
        %v1955 = vunpack.c.h.b16 %v1407
        %v1956 = vunpack.c.l.b16 %v1408
        %v1957 = vunpack.c.h.b16 %v1408
        %v1958 = vunpack.c.l.b16 %v1409
        %v1959 = vunpack.c.h.b16 %v1409
        %v1960 = vunpack.c.l.b16 %v1410
        %v1961 = vunpack.c.h.b16 %v1410
        %v1962 = vunpack.c.l.b16 %v1411
        %v1963 = vunpack.c.h.b16 %v1411
        %v1964 = vunpack.c.l.b16 %v1412
        %v1965 = vunpack.c.h.b16 %v1412
        %v1966 = vunpack.c.l.b16 %v1413
        %v1967 = vunpack.c.h.b16 %v1413
        %v1968 = vunpack.c.l.b16 %v1414
        %v1969 = vunpack.c.h.b16 %v1414
        %v1970 = vunpack.c.l.b16 %v1415
        %v1971 = vunpack.c.h.b16 %v1415
        %v1972 = vunpack.c.l.b16 %v1416
        %v1973 = vunpack.c.h.b16 %v1416
        %v1974 = vunpack.c.l.b16 %v1417
        %v1975 = vunpack.c.h.b16 %v1417
        %v1976 = vunpack.c.l.b16 %v1418
        %v1977 = vunpack.c.h.b16 %v1418
        %v1978 = vunpack.c.l.b16 %v1419
        %v1979 = vunpack.c.h.b16 %v1419
        %v1980 = vunpack.c.l.b16 %v1420
        %v1981 = vunpack.c.h.b16 %v1420
        %v1982 = vunpack.c.l.b16 %v1421
        %v1983 = vunpack.c.h.b16 %v1421
        %v1984 = vunpack.c.l.b16 %v1422
        %v1985 = vunpack.c.h.b16 %v1422
        %v1986 = vunpack.c.l.b16 %v1423
        %v1987 = vunpack.c.h.b16 %v1423
        %v1988 = vunpack.c.l.b16 %v1424
        %v1989 = vunpack.c.h.b16 %v1424
        %v1990 = vunpack.c.l.b16 %v1425
        %v1991 = vunpack.c.h.b16 %v1425
        %v1992 = vunpack.c.l.b16 %v1426
        %v1993 = vunpack.c.h.b16 %v1426
        %v1994 = vunpack.c.l.b16 %v1427
        %v1995 = vunpack.c.h.b16 %v1427
        %v1996 = vunpack.c.l.b16 %v1428
        %v1997 = vunpack.c.h.b16 %v1428
        %v1998 = vunpack.c.l.b16 %v1429
        %v1999 = vunpack.c.h.b16 %v1429
        %v2000 = vunpack.c.l.b16 %v1430
        %v2001 = vunpack.c.h.b16 %v1430
        %v2002 = vunpack.c.l.b16 %v1431
        %v2003 = vunpack.c.h.b16 %v1431
        %v2004 = vunpack.c.l.b16 %v1432
        %v2005 = vunpack.c.h.b16 %v1432
        %v2006 = vunpack.c.l.b16 %v1433
        %v2007 = vunpack.c.h.b16 %v1433
        %v2008 = vunpack.c.l.b16 %v1434
        %v2009 = vunpack.c.h.b16 %v1434
        %v2010 = vunpack.c.l.b16 %v1435
        %v2011 = vunpack.c.h.b16 %v1435
        %v2012 = vpack.c.b16 %v1886, %v1884
        %v2013 = vpack.c.b16 %v1887, %v1885
        %v2014 = vpack.c.b16 %v1890, %v1888
        %v2015 = vpack.c.b16 %v1891, %v1889
        %v2016 = vpack.c.b16 %v1894, %v1892
        %v2017 = vpack.c.b16 %v1895, %v1893
        %v2018 = vpack.c.b16 %v1898, %v1896
        %v2019 = vpack.c.b16 %v1899, %v1897
        %v2020 = vpack.c.b16 %v1902, %v1900
        %v2021 = vpack.c.b16 %v1903, %v1901
        %v2022 = vpack.c.b16 %v1906, %v1904
        %v2023 = vpack.c.b16 %v1907, %v1905
        %v2024 = vpack.c.b16 %v1910, %v1908
        %v2025 = vpack.c.b16 %v1911, %v1909
        %v2026 = vpack.c.b16 %v1914, %v1912
        %v2027 = vpack.c.b16 %v1915, %v1913
        %v2028 = vpack.c.b16 %v1918, %v1916
        %v2029 = vpack.c.b16 %v1919, %v1917
        %v2030 = vpack.c.b16 %v1922, %v1920
        %v2031 = vpack.c.b16 %v1923, %v1921
        %v2032 = vpack.c.b16 %v1926, %v1924
        %v2033 = vpack.c.b16 %v1927, %v1925
        %v2034 = vpack.c.b16 %v1930, %v1928
        %v2035 = vpack.c.b16 %v1931, %v1929
        %v2036 = vpack.c.b16 %v1934, %v1932
        %v2037 = vpack.c.b16 %v1935, %v1933
        %v2038 = vpack.c.b16 %v1938, %v1936
        %v2039 = vpack.c.b16 %v1939, %v1937
        %v2040 = vpack.c.b16 %v1942, %v1940
        %v2041 = vpack.c.b16 %v1943, %v1941
        %v2042 = vpack.c.b16 %v1946, %v1944
        %v2043 = vpack.c.b16 %v1947, %v1945
        %v2044 = vpack.c.b16 %v1950, %v1948
        %v2045 = vpack.c.b16 %v1951, %v1949
        %v2046 = vpack.c.b16 %v1954, %v1952
        %v2047 = vpack.c.b16 %v1955, %v1953
        %v2048 = vpack.c.b16 %v1958, %v1956
        %v2049 = vpack.c.b16 %v1959, %v1957
        %v2050 = vpack.c.b16 %v1962, %v1960
        %v2051 = vpack.c.b16 %v1963, %v1961
        %v2052 = vpack.c.b16 %v1966, %v1964
        %v2053 = vpack.c.b16 %v1967, %v1965
        %v2054 = vpack.c.b16 %v1970, %v1968
        %v2055 = vpack.c.b16 %v1971, %v1969
        %v2056 = vpack.c.b16 %v1974, %v1972
        %v2057 = vpack.c.b16 %v1975, %v1973
        %v2058 = vpack.c.b16 %v1978, %v1976
        %v2059 = vpack.c.b16 %v1979, %v1977
        %v2060 = vpack.c.b16 %v1982, %v1980
        %v2061 = vpack.c.b16 %v1983, %v1981
        %v2062 = vpack.c.b16 %v1986, %v1984
        %v2063 = vpack.c.b16 %v1987, %v1985
        %v2064 = vpack.c.b16 %v1990, %v1988
        %v2065 = vpack.c.b16 %v1991, %v1989
        %v2066 = vpack.c.b16 %v1994, %v1992
        %v2067 = vpack.c.b16 %v1995, %v1993
        %v2068 = vpack.c.b16 %v1998, %v1996
        %v2069 = vpack.c.b16 %v1999, %v1997
        %v2070 = vpack.c.b16 %v2002, %v2000
        %v2071 = vpack.c.b16 %v2003, %v2001
        %v2072 = vpack.c.b16 %v2006, %v2004
        %v2073 = vpack.c.b16 %v2007, %v2005
        %v2074 = vpack.c.b16 %v2010, %v2008
        %v2075 = vpack.c.b16 %v2011, %v2009
        %2140 = vmatpush.bf16.msra.mxu0 %v1354
        %2141 = vmatpush.bf16.msra.mxu0 %v1352
        %2142 = vmatpush.bf16.msra.mxu0 %v1350
        %2143 = vmatpush.bf16.msra.mxu0 %v1348
        %2144 = vmatpush.bf16.msra.mxu0 %v1346
        %2145 = vmatpush.bf16.msra.mxu0 %v1344
        %2146 = vmatpush.bf16.msra.mxu0 %v1342
        %2147 = vmatpush.bf16.msra.mxu0 %v1340
        %2148 = vmatmul.bf16.gmra.mxu0 %v2012
        %v2149 = vpop.f32.mrf.mxu0
        %v2150 = vadd.f32 %v1503, %v2149
        %v2151 = vpop.f32.mrf.mxu0
        %v2152 = vadd.f32 %v1508, %v2151
        %2153 = vmatmul.bf16.gmra.mxu0 %v2014
        %v2154 = vpop.f32.mrf.mxu0
        %v2155 = vadd.f32 %v1513, %v2154
        %v2156 = vpop.f32.mrf.mxu0
        %v2157 = vadd.f32 %v1518, %v2156
        %2158 = vmatmul.bf16.gmra.mxu0 %v2016
        %v2159 = vpop.f32.mrf.mxu0
        %v2160 = vadd.f32 %v1523, %v2159
        %v2161 = vpop.f32.mrf.mxu0
        %v2162 = vadd.f32 %v1528, %v2161
        %2163 = vmatmul.bf16.gmra.mxu0 %v2018
        %v2164 = vpop.f32.mrf.mxu0
        %v2165 = vadd.f32 %v1533, %v2164
        %v2166 = vpop.f32.mrf.mxu0
        %v2167 = vadd.f32 %v1538, %v2166
        %2168 = vmatmul.bf16.gmra.mxu0 %v2020
        %v2169 = vpop.f32.mrf.mxu0
        %v2170 = vadd.f32 %v1543, %v2169
        %v2171 = vpop.f32.mrf.mxu0
        %v2172 = vadd.f32 %v1548, %v2171
        %2173 = vmatmul.bf16.gmra.mxu0 %v2022
        %v2174 = vpop.f32.mrf.mxu0
        %v2175 = vadd.f32 %v1553, %v2174
        %v2176 = vpop.f32.mrf.mxu0
        %v2177 = vadd.f32 %v1558, %v2176
        %2178 = vmatmul.bf16.gmra.mxu0 %v2024
        %v2179 = vpop.f32.mrf.mxu0
        %v2180 = vadd.f32 %v1563, %v2179
        %v2181 = vpop.f32.mrf.mxu0
        %v2182 = vadd.f32 %v1568, %v2181
        %2183 = vmatmul.bf16.gmra.mxu0 %v2026
        %v2184 = vpop.f32.mrf.mxu0
        %v2185 = vadd.f32 %v1573, %v2184
        %v2186 = vpop.f32.mrf.mxu0
        %v2187 = vadd.f32 %v1578, %v2186
        %2188 = vmatmul.bf16.gmra.mxu0 %v2028
        %v2189 = vpop.f32.mrf.mxu0
        %v2190 = vadd.f32 %v1583, %v2189
        %v2191 = vpop.f32.mrf.mxu0
        %v2192 = vadd.f32 %v1588, %v2191
        %2193 = vmatmul.bf16.gmra.mxu0 %v2030
        %v2194 = vpop.f32.mrf.mxu0
        %v2195 = vadd.f32 %v1593, %v2194
        %v2196 = vpop.f32.mrf.mxu0
        %v2197 = vadd.f32 %v1598, %v2196
        %2198 = vmatmul.bf16.gmra.mxu0 %v2032
        %v2199 = vpop.f32.mrf.mxu0
        %v2200 = vadd.f32 %v1603, %v2199
        %v2201 = vpop.f32.mrf.mxu0
        %v2202 = vadd.f32 %v1608, %v2201
        %2203 = vmatmul.bf16.gmra.mxu0 %v2034
        %v2204 = vpop.f32.mrf.mxu0
        %v2205 = vadd.f32 %v1613, %v2204
        %v2206 = vpop.f32.mrf.mxu0
        %v2207 = vadd.f32 %v1618, %v2206
        %2208 = vmatmul.bf16.gmra.mxu0 %v2036
        %v2209 = vpop.f32.mrf.mxu0
        %v2210 = vadd.f32 %v1623, %v2209
        %v2211 = vpop.f32.mrf.mxu0
        %v2212 = vadd.f32 %v1628, %v2211
        %2213 = vmatmul.bf16.gmra.mxu0 %v2038
        %v2214 = vpop.f32.mrf.mxu0
        %v2215 = vadd.f32 %v1633, %v2214
        %v2216 = vpop.f32.mrf.mxu0
        %v2217 = vadd.f32 %v1638, %v2216
        %2218 = vmatmul.bf16.gmra.mxu0 %v2040
        %v2219 = vpop.f32.mrf.mxu0
        %v2220 = vadd.f32 %v1643, %v2219
        %v2221 = vpop.f32.mrf.mxu0
        %v2222 = vadd.f32 %v1648, %v2221
        %2223 = vmatmul.bf16.gmra.mxu0 %v2042
        %v2224 = vpop.f32.mrf.mxu0
        %v2225 = vadd.f32 %v1653, %v2224
        %v2226 = vpop.f32.mrf.mxu0
        %v2227 = vadd.f32 %v1658, %v2226
        %2228 = vmatmul.bf16.gmra.mxu0 %v2044
        %v2229 = vpop.f32.mrf.mxu0
        %v2230 = vadd.f32 %v1663, %v2229
        %v2231 = vpop.f32.mrf.mxu0
        %v2232 = vadd.f32 %v1668, %v2231
        %2233 = vmatmul.bf16.gmra.mxu0 %v2046
        %v2234 = vpop.f32.mrf.mxu0
        %v2235 = vadd.f32 %v1673, %v2234
        %v2236 = vpop.f32.mrf.mxu0
        %v2237 = vadd.f32 %v1678, %v2236
        %2238 = vmatmul.bf16.gmra.mxu0 %v2048
        %v2239 = vpop.f32.mrf.mxu0
        %v2240 = vadd.f32 %v1683, %v2239
        %v2241 = vpop.f32.mrf.mxu0
        %v2242 = vadd.f32 %v1688, %v2241
        %2243 = vmatmul.bf16.gmra.mxu0 %v2050
        %v2244 = vpop.f32.mrf.mxu0
        %v2245 = vadd.f32 %v1693, %v2244
        %v2246 = vpop.f32.mrf.mxu0
        %v2247 = vadd.f32 %v1698, %v2246
        %2248 = vmatmul.bf16.gmra.mxu0 %v2052
        %v2249 = vpop.f32.mrf.mxu0
        %v2250 = vadd.f32 %v1703, %v2249
        %v2251 = vpop.f32.mrf.mxu0
        %v2252 = vadd.f32 %v1708, %v2251
        %2253 = vmatmul.bf16.gmra.mxu0 %v2054
        %v2254 = vpop.f32.mrf.mxu0
        %v2255 = vadd.f32 %v1713, %v2254
        %v2256 = vpop.f32.mrf.mxu0
        %v2257 = vadd.f32 %v1718, %v2256
        %2258 = vmatmul.bf16.gmra.mxu0 %v2056
        %v2259 = vpop.f32.mrf.mxu0
        %v2260 = vadd.f32 %v1723, %v2259
        %v2261 = vpop.f32.mrf.mxu0
        %v2262 = vadd.f32 %v1728, %v2261
        %2263 = vmatmul.bf16.gmra.mxu0 %v2058
        %v2264 = vpop.f32.mrf.mxu0
        %v2265 = vadd.f32 %v1733, %v2264
        %v2266 = vpop.f32.mrf.mxu0
        %v2267 = vadd.f32 %v1738, %v2266
        %2268 = vmatmul.bf16.gmra.mxu0 %v2060
        %v2269 = vpop.f32.mrf.mxu0
        %v2270 = vadd.f32 %v1743, %v2269
        %v2271 = vpop.f32.mrf.mxu0
        %v2272 = vadd.f32 %v1748, %v2271
        %2273 = vmatmul.bf16.gmra.mxu0 %v2062
        %v2274 = vpop.f32.mrf.mxu0
        %v2275 = vadd.f32 %v1753, %v2274
        %v2276 = vpop.f32.mrf.mxu0
        %v2277 = vadd.f32 %v1758, %v2276
        %2278 = vmatmul.bf16.gmra.mxu0 %v2064
        %v2279 = vpop.f32.mrf.mxu0
        %v2280 = vadd.f32 %v1763, %v2279
        %v2281 = vpop.f32.mrf.mxu0
        %v2282 = vadd.f32 %v1768, %v2281
        %2283 = vmatmul.bf16.gmra.mxu0 %v2066
        %v2284 = vpop.f32.mrf.mxu0
        %v2285 = vadd.f32 %v1773, %v2284
        %v2286 = vpop.f32.mrf.mxu0
        %v2287 = vadd.f32 %v1778, %v2286
        %2288 = vmatmul.bf16.gmra.mxu0 %v2068
        %v2289 = vpop.f32.mrf.mxu0
        %v2290 = vadd.f32 %v1783, %v2289
        %v2291 = vpop.f32.mrf.mxu0
        %v2292 = vadd.f32 %v1788, %v2291
        %2293 = vmatmul.bf16.gmra.mxu0 %v2070
        %v2294 = vpop.f32.mrf.mxu0
        %v2295 = vadd.f32 %v1793, %v2294
        %v2296 = vpop.f32.mrf.mxu0
        %v2297 = vadd.f32 %v1798, %v2296
        %2298 = vmatmul.bf16.gmra.mxu0 %v2072
        %v2299 = vpop.f32.mrf.mxu0
        %v2300 = vadd.f32 %v1803, %v2299
        %v2301 = vpop.f32.mrf.mxu0
        %v2302 = vadd.f32 %v1808, %v2301
        %2303 = vmatmul.bf16.gmra.mxu0 %v2074
        %v2304 = vpop.f32.mrf.mxu0
        %v2305 = vadd.f32 %v1813, %v2304
        %v2306 = vpop.f32.mrf.mxu0
        %v2307 = vadd.f32 %v1818, %v2306
        %2308 = vdwg.mxu0
        %2309 = vmatpush.bf16.msra.mxu0 %v1370
        %2310 = vmatpush.bf16.msra.mxu0 %v1368
        %2311 = vmatpush.bf16.msra.mxu0 %v1366
        %2312 = vmatpush.bf16.msra.mxu0 %v1364
        %2313 = vmatpush.bf16.msra.mxu0 %v1362
        %2314 = vmatpush.bf16.msra.mxu0 %v1360
        %2315 = vmatpush.bf16.msra.mxu0 %v1358
        %2316 = vmatpush.bf16.msra.mxu0 %v1356
        %2317 = vmatmul.bf16.gmra.mxu0 %v2013
        %v2318 = vpop.f32.mrf.mxu0
        %v2319 = vadd.f32 %v2150, %v2318
        %v2320 = vpop.f32.mrf.mxu0
        %v2321 = vadd.f32 %v2152, %v2320
        %2322 = vmatmul.bf16.gmra.mxu0 %v2015
        %v2323 = vpop.f32.mrf.mxu0
        %v2324 = vadd.f32 %v2155, %v2323
        %v2325 = vpop.f32.mrf.mxu0
        %v2326 = vadd.f32 %v2157, %v2325
        %2327 = vmatmul.bf16.gmra.mxu0 %v2017
        %v2328 = vpop.f32.mrf.mxu0
        %v2329 = vadd.f32 %v2160, %v2328
        %v2330 = vpop.f32.mrf.mxu0
        %v2331 = vadd.f32 %v2162, %v2330
        %2332 = vmatmul.bf16.gmra.mxu0 %v2019
        %v2333 = vpop.f32.mrf.mxu0
        %v2334 = vadd.f32 %v2165, %v2333
        %v2335 = vpop.f32.mrf.mxu0
        %v2336 = vadd.f32 %v2167, %v2335
        %2337 = vmatmul.bf16.gmra.mxu0 %v2021
        %v2338 = vpop.f32.mrf.mxu0
        %v2339 = vadd.f32 %v2170, %v2338
        %v2340 = vpop.f32.mrf.mxu0
        %v2341 = vadd.f32 %v2172, %v2340
        %2342 = vmatmul.bf16.gmra.mxu0 %v2023
        %v2343 = vpop.f32.mrf.mxu0
        %v2344 = vadd.f32 %v2175, %v2343
        %v2345 = vpop.f32.mrf.mxu0
        %v2346 = vadd.f32 %v2177, %v2345
        %2347 = vmatmul.bf16.gmra.mxu0 %v2025
        %v2348 = vpop.f32.mrf.mxu0
        %v2349 = vadd.f32 %v2180, %v2348
        %v2350 = vpop.f32.mrf.mxu0
        %v2351 = vadd.f32 %v2182, %v2350
        %2352 = vmatmul.bf16.gmra.mxu0 %v2027
        %v2353 = vpop.f32.mrf.mxu0
        %v2354 = vadd.f32 %v2185, %v2353
        %v2355 = vpop.f32.mrf.mxu0
        %v2356 = vadd.f32 %v2187, %v2355
        %2357 = vmatmul.bf16.gmra.mxu0 %v2029
        %v2358 = vpop.f32.mrf.mxu0
        %v2359 = vadd.f32 %v2190, %v2358
        %v2360 = vpop.f32.mrf.mxu0
        %v2361 = vadd.f32 %v2192, %v2360
        %2362 = vmatmul.bf16.gmra.mxu0 %v2031
        %v2363 = vpop.f32.mrf.mxu0
        %v2364 = vadd.f32 %v2195, %v2363
        %v2365 = vpop.f32.mrf.mxu0
        %v2366 = vadd.f32 %v2197, %v2365
        %2367 = vmatmul.bf16.gmra.mxu0 %v2033
        %v2368 = vpop.f32.mrf.mxu0
        %v2369 = vadd.f32 %v2200, %v2368
        %v2370 = vpop.f32.mrf.mxu0
        %v2371 = vadd.f32 %v2202, %v2370
        %2372 = vmatmul.bf16.gmra.mxu0 %v2035
        %v2373 = vpop.f32.mrf.mxu0
        %v2374 = vadd.f32 %v2205, %v2373
        %v2375 = vpop.f32.mrf.mxu0
        %v2376 = vadd.f32 %v2207, %v2375
        %2377 = vmatmul.bf16.gmra.mxu0 %v2037
        %v2378 = vpop.f32.mrf.mxu0
        %v2379 = vadd.f32 %v2210, %v2378
        %v2380 = vpop.f32.mrf.mxu0
        %v2381 = vadd.f32 %v2212, %v2380
        %2382 = vmatmul.bf16.gmra.mxu0 %v2039
        %v2383 = vpop.f32.mrf.mxu0
        %v2384 = vadd.f32 %v2215, %v2383
        %v2385 = vpop.f32.mrf.mxu0
        %v2386 = vadd.f32 %v2217, %v2385
        %2387 = vmatmul.bf16.gmra.mxu0 %v2041
        %v2388 = vpop.f32.mrf.mxu0
        %v2389 = vadd.f32 %v2220, %v2388
        %v2390 = vpop.f32.mrf.mxu0
        %v2391 = vadd.f32 %v2222, %v2390
        %2392 = vmatmul.bf16.gmra.mxu0 %v2043
        %v2393 = vpop.f32.mrf.mxu0
        %v2394 = vadd.f32 %v2225, %v2393
        %v2395 = vpop.f32.mrf.mxu0
        %v2396 = vadd.f32 %v2227, %v2395
        %2397 = vmatmul.bf16.gmra.mxu0 %v2045
        %v2398 = vpop.f32.mrf.mxu0
        %v2399 = vadd.f32 %v2230, %v2398
        %v2400 = vpop.f32.mrf.mxu0
        %v2401 = vadd.f32 %v2232, %v2400
        %2402 = vmatmul.bf16.gmra.mxu0 %v2047
        %v2403 = vpop.f32.mrf.mxu0
        %v2404 = vadd.f32 %v2235, %v2403
        %v2405 = vpop.f32.mrf.mxu0
        %v2406 = vadd.f32 %v2237, %v2405
        %2407 = vmatmul.bf16.gmra.mxu0 %v2049
        %v2408 = vpop.f32.mrf.mxu0
        %v2409 = vadd.f32 %v2240, %v2408
        %v2410 = vpop.f32.mrf.mxu0
        %v2411 = vadd.f32 %v2242, %v2410
        %2412 = vmatmul.bf16.gmra.mxu0 %v2051
        %v2413 = vpop.f32.mrf.mxu0
        %v2414 = vadd.f32 %v2245, %v2413
        %v2415 = vpop.f32.mrf.mxu0
        %v2416 = vadd.f32 %v2247, %v2415
        %2417 = vmatmul.bf16.gmra.mxu0 %v2053
        %v2418 = vpop.f32.mrf.mxu0
        %v2419 = vadd.f32 %v2250, %v2418
        %v2420 = vpop.f32.mrf.mxu0
        %v2421 = vadd.f32 %v2252, %v2420
        %2422 = vmatmul.bf16.gmra.mxu0 %v2055
        %v2423 = vpop.f32.mrf.mxu0
        %v2424 = vadd.f32 %v2255, %v2423
        %v2425 = vpop.f32.mrf.mxu0
        %v2426 = vadd.f32 %v2257, %v2425
        %2427 = vmatmul.bf16.gmra.mxu0 %v2057
        %v2428 = vpop.f32.mrf.mxu0
        %v2429 = vadd.f32 %v2260, %v2428
        %v2430 = vpop.f32.mrf.mxu0
        %v2431 = vadd.f32 %v2262, %v2430
        %2432 = vmatmul.bf16.gmra.mxu0 %v2059
        %v2433 = vpop.f32.mrf.mxu0
        %v2434 = vadd.f32 %v2265, %v2433
        %v2435 = vpop.f32.mrf.mxu0
        %v2436 = vadd.f32 %v2267, %v2435
        %2437 = vmatmul.bf16.gmra.mxu0 %v2061
        %v2438 = vpop.f32.mrf.mxu0
        %v2439 = vadd.f32 %v2270, %v2438
        %v2440 = vpop.f32.mrf.mxu0
        %v2441 = vadd.f32 %v2272, %v2440
        %2442 = vmatmul.bf16.gmra.mxu0 %v2063
        %v2443 = vpop.f32.mrf.mxu0
        %v2444 = vadd.f32 %v2275, %v2443
        %v2445 = vpop.f32.mrf.mxu0
        %v2446 = vadd.f32 %v2277, %v2445
        %2447 = vmatmul.bf16.gmra.mxu0 %v2065
        %v2448 = vpop.f32.mrf.mxu0
        %v2449 = vadd.f32 %v2280, %v2448
        %v2450 = vpop.f32.mrf.mxu0
        %v2451 = vadd.f32 %v2282, %v2450
        %2452 = vmatmul.bf16.gmra.mxu0 %v2067
        %v2453 = vpop.f32.mrf.mxu0
        %v2454 = vadd.f32 %v2285, %v2453
        %v2455 = vpop.f32.mrf.mxu0
        %v2456 = vadd.f32 %v2287, %v2455
        %2457 = vmatmul.bf16.gmra.mxu0 %v2069
        %v2458 = vpop.f32.mrf.mxu0
        %v2459 = vadd.f32 %v2290, %v2458
        %v2460 = vpop.f32.mrf.mxu0
        %v2461 = vadd.f32 %v2292, %v2460
        %2462 = vmatmul.bf16.gmra.mxu0 %v2071
        %v2463 = vpop.f32.mrf.mxu0
        %v2464 = vadd.f32 %v2295, %v2463
        %v2465 = vpop.f32.mrf.mxu0
        %v2466 = vadd.f32 %v2297, %v2465
        %2467 = vmatmul.bf16.gmra.mxu0 %v2073
        %v2468 = vpop.f32.mrf.mxu0
        %v2469 = vadd.f32 %v2300, %v2468
        %v2470 = vpop.f32.mrf.mxu0
        %v2471 = vadd.f32 %v2302, %v2470
        %2472 = vmatmul.bf16.gmra.mxu0 %v2075
        %v2473 = vpop.f32.mrf.mxu0
        %v2474 = vadd.f32 %v2305, %v2473
        %v2475 = vpop.f32.mrf.mxu0
        %v2476 = vadd.f32 %v2307, %v2475
        %2477 = vdwg.mxu0
        %2478 = vmatpush.bf16.msra.mxu0 %v1355
        %2479 = vmatpush.bf16.msra.mxu0 %v1353
        %2480 = vmatpush.bf16.msra.mxu0 %v1351
        %2481 = vmatpush.bf16.msra.mxu0 %v1349
        %2482 = vmatpush.bf16.msra.mxu0 %v1347
        %2483 = vmatpush.bf16.msra.mxu0 %v1345
        %2484 = vmatpush.bf16.msra.mxu0 %v1343
        %2485 = vmatpush.bf16.msra.mxu0 %v1341
        %2486 = vmatmul.bf16.gmra.mxu0 %v2012
        %v2487 = vpop.f32.mrf.mxu0
        %v2488 = vadd.f32 %v1503, %v2487
        %v2489 = vpop.f32.mrf.mxu0
        %v2490 = vadd.f32 %v1508, %v2489
        %2491 = vmatmul.bf16.gmra.mxu0 %v2014
        %v2492 = vpop.f32.mrf.mxu0
        %v2493 = vadd.f32 %v1513, %v2492
        %v2494 = vpop.f32.mrf.mxu0
        %v2495 = vadd.f32 %v1518, %v2494
        %2496 = vmatmul.bf16.gmra.mxu0 %v2016
        %v2497 = vpop.f32.mrf.mxu0
        %v2498 = vadd.f32 %v1523, %v2497
        %v2499 = vpop.f32.mrf.mxu0
        %v2500 = vadd.f32 %v1528, %v2499
        %2501 = vmatmul.bf16.gmra.mxu0 %v2018
        %v2502 = vpop.f32.mrf.mxu0
        %v2503 = vadd.f32 %v1533, %v2502
        %v2504 = vpop.f32.mrf.mxu0
        %v2505 = vadd.f32 %v1538, %v2504
        %2506 = vmatmul.bf16.gmra.mxu0 %v2020
        %v2507 = vpop.f32.mrf.mxu0
        %v2508 = vadd.f32 %v1543, %v2507
        %v2509 = vpop.f32.mrf.mxu0
        %v2510 = vadd.f32 %v1548, %v2509
        %2511 = vmatmul.bf16.gmra.mxu0 %v2022
        %v2512 = vpop.f32.mrf.mxu0
        %v2513 = vadd.f32 %v1553, %v2512
        %v2514 = vpop.f32.mrf.mxu0
        %v2515 = vadd.f32 %v1558, %v2514
        %2516 = vmatmul.bf16.gmra.mxu0 %v2024
        %v2517 = vpop.f32.mrf.mxu0
        %v2518 = vadd.f32 %v1563, %v2517
        %v2519 = vpop.f32.mrf.mxu0
        %v2520 = vadd.f32 %v1568, %v2519
        %2521 = vmatmul.bf16.gmra.mxu0 %v2026
        %v2522 = vpop.f32.mrf.mxu0
        %v2523 = vadd.f32 %v1573, %v2522
        %v2524 = vpop.f32.mrf.mxu0
        %v2525 = vadd.f32 %v1578, %v2524
        %2526 = vmatmul.bf16.gmra.mxu0 %v2028
        %v2527 = vpop.f32.mrf.mxu0
        %v2528 = vadd.f32 %v1583, %v2527
        %v2529 = vpop.f32.mrf.mxu0
        %v2530 = vadd.f32 %v1588, %v2529
        %2531 = vmatmul.bf16.gmra.mxu0 %v2030
        %v2532 = vpop.f32.mrf.mxu0
        %v2533 = vadd.f32 %v1593, %v2532
        %v2534 = vpop.f32.mrf.mxu0
        %v2535 = vadd.f32 %v1598, %v2534
        %2536 = vmatmul.bf16.gmra.mxu0 %v2032
        %v2537 = vpop.f32.mrf.mxu0
        %v2538 = vadd.f32 %v1603, %v2537
        %v2539 = vpop.f32.mrf.mxu0
        %v2540 = vadd.f32 %v1608, %v2539
        %2541 = vmatmul.bf16.gmra.mxu0 %v2034
        %v2542 = vpop.f32.mrf.mxu0
        %v2543 = vadd.f32 %v1613, %v2542
        %v2544 = vpop.f32.mrf.mxu0
        %v2545 = vadd.f32 %v1618, %v2544
        %2546 = vmatmul.bf16.gmra.mxu0 %v2036
        %v2547 = vpop.f32.mrf.mxu0
        %v2548 = vadd.f32 %v1623, %v2547
        %v2549 = vpop.f32.mrf.mxu0
        %v2550 = vadd.f32 %v1628, %v2549
        %2551 = vmatmul.bf16.gmra.mxu0 %v2038
        %v2552 = vpop.f32.mrf.mxu0
        %v2553 = vadd.f32 %v1633, %v2552
        %v2554 = vpop.f32.mrf.mxu0
        %v2555 = vadd.f32 %v1638, %v2554
        %2556 = vmatmul.bf16.gmra.mxu0 %v2040
        %v2557 = vpop.f32.mrf.mxu0
        %v2558 = vadd.f32 %v1643, %v2557
        %v2559 = vpop.f32.mrf.mxu0
        %v2560 = vadd.f32 %v1648, %v2559
        %2561 = vmatmul.bf16.gmra.mxu0 %v2042
        %v2562 = vpop.f32.mrf.mxu0
        %v2563 = vadd.f32 %v1653, %v2562
        %v2564 = vpop.f32.mrf.mxu0
        %v2565 = vadd.f32 %v1658, %v2564
        %2566 = vmatmul.bf16.gmra.mxu0 %v2044
        %v2567 = vpop.f32.mrf.mxu0
        %v2568 = vadd.f32 %v1663, %v2567
        %v2569 = vpop.f32.mrf.mxu0
        %v2570 = vadd.f32 %v1668, %v2569
        %2571 = vmatmul.bf16.gmra.mxu0 %v2046
        %v2572 = vpop.f32.mrf.mxu0
        %v2573 = vadd.f32 %v1673, %v2572
        %v2574 = vpop.f32.mrf.mxu0
        %v2575 = vadd.f32 %v1678, %v2574
        %2576 = vmatmul.bf16.gmra.mxu0 %v2048
        %v2577 = vpop.f32.mrf.mxu0
        %v2578 = vadd.f32 %v1683, %v2577
        %v2579 = vpop.f32.mrf.mxu0
        %v2580 = vadd.f32 %v1688, %v2579
        %2581 = vmatmul.bf16.gmra.mxu0 %v2050
        %v2582 = vpop.f32.mrf.mxu0
        %v2583 = vadd.f32 %v1693, %v2582
        %v2584 = vpop.f32.mrf.mxu0
        %v2585 = vadd.f32 %v1698, %v2584
        %2586 = vmatmul.bf16.gmra.mxu0 %v2052
        %v2587 = vpop.f32.mrf.mxu0
        %v2588 = vadd.f32 %v1703, %v2587
        %v2589 = vpop.f32.mrf.mxu0
        %v2590 = vadd.f32 %v1708, %v2589
        %2591 = vmatmul.bf16.gmra.mxu0 %v2054
        %v2592 = vpop.f32.mrf.mxu0
        %v2593 = vadd.f32 %v1713, %v2592
        %v2594 = vpop.f32.mrf.mxu0
        %v2595 = vadd.f32 %v1718, %v2594
        %2596 = vmatmul.bf16.gmra.mxu0 %v2056
        %v2597 = vpop.f32.mrf.mxu0
        %v2598 = vadd.f32 %v1723, %v2597
        %v2599 = vpop.f32.mrf.mxu0
        %v2600 = vadd.f32 %v1728, %v2599
        %2601 = vmatmul.bf16.gmra.mxu0 %v2058
        %v2602 = vpop.f32.mrf.mxu0
        %v2603 = vadd.f32 %v1733, %v2602
        %v2604 = vpop.f32.mrf.mxu0
        %v2605 = vadd.f32 %v1738, %v2604
        %2606 = vmatmul.bf16.gmra.mxu0 %v2060
        %v2607 = vpop.f32.mrf.mxu0
        %v2608 = vadd.f32 %v1743, %v2607
        %v2609 = vpop.f32.mrf.mxu0
        %v2610 = vadd.f32 %v1748, %v2609
        %2611 = vmatmul.bf16.gmra.mxu0 %v2062
        %v2612 = vpop.f32.mrf.mxu0
        %v2613 = vadd.f32 %v1753, %v2612
        %v2614 = vpop.f32.mrf.mxu0
        %v2615 = vadd.f32 %v1758, %v2614
        %2616 = vmatmul.bf16.gmra.mxu0 %v2064
        %v2617 = vpop.f32.mrf.mxu0
        %v2618 = vadd.f32 %v1763, %v2617
        %v2619 = vpop.f32.mrf.mxu0
        %v2620 = vadd.f32 %v1768, %v2619
        %2621 = vmatmul.bf16.gmra.mxu0 %v2066
        %v2622 = vpop.f32.mrf.mxu0
        %v2623 = vadd.f32 %v1773, %v2622
        %v2624 = vpop.f32.mrf.mxu0
        %v2625 = vadd.f32 %v1778, %v2624
        %2626 = vmatmul.bf16.gmra.mxu0 %v2068
        %v2627 = vpop.f32.mrf.mxu0
        %v2628 = vadd.f32 %v1783, %v2627
        %v2629 = vpop.f32.mrf.mxu0
        %v2630 = vadd.f32 %v1788, %v2629
        %2631 = vmatmul.bf16.gmra.mxu0 %v2070
        %v2632 = vpop.f32.mrf.mxu0
        %v2633 = vadd.f32 %v1793, %v2632
        %v2634 = vpop.f32.mrf.mxu0
        %v2635 = vadd.f32 %v1798, %v2634
        %2636 = vmatmul.bf16.gmra.mxu0 %v2072
        %v2637 = vpop.f32.mrf.mxu0
        %v2638 = vadd.f32 %v1803, %v2637
        %v2639 = vpop.f32.mrf.mxu0
        %v2640 = vadd.f32 %v1808, %v2639
        %2641 = vmatmul.bf16.gmra.mxu0 %v2074
        %v2642 = vpop.f32.mrf.mxu0
        %v2643 = vadd.f32 %v1813, %v2642
        %v2644 = vpop.f32.mrf.mxu0
        %v2645 = vadd.f32 %v1818, %v2644
        %2646 = vdwg.mxu0
        %2647 = vmatpush.bf16.msra.mxu0 %v1371
        %2648 = vmatpush.bf16.msra.mxu0 %v1369
        %2649 = vmatpush.bf16.msra.mxu0 %v1367
        %2650 = vmatpush.bf16.msra.mxu0 %v1365
        %2651 = vmatpush.bf16.msra.mxu0 %v1363
        %2652 = vmatpush.bf16.msra.mxu0 %v1361
        %2653 = vmatpush.bf16.msra.mxu0 %v1359
        %2654 = vmatpush.bf16.msra.mxu0 %v1357
        %2655 = vmatmul.bf16.gmra.mxu0 %v2013
        %v2656 = vpop.f32.mrf.mxu0
        %v2657 = vadd.f32 %v2488, %v2656
        %v2658 = vpop.f32.mrf.mxu0
        %v2659 = vadd.f32 %v2490, %v2658
        %2660 = vmatmul.bf16.gmra.mxu0 %v2015
        %v2661 = vpop.f32.mrf.mxu0
        %v2662 = vadd.f32 %v2493, %v2661
        %v2663 = vpop.f32.mrf.mxu0
        %v2664 = vadd.f32 %v2495, %v2663
        %2665 = vmatmul.bf16.gmra.mxu0 %v2017
        %v2666 = vpop.f32.mrf.mxu0
        %v2667 = vadd.f32 %v2498, %v2666
        %v2668 = vpop.f32.mrf.mxu0
        %v2669 = vadd.f32 %v2500, %v2668
        %2670 = vmatmul.bf16.gmra.mxu0 %v2019
        %v2671 = vpop.f32.mrf.mxu0
        %v2672 = vadd.f32 %v2503, %v2671
        %v2673 = vpop.f32.mrf.mxu0
        %v2674 = vadd.f32 %v2505, %v2673
        %2675 = vmatmul.bf16.gmra.mxu0 %v2021
        %v2676 = vpop.f32.mrf.mxu0
        %v2677 = vadd.f32 %v2508, %v2676
        %v2678 = vpop.f32.mrf.mxu0
        %v2679 = vadd.f32 %v2510, %v2678
        %2680 = vmatmul.bf16.gmra.mxu0 %v2023
        %v2681 = vpop.f32.mrf.mxu0
        %v2682 = vadd.f32 %v2513, %v2681
        %v2683 = vpop.f32.mrf.mxu0
        %v2684 = vadd.f32 %v2515, %v2683
        %2685 = vmatmul.bf16.gmra.mxu0 %v2025
        %v2686 = vpop.f32.mrf.mxu0
        %v2687 = vadd.f32 %v2518, %v2686
        %v2688 = vpop.f32.mrf.mxu0
        %v2689 = vadd.f32 %v2520, %v2688
        %2690 = vmatmul.bf16.gmra.mxu0 %v2027
        %v2691 = vpop.f32.mrf.mxu0
        %v2692 = vadd.f32 %v2523, %v2691
        %v2693 = vpop.f32.mrf.mxu0
        %v2694 = vadd.f32 %v2525, %v2693
        %2695 = vmatmul.bf16.gmra.mxu0 %v2029
        %v2696 = vpop.f32.mrf.mxu0
        %v2697 = vadd.f32 %v2528, %v2696
        %v2698 = vpop.f32.mrf.mxu0
        %v2699 = vadd.f32 %v2530, %v2698
        %2700 = vmatmul.bf16.gmra.mxu0 %v2031
        %v2701 = vpop.f32.mrf.mxu0
        %v2702 = vadd.f32 %v2533, %v2701
        %v2703 = vpop.f32.mrf.mxu0
        %v2704 = vadd.f32 %v2535, %v2703
        %2705 = vmatmul.bf16.gmra.mxu0 %v2033
        %v2706 = vpop.f32.mrf.mxu0
        %v2707 = vadd.f32 %v2538, %v2706
        %v2708 = vpop.f32.mrf.mxu0
        %v2709 = vadd.f32 %v2540, %v2708
        %2710 = vmatmul.bf16.gmra.mxu0 %v2035
        %v2711 = vpop.f32.mrf.mxu0
        %v2712 = vadd.f32 %v2543, %v2711
        %v2713 = vpop.f32.mrf.mxu0
        %v2714 = vadd.f32 %v2545, %v2713
        %2715 = vmatmul.bf16.gmra.mxu0 %v2037
        %v2716 = vpop.f32.mrf.mxu0
        %v2717 = vadd.f32 %v2548, %v2716
        %v2718 = vpop.f32.mrf.mxu0
        %v2719 = vadd.f32 %v2550, %v2718
        %2720 = vmatmul.bf16.gmra.mxu0 %v2039
        %v2721 = vpop.f32.mrf.mxu0
        %v2722 = vadd.f32 %v2553, %v2721
        %v2723 = vpop.f32.mrf.mxu0
        %v2724 = vadd.f32 %v2555, %v2723
        %2725 = vmatmul.bf16.gmra.mxu0 %v2041
        %v2726 = vpop.f32.mrf.mxu0
        %v2727 = vadd.f32 %v2558, %v2726
        %v2728 = vpop.f32.mrf.mxu0
        %v2729 = vadd.f32 %v2560, %v2728
        %2730 = vmatmul.bf16.gmra.mxu0 %v2043
        %v2731 = vpop.f32.mrf.mxu0
        %v2732 = vadd.f32 %v2563, %v2731
        %v2733 = vpop.f32.mrf.mxu0
        %v2734 = vadd.f32 %v2565, %v2733
        %2735 = vmatmul.bf16.gmra.mxu0 %v2045
        %v2736 = vpop.f32.mrf.mxu0
        %v2737 = vadd.f32 %v2568, %v2736
        %v2738 = vpop.f32.mrf.mxu0
        %v2739 = vadd.f32 %v2570, %v2738
        %2740 = vmatmul.bf16.gmra.mxu0 %v2047
        %v2741 = vpop.f32.mrf.mxu0
        %v2742 = vadd.f32 %v2573, %v2741
        %v2743 = vpop.f32.mrf.mxu0
        %v2744 = vadd.f32 %v2575, %v2743
        %2745 = vmatmul.bf16.gmra.mxu0 %v2049
        %v2746 = vpop.f32.mrf.mxu0
        %v2747 = vadd.f32 %v2578, %v2746
        %v2748 = vpop.f32.mrf.mxu0
        %v2749 = vadd.f32 %v2580, %v2748
        %2750 = vmatmul.bf16.gmra.mxu0 %v2051
        %v2751 = vpop.f32.mrf.mxu0
        %v2752 = vadd.f32 %v2583, %v2751
        %v2753 = vpop.f32.mrf.mxu0
        %v2754 = vadd.f32 %v2585, %v2753
        %2755 = vmatmul.bf16.gmra.mxu0 %v2053
        %v2756 = vpop.f32.mrf.mxu0
        %v2757 = vadd.f32 %v2588, %v2756
        %v2758 = vpop.f32.mrf.mxu0
        %v2759 = vadd.f32 %v2590, %v2758
        %2760 = vmatmul.bf16.gmra.mxu0 %v2055
        %v2761 = vpop.f32.mrf.mxu0
        %v2762 = vadd.f32 %v2593, %v2761
        %v2763 = vpop.f32.mrf.mxu0
        %v2764 = vadd.f32 %v2595, %v2763
        %2765 = vmatmul.bf16.gmra.mxu0 %v2057
        %v2766 = vpop.f32.mrf.mxu0
        %v2767 = vadd.f32 %v2598, %v2766
        %v2768 = vpop.f32.mrf.mxu0
        %v2769 = vadd.f32 %v2600, %v2768
        %2770 = vmatmul.bf16.gmra.mxu0 %v2059
        %v2771 = vpop.f32.mrf.mxu0
        %v2772 = vadd.f32 %v2603, %v2771
        %v2773 = vpop.f32.mrf.mxu0
        %v2774 = vadd.f32 %v2605, %v2773
        %2775 = vmatmul.bf16.gmra.mxu0 %v2061
        %v2776 = vpop.f32.mrf.mxu0
        %v2777 = vadd.f32 %v2608, %v2776
        %v2778 = vpop.f32.mrf.mxu0
        %v2779 = vadd.f32 %v2610, %v2778
        %2780 = vmatmul.bf16.gmra.mxu0 %v2063
        %v2781 = vpop.f32.mrf.mxu0
        %v2782 = vadd.f32 %v2613, %v2781
        %v2783 = vpop.f32.mrf.mxu0
        %v2784 = vadd.f32 %v2615, %v2783
        %2785 = vmatmul.bf16.gmra.mxu0 %v2065
        %v2786 = vpop.f32.mrf.mxu0
        %v2787 = vadd.f32 %v2618, %v2786
        %v2788 = vpop.f32.mrf.mxu0
        %v2789 = vadd.f32 %v2620, %v2788
        %2790 = vmatmul.bf16.gmra.mxu0 %v2067
        %v2791 = vpop.f32.mrf.mxu0
        %v2792 = vadd.f32 %v2623, %v2791
        %v2793 = vpop.f32.mrf.mxu0
        %v2794 = vadd.f32 %v2625, %v2793
        %2795 = vmatmul.bf16.gmra.mxu0 %v2069
        %v2796 = vpop.f32.mrf.mxu0
        %v2797 = vadd.f32 %v2628, %v2796
        %v2798 = vpop.f32.mrf.mxu0
        %v2799 = vadd.f32 %v2630, %v2798
        %2800 = vmatmul.bf16.gmra.mxu0 %v2071
        %v2801 = vpop.f32.mrf.mxu0
        %v2802 = vadd.f32 %v2633, %v2801
        %v2803 = vpop.f32.mrf.mxu0
        %v2804 = vadd.f32 %v2635, %v2803
        %2805 = vmatmul.bf16.gmra.mxu0 %v2073
        %v2806 = vpop.f32.mrf.mxu0
        %v2807 = vadd.f32 %v2638, %v2806
        %v2808 = vpop.f32.mrf.mxu0
        %v2809 = vadd.f32 %v2640, %v2808
        %2810 = vmatmul.bf16.gmra.mxu0 %v2075
        %v2811 = vpop.f32.mrf.mxu0
        %v2812 = vadd.f32 %v2643, %v2811
        %v2813 = vpop.f32.mrf.mxu0
        %v2814 = vadd.f32 %v2645, %v2813
        %2815 = vdwg.mxu0
        %v2816 = vmax.f32 %v2319, 0.0
        %v2817 = vmax.f32 %v2657, 0.0
        %v2818 = vmax.f32 %v2321, 0.0
        %v2819 = vmax.f32 %v2659, 0.0
        %v2820 = vmax.f32 %v2324, 0.0
        %v2821 = vmax.f32 %v2662, 0.0
        %v2822 = vmax.f32 %v2326, 0.0
        %v2823 = vmax.f32 %v2664, 0.0
        %v2824 = vmax.f32 %v2329, 0.0
        %v2825 = vmax.f32 %v2667, 0.0
        %v2826 = vmax.f32 %v2331, 0.0
        %v2827 = vmax.f32 %v2669, 0.0
        %v2828 = vmax.f32 %v2334, 0.0
        %v2829 = vmax.f32 %v2672, 0.0
        %v2830 = vmax.f32 %v2336, 0.0
        %v2831 = vmax.f32 %v2674, 0.0
        %v2832 = vmax.f32 %v2339, 0.0
        %v2833 = vmax.f32 %v2677, 0.0
        %v2834 = vmax.f32 %v2341, 0.0
        %v2835 = vmax.f32 %v2679, 0.0
        %v2836 = vmax.f32 %v2344, 0.0
        %v2837 = vmax.f32 %v2682, 0.0
        %v2838 = vmax.f32 %v2346, 0.0
        %v2839 = vmax.f32 %v2684, 0.0
        %v2840 = vmax.f32 %v2349, 0.0
        %v2841 = vmax.f32 %v2687, 0.0
        %v2842 = vmax.f32 %v2351, 0.0
        %v2843 = vmax.f32 %v2689, 0.0
        %v2844 = vmax.f32 %v2354, 0.0
        %v2845 = vmax.f32 %v2692, 0.0
        %v2846 = vmax.f32 %v2356, 0.0
        %v2847 = vmax.f32 %v2694, 0.0
        %v2848 = vmax.f32 %v2359, 0.0
        %v2849 = vmax.f32 %v2697, 0.0
        %v2850 = vmax.f32 %v2361, 0.0
        %v2851 = vmax.f32 %v2699, 0.0
        %v2852 = vmax.f32 %v2364, 0.0
        %v2853 = vmax.f32 %v2702, 0.0
        %v2854 = vmax.f32 %v2366, 0.0
        %v2855 = vmax.f32 %v2704, 0.0
        %v2856 = vmax.f32 %v2369, 0.0
        %v2857 = vmax.f32 %v2707, 0.0
        %v2858 = vmax.f32 %v2371, 0.0
        %v2859 = vmax.f32 %v2709, 0.0
        %v2860 = vmax.f32 %v2374, 0.0
        %v2861 = vmax.f32 %v2712, 0.0
        %v2862 = vmax.f32 %v2376, 0.0
        %v2863 = vmax.f32 %v2714, 0.0
        %v2864 = vmax.f32 %v2379, 0.0
        %v2865 = vmax.f32 %v2717, 0.0
        %v2866 = vmax.f32 %v2381, 0.0
        %v2867 = vmax.f32 %v2719, 0.0
        %v2868 = vmax.f32 %v2384, 0.0
        %v2869 = vmax.f32 %v2722, 0.0
        %v2870 = vmax.f32 %v2386, 0.0
        %v2871 = vmax.f32 %v2724, 0.0
        %v2872 = vmax.f32 %v2389, 0.0
        %v2873 = vmax.f32 %v2727, 0.0
        %v2874 = vmax.f32 %v2391, 0.0
        %v2875 = vmax.f32 %v2729, 0.0
        %v2876 = vmax.f32 %v2394, 0.0
        %v2877 = vmax.f32 %v2732, 0.0
        %v2878 = vmax.f32 %v2396, 0.0
        %v2879 = vmax.f32 %v2734, 0.0
        %v2880 = vmax.f32 %v2399, 0.0
        %v2881 = vmax.f32 %v2737, 0.0
        %v2882 = vmax.f32 %v2401, 0.0
        %v2883 = vmax.f32 %v2739, 0.0
        %v2884 = vmax.f32 %v2404, 0.0
        %v2885 = vmax.f32 %v2742, 0.0
        %v2886 = vmax.f32 %v2406, 0.0
        %v2887 = vmax.f32 %v2744, 0.0
        %v2888 = vmax.f32 %v2409, 0.0
        %v2889 = vmax.f32 %v2747, 0.0
        %v2890 = vmax.f32 %v2411, 0.0
        %v2891 = vmax.f32 %v2749, 0.0
        %v2892 = vmax.f32 %v2414, 0.0
        %v2893 = vmax.f32 %v2752, 0.0
        %v2894 = vmax.f32 %v2416, 0.0
        %v2895 = vmax.f32 %v2754, 0.0
        %v2896 = vmax.f32 %v2419, 0.0
        %v2897 = vmax.f32 %v2757, 0.0
        %v2898 = vmax.f32 %v2421, 0.0
        %v2899 = vmax.f32 %v2759, 0.0
        %v2900 = vmax.f32 %v2424, 0.0
        %v2901 = vmax.f32 %v2762, 0.0
        %v2902 = vmax.f32 %v2426, 0.0
        %v2903 = vmax.f32 %v2764, 0.0
        %v2904 = vmax.f32 %v2429, 0.0
        %v2905 = vmax.f32 %v2767, 0.0
        %v2906 = vmax.f32 %v2431, 0.0
        %v2907 = vmax.f32 %v2769, 0.0
        %v2908 = vmax.f32 %v2434, 0.0
        %v2909 = vmax.f32 %v2772, 0.0
        %v2910 = vmax.f32 %v2436, 0.0
        %v2911 = vmax.f32 %v2774, 0.0
        %v2912 = vmax.f32 %v2439, 0.0
        %v2913 = vmax.f32 %v2777, 0.0
        %v2914 = vmax.f32 %v2441, 0.0
        %v2915 = vmax.f32 %v2779, 0.0
        %v2916 = vmax.f32 %v2444, 0.0
        %v2917 = vmax.f32 %v2782, 0.0
        %v2918 = vmax.f32 %v2446, 0.0
        %v2919 = vmax.f32 %v2784, 0.0
        %v2920 = vmax.f32 %v2449, 0.0
        %v2921 = vmax.f32 %v2787, 0.0
        %v2922 = vmax.f32 %v2451, 0.0
        %v2923 = vmax.f32 %v2789, 0.0
        %v2924 = vmax.f32 %v2454, 0.0
        %v2925 = vmax.f32 %v2792, 0.0
        %v2926 = vmax.f32 %v2456, 0.0
        %v2927 = vmax.f32 %v2794, 0.0
        %v2928 = vmax.f32 %v2459, 0.0
        %v2929 = vmax.f32 %v2797, 0.0
        %v2930 = vmax.f32 %v2461, 0.0
        %v2931 = vmax.f32 %v2799, 0.0
        %v2932 = vmax.f32 %v2464, 0.0
        %v2933 = vmax.f32 %v2802, 0.0
        %v2934 = vmax.f32 %v2466, 0.0
        %v2935 = vmax.f32 %v2804, 0.0
        %v2936 = vmax.f32 %v2469, 0.0
        %v2937 = vmax.f32 %v2807, 0.0
        %v2938 = vmax.f32 %v2471, 0.0
        %v2939 = vmax.f32 %v2809, 0.0
        %v2940 = vmax.f32 %v2474, 0.0
        %v2941 = vmax.f32 %v2812, 0.0
        %v2942 = vmax.f32 %v2476, 0.0
        %v2943 = vmax.f32 %v2814, 0.0
        %v2944 = vpack.c.bf16 %v2818, %v2816
        %v2945 = vpack.c.bf16 %v2819, %v2817
        %v2946 = vpack.c.bf16 %v2822, %v2820
        %v2947 = vpack.c.bf16 %v2823, %v2821
        %v2948 = vpack.c.bf16 %v2826, %v2824
        %v2949 = vpack.c.bf16 %v2827, %v2825
        %v2950 = vpack.c.bf16 %v2830, %v2828
        %v2951 = vpack.c.bf16 %v2831, %v2829
        %v2952 = vpack.c.bf16 %v2834, %v2832
        %v2953 = vpack.c.bf16 %v2835, %v2833
        %v2954 = vpack.c.bf16 %v2838, %v2836
        %v2955 = vpack.c.bf16 %v2839, %v2837
        %v2956 = vpack.c.bf16 %v2842, %v2840
        %v2957 = vpack.c.bf16 %v2843, %v2841
        %v2958 = vpack.c.bf16 %v2846, %v2844
        %v2959 = vpack.c.bf16 %v2847, %v2845
        %v2960 = vpack.c.bf16 %v2850, %v2848
        %v2961 = vpack.c.bf16 %v2851, %v2849
        %v2962 = vpack.c.bf16 %v2854, %v2852
        %v2963 = vpack.c.bf16 %v2855, %v2853
        %v2964 = vpack.c.bf16 %v2858, %v2856
        %v2965 = vpack.c.bf16 %v2859, %v2857
        %v2966 = vpack.c.bf16 %v2862, %v2860
        %v2967 = vpack.c.bf16 %v2863, %v2861
        %v2968 = vpack.c.bf16 %v2866, %v2864
        %v2969 = vpack.c.bf16 %v2867, %v2865
        %v2970 = vpack.c.bf16 %v2870, %v2868
        %v2971 = vpack.c.bf16 %v2871, %v2869
        %v2972 = vpack.c.bf16 %v2874, %v2872
        %v2973 = vpack.c.bf16 %v2875, %v2873
        %v2974 = vpack.c.bf16 %v2878, %v2876
        %v2975 = vpack.c.bf16 %v2879, %v2877
        %v2976 = vpack.c.bf16 %v2882, %v2880
        %v2977 = vpack.c.bf16 %v2883, %v2881
        %v2978 = vpack.c.bf16 %v2886, %v2884
        %v2979 = vpack.c.bf16 %v2887, %v2885
        %v2980 = vpack.c.bf16 %v2890, %v2888
        %v2981 = vpack.c.bf16 %v2891, %v2889
        %v2982 = vpack.c.bf16 %v2894, %v2892
        %v2983 = vpack.c.bf16 %v2895, %v2893
        %v2984 = vpack.c.bf16 %v2898, %v2896
        %v2985 = vpack.c.bf16 %v2899, %v2897
        %v2986 = vpack.c.bf16 %v2902, %v2900
        %v2987 = vpack.c.bf16 %v2903, %v2901
        %v2988 = vpack.c.bf16 %v2906, %v2904
        %v2989 = vpack.c.bf16 %v2907, %v2905
        %v2990 = vpack.c.bf16 %v2910, %v2908
        %v2991 = vpack.c.bf16 %v2911, %v2909
        %v2992 = vpack.c.bf16 %v2914, %v2912
        %v2993 = vpack.c.bf16 %v2915, %v2913
        %v2994 = vpack.c.bf16 %v2918, %v2916
        %v2995 = vpack.c.bf16 %v2919, %v2917
        %v2996 = vpack.c.bf16 %v2922, %v2920
        %v2997 = vpack.c.bf16 %v2923, %v2921
        %v2998 = vpack.c.bf16 %v2926, %v2924
        %v2999 = vpack.c.bf16 %v2927, %v2925
        %v3000 = vpack.c.bf16 %v2930, %v2928
        %v3001 = vpack.c.bf16 %v2931, %v2929
        %v3002 = vpack.c.bf16 %v2934, %v2932
        %v3003 = vpack.c.bf16 %v2935, %v2933
        %v3004 = vpack.c.bf16 %v2938, %v2936
        %v3005 = vpack.c.bf16 %v2939, %v2937
        %v3006 = vpack.c.bf16 %v2942, %v2940
        %v3007 = vpack.c.bf16 %v2943, %v2941
        %v3008 = vld [vmem:[#allocation5 + $0x7a0] sm:$0xff]
        %v3009 = vld [vmem:[#allocation5 + $0x7a8] sm:$0xff]
        %v3010 = vld [vmem:[#allocation5 + $0x7b0] sm:$0xff]
        %v3011 = vld [vmem:[#allocation5 + $0x7b8] sm:$0xff]
        %v3012 = vld [vmem:[#allocation5 + $0x7c0] sm:$0xff]
        %v3013 = vld [vmem:[#allocation5 + $0x7c8] sm:$0xff]
        %v3014 = vld [vmem:[#allocation5 + $0x7d0] sm:$0xff]
        %v3015 = vld [vmem:[#allocation5 + $0x7d8] sm:$0xff]
        %v3016 = vld [vmem:[#allocation5 + $0x7e0] sm:$0xff]
        %v3017 = vld [vmem:[#allocation5 + $0x7e8] sm:$0xff]
        %v3018 = vld [vmem:[#allocation5 + $0x7f0] sm:$0xff]
        %v3019 = vld [vmem:[#allocation5 + $0x7f8] sm:$0xff]
        %v3020 = vld [vmem:[#allocation5 + $0x800] sm:$0xff]
        %v3021 = vld [vmem:[#allocation5 + $0x808] sm:$0xff]
        %v3022 = vld [vmem:[#allocation5 + $0x810] sm:$0xff]
        %v3023 = vld [vmem:[#allocation5 + $0x818] sm:$0xff]
        %v3024 = vld [vmem:[#allocation5 + $0x820] sm:$0xff]
        %v3025 = vld [vmem:[#allocation5 + $0x828] sm:$0xff]
        %v3026 = vld [vmem:[#allocation5 + $0x830] sm:$0xff]
        %v3027 = vld [vmem:[#allocation5 + $0x838] sm:$0xff]
        %v3028 = vld [vmem:[#allocation5 + $0x840] sm:$0xff]
        %v3029 = vld [vmem:[#allocation5 + $0x848] sm:$0xff]
        %v3030 = vld [vmem:[#allocation5 + $0x850] sm:$0xff]
        %v3031 = vld [vmem:[#allocation5 + $0x858] sm:$0xff]
        %v3032 = vld [vmem:[#allocation5 + $0x860] sm:$0xff]
        %v3033 = vld [vmem:[#allocation5 + $0x868] sm:$0xff]
        %v3034 = vld [vmem:[#allocation5 + $0x870] sm:$0xff]
        %v3035 = vld [vmem:[#allocation5 + $0x878] sm:$0xff]
        %v3036 = vld [vmem:[#allocation5 + $0x880] sm:$0xff]
        %v3037 = vld [vmem:[#allocation5 + $0x888] sm:$0xff]
        %v3038 = vld [vmem:[#allocation5 + $0x890] sm:$0xff]
        %v3039 = vld [vmem:[#allocation5 + $0x898] sm:$0xff]
        %v3040 = vld [vmem:[#allocation5 + $0x8a0] sm:$0xff]
        %v3041 = vld [vmem:[#allocation5 + $0x8a8] sm:$0xff]
        %v3042 = vld [vmem:[#allocation5 + $0x8b0] sm:$0xff]
        %v3043 = vld [vmem:[#allocation5 + $0x8b8] sm:$0xff]
        %v3044 = vld [vmem:[#allocation5 + $0x8c0] sm:$0xff]
        %v3045 = vld [vmem:[#allocation5 + $0x8c8] sm:$0xff]
        %v3046 = vld [vmem:[#allocation5 + $0x8d0] sm:$0xff]
        %v3047 = vld [vmem:[#allocation5 + $0x8d8] sm:$0xff]
        %v3048 = vld [vmem:[#allocation5 + $0x8e0] sm:$0xff]
        %v3049 = vld [vmem:[#allocation5 + $0x8e8] sm:$0xff]
        %v3050 = vld [vmem:[#allocation5 + $0x8f0] sm:$0xff]
        %v3051 = vld [vmem:[#allocation5 + $0x8f8] sm:$0xff]
        %v3052 = vld [vmem:[#allocation5 + $0x900] sm:$0xff]
        %v3053 = vld [vmem:[#allocation5 + $0x908] sm:$0xff]
        %v3054 = vld [vmem:[#allocation5 + $0x910] sm:$0xff]
        %v3055 = vld [vmem:[#allocation5 + $0x918] sm:$0xff]
        %v3056 = vld [vmem:[#allocation5 + $0x920] sm:$0xff]
        %v3057 = vld [vmem:[#allocation5 + $0x928] sm:$0xff]
        %v3058 = vld [vmem:[#allocation5 + $0x930] sm:$0xff]
        %v3059 = vld [vmem:[#allocation5 + $0x938] sm:$0xff]
        %v3060 = vld [vmem:[#allocation5 + $0x940] sm:$0xff]
        %v3061 = vld [vmem:[#allocation5 + $0x948] sm:$0xff]
        %v3062 = vld [vmem:[#allocation5 + $0x950] sm:$0xff]
        %v3063 = vld [vmem:[#allocation5 + $0x958] sm:$0xff]
        %v3064 = vld [vmem:[#allocation5 + $0x960] sm:$0xff]
        %v3065 = vld [vmem:[#allocation5 + $0x968] sm:$0xff]
        %v3066 = vld [vmem:[#allocation5 + $0x970] sm:$0xff]
        %v3067 = vld [vmem:[#allocation5 + $0x978] sm:$0xff]
        %v3068 = vld [vmem:[#allocation5 + $0x980] sm:$0xff]
        %v3069 = vld [vmem:[#allocation5 + $0x988] sm:$0xff]
        %v3070 = vld [vmem:[#allocation5 + $0x990] sm:$0xff]
        %v3071 = vld [vmem:[#allocation5 + $0x998] sm:$0xff]
        %v3072 = vld [vmem:[%s2 + $0x3d0] sm:$0xff]
        %v3073 = vld [vmem:[%s2 + $0x3d8] sm:$0xff]
        %v3074 = vld [vmem:[%s2 + $0x3e0] sm:$0xff]
        %v3075 = vld [vmem:[%s2 + $0x3e8] sm:$0xff]
        %v3076 = vld [vmem:[%s2 + $0x3f0] sm:$0xff]
        %v3077 = vld [vmem:[%s2 + $0x3f8] sm:$0xff]
        %v3078 = vld [vmem:[%s2 + $0x400] sm:$0xff]
        %v3079 = vld [vmem:[%s2 + $0x408] sm:$0xff]
        %v3080 = vld [vmem:[%s2 + $0x410] sm:$0xff]
        %v3081 = vld [vmem:[%s2 + $0x418] sm:$0xff]
        %v3082 = vld [vmem:[%s2 + $0x420] sm:$0xff]
        %v3083 = vld [vmem:[%s2 + $0x428] sm:$0xff]
        %v3084 = vld [vmem:[%s2 + $0x430] sm:$0xff]
        %v3085 = vld [vmem:[%s2 + $0x438] sm:$0xff]
        %v3086 = vld [vmem:[%s2 + $0x440] sm:$0xff]
        %v3087 = vld [vmem:[%s2 + $0x448] sm:$0xff]
        %v3088 = vld [vmem:[%s2 + $0x450] sm:$0xff]
        %v3089 = vld [vmem:[%s2 + $0x458] sm:$0xff]
        %v3090 = vld [vmem:[%s2 + $0x460] sm:$0xff]
        %v3091 = vld [vmem:[%s2 + $0x468] sm:$0xff]
        %v3092 = vld [vmem:[%s2 + $0x470] sm:$0xff]
        %v3093 = vld [vmem:[%s2 + $0x478] sm:$0xff]
        %v3094 = vld [vmem:[%s2 + $0x480] sm:$0xff]
        %v3095 = vld [vmem:[%s2 + $0x488] sm:$0xff]
        %v3096 = vld [vmem:[%s2 + $0x490] sm:$0xff]
        %v3097 = vld [vmem:[%s2 + $0x498] sm:$0xff]
        %v3098 = vld [vmem:[%s2 + $0x4a0] sm:$0xff]
        %v3099 = vld [vmem:[%s2 + $0x4a8] sm:$0xff]
        %v3100 = vld [vmem:[%s2 + $0x4b0] sm:$0xff]
        %v3101 = vld [vmem:[%s2 + $0x4b8] sm:$0xff]
        %v3102 = vld [vmem:[%s2 + $0x4c0] sm:$0xff]
        %v3103 = vld [vmem:[%s2 + $0x4c8] sm:$0xff]
        %3105 = vset.pattern.permute.xlu0 0
        %3106 = vperm.xlu0 %3105, %v3072
        %v3107 = vpop.permute.xlu0 %3106
        %3110 = vset.pattern.permute.xlu0 0
        %3111 = vperm.xlu0 %3110, %v3073
        %v3112 = vpop.permute.xlu0 %3111
        %3115 = vset.pattern.permute.xlu0 0
        %3116 = vperm.xlu0 %3115, %v3074
        %v3117 = vpop.permute.xlu0 %3116
        %3120 = vset.pattern.permute.xlu0 0
        %3121 = vperm.xlu0 %3120, %v3075
        %v3122 = vpop.permute.xlu0 %3121
        %3125 = vset.pattern.permute.xlu0 0
        %3126 = vperm.xlu0 %3125, %v3076
        %v3127 = vpop.permute.xlu0 %3126
        %3130 = vset.pattern.permute.xlu0 0
        %3131 = vperm.xlu0 %3130, %v3077
        %v3132 = vpop.permute.xlu0 %3131
        %3135 = vset.pattern.permute.xlu0 0
        %3136 = vperm.xlu0 %3135, %v3078
        %v3137 = vpop.permute.xlu0 %3136
        %3140 = vset.pattern.permute.xlu0 0
        %3141 = vperm.xlu0 %3140, %v3079
        %v3142 = vpop.permute.xlu0 %3141
        %3145 = vset.pattern.permute.xlu0 0
        %3146 = vperm.xlu0 %3145, %v3080
        %v3147 = vpop.permute.xlu0 %3146
        %3150 = vset.pattern.permute.xlu0 0
        %3151 = vperm.xlu0 %3150, %v3081
        %v3152 = vpop.permute.xlu0 %3151
        %3155 = vset.pattern.permute.xlu0 0
        %3156 = vperm.xlu0 %3155, %v3082
        %v3157 = vpop.permute.xlu0 %3156
        %3160 = vset.pattern.permute.xlu0 0
        %3161 = vperm.xlu0 %3160, %v3083
        %v3162 = vpop.permute.xlu0 %3161
        %3165 = vset.pattern.permute.xlu0 0
        %3166 = vperm.xlu0 %3165, %v3084
        %v3167 = vpop.permute.xlu0 %3166
        %3170 = vset.pattern.permute.xlu0 0
        %3171 = vperm.xlu0 %3170, %v3085
        %v3172 = vpop.permute.xlu0 %3171
        %3175 = vset.pattern.permute.xlu0 0
        %3176 = vperm.xlu0 %3175, %v3086
        %v3177 = vpop.permute.xlu0 %3176
        %3180 = vset.pattern.permute.xlu0 0
        %3181 = vperm.xlu0 %3180, %v3087
        %v3182 = vpop.permute.xlu0 %3181
        %3185 = vset.pattern.permute.xlu0 0
        %3186 = vperm.xlu0 %3185, %v3088
        %v3187 = vpop.permute.xlu0 %3186
        %3190 = vset.pattern.permute.xlu0 0
        %3191 = vperm.xlu0 %3190, %v3089
        %v3192 = vpop.permute.xlu0 %3191
        %3195 = vset.pattern.permute.xlu0 0
        %3196 = vperm.xlu0 %3195, %v3090
        %v3197 = vpop.permute.xlu0 %3196
        %3200 = vset.pattern.permute.xlu0 0
        %3201 = vperm.xlu0 %3200, %v3091
        %v3202 = vpop.permute.xlu0 %3201
        %3205 = vset.pattern.permute.xlu0 0
        %3206 = vperm.xlu0 %3205, %v3092
        %v3207 = vpop.permute.xlu0 %3206
        %3210 = vset.pattern.permute.xlu0 0
        %3211 = vperm.xlu0 %3210, %v3093
        %v3212 = vpop.permute.xlu0 %3211
        %3215 = vset.pattern.permute.xlu0 0
        %3216 = vperm.xlu0 %3215, %v3094
        %v3217 = vpop.permute.xlu0 %3216
        %3220 = vset.pattern.permute.xlu0 0
        %3221 = vperm.xlu0 %3220, %v3095
        %v3222 = vpop.permute.xlu0 %3221
        %3225 = vset.pattern.permute.xlu0 0
        %3226 = vperm.xlu0 %3225, %v3096
        %v3227 = vpop.permute.xlu0 %3226
        %3230 = vset.pattern.permute.xlu0 0
        %3231 = vperm.xlu0 %3230, %v3097
        %v3232 = vpop.permute.xlu0 %3231
        %3235 = vset.pattern.permute.xlu0 0
        %3236 = vperm.xlu0 %3235, %v3098
        %v3237 = vpop.permute.xlu0 %3236
        %3240 = vset.pattern.permute.xlu0 0
        %3241 = vperm.xlu0 %3240, %v3099
        %v3242 = vpop.permute.xlu0 %3241
        %3245 = vset.pattern.permute.xlu0 0
        %3246 = vperm.xlu0 %3245, %v3100
        %v3247 = vpop.permute.xlu0 %3246
        %3250 = vset.pattern.permute.xlu0 0
        %3251 = vperm.xlu0 %3250, %v3101
        %v3252 = vpop.permute.xlu0 %3251
        %3255 = vset.pattern.permute.xlu0 0
        %3256 = vperm.xlu0 %3255, %v3102
        %v3257 = vpop.permute.xlu0 %3256
        %3260 = vset.pattern.permute.xlu0 0
        %3261 = vperm.xlu0 %3260, %v3103
        %v3262 = vpop.permute.xlu0 %3261
        %v3328 = vunpack.c.l.b16 %v3008
        %v3329 = vunpack.c.h.b16 %v3008
        %v3330 = vunpack.c.l.b16 %v3009
        %v3331 = vunpack.c.h.b16 %v3009
        %v3332 = vunpack.c.l.b16 %v3010
        %v3333 = vunpack.c.h.b16 %v3010
        %v3334 = vunpack.c.l.b16 %v3011
        %v3335 = vunpack.c.h.b16 %v3011
        %v3336 = vunpack.c.l.b16 %v3012
        %v3337 = vunpack.c.h.b16 %v3012
        %v3338 = vunpack.c.l.b16 %v3013
        %v3339 = vunpack.c.h.b16 %v3013
        %v3340 = vunpack.c.l.b16 %v3014
        %v3341 = vunpack.c.h.b16 %v3014
        %v3342 = vunpack.c.l.b16 %v3015
        %v3343 = vunpack.c.h.b16 %v3015
        %v3344 = vunpack.c.l.b16 %v3016
        %v3345 = vunpack.c.h.b16 %v3016
        %v3346 = vunpack.c.l.b16 %v3017
        %v3347 = vunpack.c.h.b16 %v3017
        %v3348 = vunpack.c.l.b16 %v3018
        %v3349 = vunpack.c.h.b16 %v3018
        %v3350 = vunpack.c.l.b16 %v3019
        %v3351 = vunpack.c.h.b16 %v3019
        %v3352 = vunpack.c.l.b16 %v3020
        %v3353 = vunpack.c.h.b16 %v3020
        %v3354 = vunpack.c.l.b16 %v3021
        %v3355 = vunpack.c.h.b16 %v3021
        %v3356 = vunpack.c.l.b16 %v3022
        %v3357 = vunpack.c.h.b16 %v3022
        %v3358 = vunpack.c.l.b16 %v3023
        %v3359 = vunpack.c.h.b16 %v3023
        %v3360 = vunpack.c.l.b16 %v3024
        %v3361 = vunpack.c.h.b16 %v3024
        %v3362 = vunpack.c.l.b16 %v3025
        %v3363 = vunpack.c.h.b16 %v3025
        %v3364 = vunpack.c.l.b16 %v3026
        %v3365 = vunpack.c.h.b16 %v3026
        %v3366 = vunpack.c.l.b16 %v3027
        %v3367 = vunpack.c.h.b16 %v3027
        %v3368 = vunpack.c.l.b16 %v3028
        %v3369 = vunpack.c.h.b16 %v3028
        %v3370 = vunpack.c.l.b16 %v3029
        %v3371 = vunpack.c.h.b16 %v3029
        %v3372 = vunpack.c.l.b16 %v3030
        %v3373 = vunpack.c.h.b16 %v3030
        %v3374 = vunpack.c.l.b16 %v3031
        %v3375 = vunpack.c.h.b16 %v3031
        %v3376 = vunpack.c.l.b16 %v3032
        %v3377 = vunpack.c.h.b16 %v3032
        %v3378 = vunpack.c.l.b16 %v3033
        %v3379 = vunpack.c.h.b16 %v3033
        %v3380 = vunpack.c.l.b16 %v3034
        %v3381 = vunpack.c.h.b16 %v3034
        %v3382 = vunpack.c.l.b16 %v3035
        %v3383 = vunpack.c.h.b16 %v3035
        %v3384 = vunpack.c.l.b16 %v3036
        %v3385 = vunpack.c.h.b16 %v3036
        %v3386 = vunpack.c.l.b16 %v3037
        %v3387 = vunpack.c.h.b16 %v3037
        %v3388 = vunpack.c.l.b16 %v3038
        %v3389 = vunpack.c.h.b16 %v3038
        %v3390 = vunpack.c.l.b16 %v3039
        %v3391 = vunpack.c.h.b16 %v3039
        %v3392 = vunpack.c.l.b16 %v3040
        %v3393 = vunpack.c.h.b16 %v3040
        %v3394 = vunpack.c.l.b16 %v3041
        %v3395 = vunpack.c.h.b16 %v3041
        %v3396 = vunpack.c.l.b16 %v3042
        %v3397 = vunpack.c.h.b16 %v3042
        %v3398 = vunpack.c.l.b16 %v3043
        %v3399 = vunpack.c.h.b16 %v3043
        %v3400 = vunpack.c.l.b16 %v3044
        %v3401 = vunpack.c.h.b16 %v3044
        %v3402 = vunpack.c.l.b16 %v3045
        %v3403 = vunpack.c.h.b16 %v3045
        %v3404 = vunpack.c.l.b16 %v3046
        %v3405 = vunpack.c.h.b16 %v3046
        %v3406 = vunpack.c.l.b16 %v3047
        %v3407 = vunpack.c.h.b16 %v3047
        %v3408 = vunpack.c.l.b16 %v3048
        %v3409 = vunpack.c.h.b16 %v3048
        %v3410 = vunpack.c.l.b16 %v3049
        %v3411 = vunpack.c.h.b16 %v3049
        %v3412 = vunpack.c.l.b16 %v3050
        %v3413 = vunpack.c.h.b16 %v3050
        %v3414 = vunpack.c.l.b16 %v3051
        %v3415 = vunpack.c.h.b16 %v3051
        %v3416 = vunpack.c.l.b16 %v3052
        %v3417 = vunpack.c.h.b16 %v3052
        %v3418 = vunpack.c.l.b16 %v3053
        %v3419 = vunpack.c.h.b16 %v3053
        %v3420 = vunpack.c.l.b16 %v3054
        %v3421 = vunpack.c.h.b16 %v3054
        %v3422 = vunpack.c.l.b16 %v3055
        %v3423 = vunpack.c.h.b16 %v3055
        %v3424 = vunpack.c.l.b16 %v3056
        %v3425 = vunpack.c.h.b16 %v3056
        %v3426 = vunpack.c.l.b16 %v3057
        %v3427 = vunpack.c.h.b16 %v3057
        %v3428 = vunpack.c.l.b16 %v3058
        %v3429 = vunpack.c.h.b16 %v3058
        %v3430 = vunpack.c.l.b16 %v3059
        %v3431 = vunpack.c.h.b16 %v3059
        %v3432 = vunpack.c.l.b16 %v3060
        %v3433 = vunpack.c.h.b16 %v3060
        %v3434 = vunpack.c.l.b16 %v3061
        %v3435 = vunpack.c.h.b16 %v3061
        %v3436 = vunpack.c.l.b16 %v3062
        %v3437 = vunpack.c.h.b16 %v3062
        %v3438 = vunpack.c.l.b16 %v3063
        %v3439 = vunpack.c.h.b16 %v3063
        %v3440 = vunpack.c.l.b16 %v3064
        %v3441 = vunpack.c.h.b16 %v3064
        %v3442 = vunpack.c.l.b16 %v3065
        %v3443 = vunpack.c.h.b16 %v3065
        %v3444 = vunpack.c.l.b16 %v3066
        %v3445 = vunpack.c.h.b16 %v3066
        %v3446 = vunpack.c.l.b16 %v3067
        %v3447 = vunpack.c.h.b16 %v3067
        %v3448 = vunpack.c.l.b16 %v3068
        %v3449 = vunpack.c.h.b16 %v3068
        %v3450 = vunpack.c.l.b16 %v3069
        %v3451 = vunpack.c.h.b16 %v3069
        %v3452 = vunpack.c.l.b16 %v3070
        %v3453 = vunpack.c.h.b16 %v3070
        %v3454 = vunpack.c.l.b16 %v3071
        %v3455 = vunpack.c.h.b16 %v3071
        %v3456 = vpack.c.b16 %v3332, %v3328
        %v3457 = vpack.c.b16 %v3333, %v3329
        %v3458 = vpack.c.b16 %v3334, %v3330
        %v3459 = vpack.c.b16 %v3335, %v3331
        %v3460 = vpack.c.b16 %v3340, %v3336
        %v3461 = vpack.c.b16 %v3341, %v3337
        %v3462 = vpack.c.b16 %v3342, %v3338
        %v3463 = vpack.c.b16 %v3343, %v3339
        %v3464 = vpack.c.b16 %v3348, %v3344
        %v3465 = vpack.c.b16 %v3349, %v3345
        %v3466 = vpack.c.b16 %v3350, %v3346
        %v3467 = vpack.c.b16 %v3351, %v3347
        %v3468 = vpack.c.b16 %v3356, %v3352
        %v3469 = vpack.c.b16 %v3357, %v3353
        %v3470 = vpack.c.b16 %v3358, %v3354
        %v3471 = vpack.c.b16 %v3359, %v3355
        %v3472 = vpack.c.b16 %v3364, %v3360
        %v3473 = vpack.c.b16 %v3365, %v3361
        %v3474 = vpack.c.b16 %v3366, %v3362
        %v3475 = vpack.c.b16 %v3367, %v3363
        %v3476 = vpack.c.b16 %v3372, %v3368
        %v3477 = vpack.c.b16 %v3373, %v3369
        %v3478 = vpack.c.b16 %v3374, %v3370
        %v3479 = vpack.c.b16 %v3375, %v3371
        %v3480 = vpack.c.b16 %v3380, %v3376
        %v3481 = vpack.c.b16 %v3381, %v3377
        %v3482 = vpack.c.b16 %v3382, %v3378
        %v3483 = vpack.c.b16 %v3383, %v3379
        %v3484 = vpack.c.b16 %v3388, %v3384
        %v3485 = vpack.c.b16 %v3389, %v3385
        %v3486 = vpack.c.b16 %v3390, %v3386
        %v3487 = vpack.c.b16 %v3391, %v3387
        %v3488 = vpack.c.b16 %v3396, %v3392
        %v3489 = vpack.c.b16 %v3397, %v3393
        %v3490 = vpack.c.b16 %v3398, %v3394
        %v3491 = vpack.c.b16 %v3399, %v3395
        %v3492 = vpack.c.b16 %v3404, %v3400
        %v3493 = vpack.c.b16 %v3405, %v3401
        %v3494 = vpack.c.b16 %v3406, %v3402
        %v3495 = vpack.c.b16 %v3407, %v3403
        %v3496 = vpack.c.b16 %v3412, %v3408
        %v3497 = vpack.c.b16 %v3413, %v3409
        %v3498 = vpack.c.b16 %v3414, %v3410
        %v3499 = vpack.c.b16 %v3415, %v3411
        %v3500 = vpack.c.b16 %v3420, %v3416
        %v3501 = vpack.c.b16 %v3421, %v3417
        %v3502 = vpack.c.b16 %v3422, %v3418
        %v3503 = vpack.c.b16 %v3423, %v3419
        %v3504 = vpack.c.b16 %v3428, %v3424
        %v3505 = vpack.c.b16 %v3429, %v3425
        %v3506 = vpack.c.b16 %v3430, %v3426
        %v3507 = vpack.c.b16 %v3431, %v3427
        %v3508 = vpack.c.b16 %v3436, %v3432
        %v3509 = vpack.c.b16 %v3437, %v3433
        %v3510 = vpack.c.b16 %v3438, %v3434
        %v3511 = vpack.c.b16 %v3439, %v3435
        %v3512 = vpack.c.b16 %v3444, %v3440
        %v3513 = vpack.c.b16 %v3445, %v3441
        %v3514 = vpack.c.b16 %v3446, %v3442
        %v3515 = vpack.c.b16 %v3447, %v3443
        %v3516 = vpack.c.b16 %v3452, %v3448
        %v3517 = vpack.c.b16 %v3453, %v3449
        %v3518 = vpack.c.b16 %v3454, %v3450
        %v3519 = vpack.c.b16 %v3455, %v3451
        %3584 = vmatpush.bf16.msra.mxu0 %v2958
        %3585 = vmatpush.bf16.msra.mxu0 %v2956
        %3586 = vmatpush.bf16.msra.mxu0 %v2954
        %3587 = vmatpush.bf16.msra.mxu0 %v2952
        %3588 = vmatpush.bf16.msra.mxu0 %v2950
        %3589 = vmatpush.bf16.msra.mxu0 %v2948
        %3590 = vmatpush.bf16.msra.mxu0 %v2946
        %3591 = vmatpush.bf16.msra.mxu0 %v2944
        %3592 = vmatmul.bf16.gmra.mxu0 %v3456
        %v3593 = vpop.f32.mrf.mxu0
        %v3594 = vadd.f32 %v3107, %v3593
        %v3595 = vpop.f32.mrf.mxu0
        %v3596 = vadd.f32 %v3112, %v3595
        %3597 = vmatmul.bf16.gmra.mxu0 %v3460
        %v3598 = vpop.f32.mrf.mxu0
        %v3599 = vadd.f32 %v3117, %v3598
        %v3600 = vpop.f32.mrf.mxu0
        %v3601 = vadd.f32 %v3122, %v3600
        %3602 = vmatmul.bf16.gmra.mxu0 %v3464
        %v3603 = vpop.f32.mrf.mxu0
        %v3604 = vadd.f32 %v3127, %v3603
        %v3605 = vpop.f32.mrf.mxu0
        %v3606 = vadd.f32 %v3132, %v3605
        %3607 = vmatmul.bf16.gmra.mxu0 %v3468
        %v3608 = vpop.f32.mrf.mxu0
        %v3609 = vadd.f32 %v3137, %v3608
        %v3610 = vpop.f32.mrf.mxu0
        %v3611 = vadd.f32 %v3142, %v3610
        %3612 = vmatmul.bf16.gmra.mxu0 %v3472
        %v3613 = vpop.f32.mrf.mxu0
        %v3614 = vadd.f32 %v3147, %v3613
        %v3615 = vpop.f32.mrf.mxu0
        %v3616 = vadd.f32 %v3152, %v3615
        %3617 = vmatmul.bf16.gmra.mxu0 %v3476
        %v3618 = vpop.f32.mrf.mxu0
        %v3619 = vadd.f32 %v3157, %v3618
        %v3620 = vpop.f32.mrf.mxu0
        %v3621 = vadd.f32 %v3162, %v3620
        %3622 = vmatmul.bf16.gmra.mxu0 %v3480
        %v3623 = vpop.f32.mrf.mxu0
        %v3624 = vadd.f32 %v3167, %v3623
        %v3625 = vpop.f32.mrf.mxu0
        %v3626 = vadd.f32 %v3172, %v3625
        %3627 = vmatmul.bf16.gmra.mxu0 %v3484
        %v3628 = vpop.f32.mrf.mxu0
        %v3629 = vadd.f32 %v3177, %v3628
        %v3630 = vpop.f32.mrf.mxu0
        %v3631 = vadd.f32 %v3182, %v3630
        %3632 = vmatmul.bf16.gmra.mxu0 %v3488
        %v3633 = vpop.f32.mrf.mxu0
        %v3634 = vadd.f32 %v3187, %v3633
        %v3635 = vpop.f32.mrf.mxu0
        %v3636 = vadd.f32 %v3192, %v3635
        %3637 = vmatmul.bf16.gmra.mxu0 %v3492
        %v3638 = vpop.f32.mrf.mxu0
        %v3639 = vadd.f32 %v3197, %v3638
        %v3640 = vpop.f32.mrf.mxu0
        %v3641 = vadd.f32 %v3202, %v3640
        %3642 = vmatmul.bf16.gmra.mxu0 %v3496
        %v3643 = vpop.f32.mrf.mxu0
        %v3644 = vadd.f32 %v3207, %v3643
        %v3645 = vpop.f32.mrf.mxu0
        %v3646 = vadd.f32 %v3212, %v3645
        %3647 = vmatmul.bf16.gmra.mxu0 %v3500
        %v3648 = vpop.f32.mrf.mxu0
        %v3649 = vadd.f32 %v3217, %v3648
        %v3650 = vpop.f32.mrf.mxu0
        %v3651 = vadd.f32 %v3222, %v3650
        %3652 = vmatmul.bf16.gmra.mxu0 %v3504
        %v3653 = vpop.f32.mrf.mxu0
        %v3654 = vadd.f32 %v3227, %v3653
        %v3655 = vpop.f32.mrf.mxu0
        %v3656 = vadd.f32 %v3232, %v3655
        %3657 = vmatmul.bf16.gmra.mxu0 %v3508
        %v3658 = vpop.f32.mrf.mxu0
        %v3659 = vadd.f32 %v3237, %v3658
        %v3660 = vpop.f32.mrf.mxu0
        %v3661 = vadd.f32 %v3242, %v3660
        %3662 = vmatmul.bf16.gmra.mxu0 %v3512
        %v3663 = vpop.f32.mrf.mxu0
        %v3664 = vadd.f32 %v3247, %v3663
        %v3665 = vpop.f32.mrf.mxu0
        %v3666 = vadd.f32 %v3252, %v3665
        %3667 = vmatmul.bf16.gmra.mxu0 %v3516
        %v3668 = vpop.f32.mrf.mxu0
        %v3669 = vadd.f32 %v3257, %v3668
        %v3670 = vpop.f32.mrf.mxu0
        %v3671 = vadd.f32 %v3262, %v3670
        %3672 = vdwg.mxu0
        %3673 = vmatpush.bf16.msra.mxu0 %v2974
        %3674 = vmatpush.bf16.msra.mxu0 %v2972
        %3675 = vmatpush.bf16.msra.mxu0 %v2970
        %3676 = vmatpush.bf16.msra.mxu0 %v2968
        %3677 = vmatpush.bf16.msra.mxu0 %v2966
        %3678 = vmatpush.bf16.msra.mxu0 %v2964
        %3679 = vmatpush.bf16.msra.mxu0 %v2962
        %3680 = vmatpush.bf16.msra.mxu0 %v2960
        %3681 = vmatmul.bf16.gmra.mxu0 %v3457
        %v3682 = vpop.f32.mrf.mxu0
        %v3683 = vadd.f32 %v3594, %v3682
        %v3684 = vpop.f32.mrf.mxu0
        %v3685 = vadd.f32 %v3596, %v3684
        %3686 = vmatmul.bf16.gmra.mxu0 %v3461
        %v3687 = vpop.f32.mrf.mxu0
        %v3688 = vadd.f32 %v3599, %v3687
        %v3689 = vpop.f32.mrf.mxu0
        %v3690 = vadd.f32 %v3601, %v3689
        %3691 = vmatmul.bf16.gmra.mxu0 %v3465
        %v3692 = vpop.f32.mrf.mxu0
        %v3693 = vadd.f32 %v3604, %v3692
        %v3694 = vpop.f32.mrf.mxu0
        %v3695 = vadd.f32 %v3606, %v3694
        %3696 = vmatmul.bf16.gmra.mxu0 %v3469
        %v3697 = vpop.f32.mrf.mxu0
        %v3698 = vadd.f32 %v3609, %v3697
        %v3699 = vpop.f32.mrf.mxu0
        %v3700 = vadd.f32 %v3611, %v3699
        %3701 = vmatmul.bf16.gmra.mxu0 %v3473
        %v3702 = vpop.f32.mrf.mxu0
        %v3703 = vadd.f32 %v3614, %v3702
        %v3704 = vpop.f32.mrf.mxu0
        %v3705 = vadd.f32 %v3616, %v3704
        %3706 = vmatmul.bf16.gmra.mxu0 %v3477
        %v3707 = vpop.f32.mrf.mxu0
        %v3708 = vadd.f32 %v3619, %v3707
        %v3709 = vpop.f32.mrf.mxu0
        %v3710 = vadd.f32 %v3621, %v3709
        %3711 = vmatmul.bf16.gmra.mxu0 %v3481
        %v3712 = vpop.f32.mrf.mxu0
        %v3713 = vadd.f32 %v3624, %v3712
        %v3714 = vpop.f32.mrf.mxu0
        %v3715 = vadd.f32 %v3626, %v3714
        %3716 = vmatmul.bf16.gmra.mxu0 %v3485
        %v3717 = vpop.f32.mrf.mxu0
        %v3718 = vadd.f32 %v3629, %v3717
        %v3719 = vpop.f32.mrf.mxu0
        %v3720 = vadd.f32 %v3631, %v3719
        %3721 = vmatmul.bf16.gmra.mxu0 %v3489
        %v3722 = vpop.f32.mrf.mxu0
        %v3723 = vadd.f32 %v3634, %v3722
        %v3724 = vpop.f32.mrf.mxu0
        %v3725 = vadd.f32 %v3636, %v3724
        %3726 = vmatmul.bf16.gmra.mxu0 %v3493
        %v3727 = vpop.f32.mrf.mxu0
        %v3728 = vadd.f32 %v3639, %v3727
        %v3729 = vpop.f32.mrf.mxu0
        %v3730 = vadd.f32 %v3641, %v3729
        %3731 = vmatmul.bf16.gmra.mxu0 %v3497
        %v3732 = vpop.f32.mrf.mxu0
        %v3733 = vadd.f32 %v3644, %v3732
        %v3734 = vpop.f32.mrf.mxu0
        %v3735 = vadd.f32 %v3646, %v3734
        %3736 = vmatmul.bf16.gmra.mxu0 %v3501
        %v3737 = vpop.f32.mrf.mxu0
        %v3738 = vadd.f32 %v3649, %v3737
        %v3739 = vpop.f32.mrf.mxu0
        %v3740 = vadd.f32 %v3651, %v3739
        %3741 = vmatmul.bf16.gmra.mxu0 %v3505
        %v3742 = vpop.f32.mrf.mxu0
        %v3743 = vadd.f32 %v3654, %v3742
        %v3744 = vpop.f32.mrf.mxu0
        %v3745 = vadd.f32 %v3656, %v3744
        %3746 = vmatmul.bf16.gmra.mxu0 %v3509
        %v3747 = vpop.f32.mrf.mxu0
        %v3748 = vadd.f32 %v3659, %v3747
        %v3749 = vpop.f32.mrf.mxu0
        %v3750 = vadd.f32 %v3661, %v3749
        %3751 = vmatmul.bf16.gmra.mxu0 %v3513
        %v3752 = vpop.f32.mrf.mxu0
        %v3753 = vadd.f32 %v3664, %v3752
        %v3754 = vpop.f32.mrf.mxu0
        %v3755 = vadd.f32 %v3666, %v3754
        %3756 = vmatmul.bf16.gmra.mxu0 %v3517
        %v3757 = vpop.f32.mrf.mxu0
        %v3758 = vadd.f32 %v3669, %v3757
        %v3759 = vpop.f32.mrf.mxu0
        %v3760 = vadd.f32 %v3671, %v3759
        %3761 = vdwg.mxu0
        %3762 = vmatpush.bf16.msra.mxu0 %v2990
        %3763 = vmatpush.bf16.msra.mxu0 %v2988
        %3764 = vmatpush.bf16.msra.mxu0 %v2986
        %3765 = vmatpush.bf16.msra.mxu0 %v2984
        %3766 = vmatpush.bf16.msra.mxu0 %v2982
        %3767 = vmatpush.bf16.msra.mxu0 %v2980
        %3768 = vmatpush.bf16.msra.mxu0 %v2978
        %3769 = vmatpush.bf16.msra.mxu0 %v2976
        %3770 = vmatmul.bf16.gmra.mxu0 %v3458
        %v3771 = vpop.f32.mrf.mxu0
        %v3772 = vadd.f32 %v3683, %v3771
        %v3773 = vpop.f32.mrf.mxu0
        %v3774 = vadd.f32 %v3685, %v3773
        %3775 = vmatmul.bf16.gmra.mxu0 %v3462
        %v3776 = vpop.f32.mrf.mxu0
        %v3777 = vadd.f32 %v3688, %v3776
        %v3778 = vpop.f32.mrf.mxu0
        %v3779 = vadd.f32 %v3690, %v3778
        %3780 = vmatmul.bf16.gmra.mxu0 %v3466
        %v3781 = vpop.f32.mrf.mxu0
        %v3782 = vadd.f32 %v3693, %v3781
        %v3783 = vpop.f32.mrf.mxu0
        %v3784 = vadd.f32 %v3695, %v3783
        %3785 = vmatmul.bf16.gmra.mxu0 %v3470
        %v3786 = vpop.f32.mrf.mxu0
        %v3787 = vadd.f32 %v3698, %v3786
        %v3788 = vpop.f32.mrf.mxu0
        %v3789 = vadd.f32 %v3700, %v3788
        %3790 = vmatmul.bf16.gmra.mxu0 %v3474
        %v3791 = vpop.f32.mrf.mxu0
        %v3792 = vadd.f32 %v3703, %v3791
        %v3793 = vpop.f32.mrf.mxu0
        %v3794 = vadd.f32 %v3705, %v3793
        %3795 = vmatmul.bf16.gmra.mxu0 %v3478
        %v3796 = vpop.f32.mrf.mxu0
        %v3797 = vadd.f32 %v3708, %v3796
        %v3798 = vpop.f32.mrf.mxu0
        %v3799 = vadd.f32 %v3710, %v3798
        %3800 = vmatmul.bf16.gmra.mxu0 %v3482
        %v3801 = vpop.f32.mrf.mxu0
        %v3802 = vadd.f32 %v3713, %v3801
        %v3803 = vpop.f32.mrf.mxu0
        %v3804 = vadd.f32 %v3715, %v3803
        %3805 = vmatmul.bf16.gmra.mxu0 %v3486
        %v3806 = vpop.f32.mrf.mxu0
        %v3807 = vadd.f32 %v3718, %v3806
        %v3808 = vpop.f32.mrf.mxu0
        %v3809 = vadd.f32 %v3720, %v3808
        %3810 = vmatmul.bf16.gmra.mxu0 %v3490
        %v3811 = vpop.f32.mrf.mxu0
        %v3812 = vadd.f32 %v3723, %v3811
        %v3813 = vpop.f32.mrf.mxu0
        %v3814 = vadd.f32 %v3725, %v3813
        %3815 = vmatmul.bf16.gmra.mxu0 %v3494
        %v3816 = vpop.f32.mrf.mxu0
        %v3817 = vadd.f32 %v3728, %v3816
        %v3818 = vpop.f32.mrf.mxu0
        %v3819 = vadd.f32 %v3730, %v3818
        %3820 = vmatmul.bf16.gmra.mxu0 %v3498
        %v3821 = vpop.f32.mrf.mxu0
        %v3822 = vadd.f32 %v3733, %v3821
        %v3823 = vpop.f32.mrf.mxu0
        %v3824 = vadd.f32 %v3735, %v3823
        %3825 = vmatmul.bf16.gmra.mxu0 %v3502
        %v3826 = vpop.f32.mrf.mxu0
        %v3827 = vadd.f32 %v3738, %v3826
        %v3828 = vpop.f32.mrf.mxu0
        %v3829 = vadd.f32 %v3740, %v3828
        %3830 = vmatmul.bf16.gmra.mxu0 %v3506
        %v3831 = vpop.f32.mrf.mxu0
        %v3832 = vadd.f32 %v3743, %v3831
        %v3833 = vpop.f32.mrf.mxu0
        %v3834 = vadd.f32 %v3745, %v3833
        %3835 = vmatmul.bf16.gmra.mxu0 %v3510
        %v3836 = vpop.f32.mrf.mxu0
        %v3837 = vadd.f32 %v3748, %v3836
        %v3838 = vpop.f32.mrf.mxu0
        %v3839 = vadd.f32 %v3750, %v3838
        %3840 = vmatmul.bf16.gmra.mxu0 %v3514
        %v3841 = vpop.f32.mrf.mxu0
        %v3842 = vadd.f32 %v3753, %v3841
        %v3843 = vpop.f32.mrf.mxu0
        %v3844 = vadd.f32 %v3755, %v3843
        %3845 = vmatmul.bf16.gmra.mxu0 %v3518
        %v3846 = vpop.f32.mrf.mxu0
        %v3847 = vadd.f32 %v3758, %v3846
        %v3848 = vpop.f32.mrf.mxu0
        %v3849 = vadd.f32 %v3760, %v3848
        %3850 = vdwg.mxu0
        %3851 = vmatpush.bf16.msra.mxu0 %v3006
        %3852 = vmatpush.bf16.msra.mxu0 %v3004
        %3853 = vmatpush.bf16.msra.mxu0 %v3002
        %3854 = vmatpush.bf16.msra.mxu0 %v3000
        %3855 = vmatpush.bf16.msra.mxu0 %v2998
        %3856 = vmatpush.bf16.msra.mxu0 %v2996
        %3857 = vmatpush.bf16.msra.mxu0 %v2994
        %3858 = vmatpush.bf16.msra.mxu0 %v2992
        %3859 = vmatmul.bf16.gmra.mxu0 %v3459
        %v3860 = vpop.f32.mrf.mxu0
        %v3861 = vadd.f32 %v3772, %v3860
        %v3862 = vpop.f32.mrf.mxu0
        %v3863 = vadd.f32 %v3774, %v3862
        %3864 = vmatmul.bf16.gmra.mxu0 %v3463
        %v3865 = vpop.f32.mrf.mxu0
        %v3866 = vadd.f32 %v3777, %v3865
        %v3867 = vpop.f32.mrf.mxu0
        %v3868 = vadd.f32 %v3779, %v3867
        %3869 = vmatmul.bf16.gmra.mxu0 %v3467
        %v3870 = vpop.f32.mrf.mxu0
        %v3871 = vadd.f32 %v3782, %v3870
        %v3872 = vpop.f32.mrf.mxu0
        %v3873 = vadd.f32 %v3784, %v3872
        %3874 = vmatmul.bf16.gmra.mxu0 %v3471
        %v3875 = vpop.f32.mrf.mxu0
        %v3876 = vadd.f32 %v3787, %v3875
        %v3877 = vpop.f32.mrf.mxu0
        %v3878 = vadd.f32 %v3789, %v3877
        %3879 = vmatmul.bf16.gmra.mxu0 %v3475
        %v3880 = vpop.f32.mrf.mxu0
        %v3881 = vadd.f32 %v3792, %v3880
        %v3882 = vpop.f32.mrf.mxu0
        %v3883 = vadd.f32 %v3794, %v3882
        %3884 = vmatmul.bf16.gmra.mxu0 %v3479
        %v3885 = vpop.f32.mrf.mxu0
        %v3886 = vadd.f32 %v3797, %v3885
        %v3887 = vpop.f32.mrf.mxu0
        %v3888 = vadd.f32 %v3799, %v3887
        %3889 = vmatmul.bf16.gmra.mxu0 %v3483
        %v3890 = vpop.f32.mrf.mxu0
        %v3891 = vadd.f32 %v3802, %v3890
        %v3892 = vpop.f32.mrf.mxu0
        %v3893 = vadd.f32 %v3804, %v3892
        %3894 = vmatmul.bf16.gmra.mxu0 %v3487
        %v3895 = vpop.f32.mrf.mxu0
        %v3896 = vadd.f32 %v3807, %v3895
        %v3897 = vpop.f32.mrf.mxu0
        %v3898 = vadd.f32 %v3809, %v3897
        %3899 = vmatmul.bf16.gmra.mxu0 %v3491
        %v3900 = vpop.f32.mrf.mxu0
        %v3901 = vadd.f32 %v3812, %v3900
        %v3902 = vpop.f32.mrf.mxu0
        %v3903 = vadd.f32 %v3814, %v3902
        %3904 = vmatmul.bf16.gmra.mxu0 %v3495
        %v3905 = vpop.f32.mrf.mxu0
        %v3906 = vadd.f32 %v3817, %v3905
        %v3907 = vpop.f32.mrf.mxu0
        %v3908 = vadd.f32 %v3819, %v3907
        %3909 = vmatmul.bf16.gmra.mxu0 %v3499
        %v3910 = vpop.f32.mrf.mxu0
        %v3911 = vadd.f32 %v3822, %v3910
        %v3912 = vpop.f32.mrf.mxu0
        %v3913 = vadd.f32 %v3824, %v3912
        %3914 = vmatmul.bf16.gmra.mxu0 %v3503
        %v3915 = vpop.f32.mrf.mxu0
        %v3916 = vadd.f32 %v3827, %v3915
        %v3917 = vpop.f32.mrf.mxu0
        %v3918 = vadd.f32 %v3829, %v3917
        %3919 = vmatmul.bf16.gmra.mxu0 %v3507
        %v3920 = vpop.f32.mrf.mxu0
        %v3921 = vadd.f32 %v3832, %v3920
        %v3922 = vpop.f32.mrf.mxu0
        %v3923 = vadd.f32 %v3834, %v3922
        %3924 = vmatmul.bf16.gmra.mxu0 %v3511
        %v3925 = vpop.f32.mrf.mxu0
        %v3926 = vadd.f32 %v3837, %v3925
        %v3927 = vpop.f32.mrf.mxu0
        %v3928 = vadd.f32 %v3839, %v3927
        %3929 = vmatmul.bf16.gmra.mxu0 %v3515
        %v3930 = vpop.f32.mrf.mxu0
        %v3931 = vadd.f32 %v3842, %v3930
        %v3932 = vpop.f32.mrf.mxu0
        %v3933 = vadd.f32 %v3844, %v3932
        %3934 = vmatmul.bf16.gmra.mxu0 %v3519
        %v3935 = vpop.f32.mrf.mxu0
        %v3936 = vadd.f32 %v3847, %v3935
        %v3937 = vpop.f32.mrf.mxu0
        %v3938 = vadd.f32 %v3849, %v3937
        %3939 = vdwg.mxu0
        %3940 = vmatpush.bf16.msra.mxu0 %v2959
        %3941 = vmatpush.bf16.msra.mxu0 %v2957
        %3942 = vmatpush.bf16.msra.mxu0 %v2955
        %3943 = vmatpush.bf16.msra.mxu0 %v2953
        %3944 = vmatpush.bf16.msra.mxu0 %v2951
        %3945 = vmatpush.bf16.msra.mxu0 %v2949
        %3946 = vmatpush.bf16.msra.mxu0 %v2947
        %3947 = vmatpush.bf16.msra.mxu0 %v2945
        %3948 = vmatmul.bf16.gmra.mxu0 %v3456
        %v3949 = vpop.f32.mrf.mxu0
        %v3950 = vadd.f32 %v3107, %v3949
        %v3951 = vpop.f32.mrf.mxu0
        %v3952 = vadd.f32 %v3112, %v3951
        %3953 = vmatmul.bf16.gmra.mxu0 %v3460
        %v3954 = vpop.f32.mrf.mxu0
        %v3955 = vadd.f32 %v3117, %v3954
        %v3956 = vpop.f32.mrf.mxu0
        %v3957 = vadd.f32 %v3122, %v3956
        %3958 = vmatmul.bf16.gmra.mxu0 %v3464
        %v3959 = vpop.f32.mrf.mxu0
        %v3960 = vadd.f32 %v3127, %v3959
        %v3961 = vpop.f32.mrf.mxu0
        %v3962 = vadd.f32 %v3132, %v3961
        %3963 = vmatmul.bf16.gmra.mxu0 %v3468
        %v3964 = vpop.f32.mrf.mxu0
        %v3965 = vadd.f32 %v3137, %v3964
        %v3966 = vpop.f32.mrf.mxu0
        %v3967 = vadd.f32 %v3142, %v3966
        %3968 = vmatmul.bf16.gmra.mxu0 %v3472
        %v3969 = vpop.f32.mrf.mxu0
        %v3970 = vadd.f32 %v3147, %v3969
        %v3971 = vpop.f32.mrf.mxu0
        %v3972 = vadd.f32 %v3152, %v3971
        %3973 = vmatmul.bf16.gmra.mxu0 %v3476
        %v3974 = vpop.f32.mrf.mxu0
        %v3975 = vadd.f32 %v3157, %v3974
        %v3976 = vpop.f32.mrf.mxu0
        %v3977 = vadd.f32 %v3162, %v3976
        %3978 = vmatmul.bf16.gmra.mxu0 %v3480
        %v3979 = vpop.f32.mrf.mxu0
        %v3980 = vadd.f32 %v3167, %v3979
        %v3981 = vpop.f32.mrf.mxu0
        %v3982 = vadd.f32 %v3172, %v3981
        %3983 = vmatmul.bf16.gmra.mxu0 %v3484
        %v3984 = vpop.f32.mrf.mxu0
        %v3985 = vadd.f32 %v3177, %v3984
        %v3986 = vpop.f32.mrf.mxu0
        %v3987 = vadd.f32 %v3182, %v3986
        %3988 = vmatmul.bf16.gmra.mxu0 %v3488
        %v3989 = vpop.f32.mrf.mxu0
        %v3990 = vadd.f32 %v3187, %v3989
        %v3991 = vpop.f32.mrf.mxu0
        %v3992 = vadd.f32 %v3192, %v3991
        %3993 = vmatmul.bf16.gmra.mxu0 %v3492
        %v3994 = vpop.f32.mrf.mxu0
        %v3995 = vadd.f32 %v3197, %v3994
        %v3996 = vpop.f32.mrf.mxu0
        %v3997 = vadd.f32 %v3202, %v3996
        %3998 = vmatmul.bf16.gmra.mxu0 %v3496
        %v3999 = vpop.f32.mrf.mxu0
        %v4000 = vadd.f32 %v3207, %v3999
        %v4001 = vpop.f32.mrf.mxu0
        %v4002 = vadd.f32 %v3212, %v4001
        %4003 = vmatmul.bf16.gmra.mxu0 %v3500
        %v4004 = vpop.f32.mrf.mxu0
        %v4005 = vadd.f32 %v3217, %v4004
        %v4006 = vpop.f32.mrf.mxu0
        %v4007 = vadd.f32 %v3222, %v4006
        %4008 = vmatmul.bf16.gmra.mxu0 %v3504
        %v4009 = vpop.f32.mrf.mxu0
        %v4010 = vadd.f32 %v3227, %v4009
        %v4011 = vpop.f32.mrf.mxu0
        %v4012 = vadd.f32 %v3232, %v4011
        %4013 = vmatmul.bf16.gmra.mxu0 %v3508
        %v4014 = vpop.f32.mrf.mxu0
        %v4015 = vadd.f32 %v3237, %v4014
        %v4016 = vpop.f32.mrf.mxu0
        %v4017 = vadd.f32 %v3242, %v4016
        %4018 = vmatmul.bf16.gmra.mxu0 %v3512
        %v4019 = vpop.f32.mrf.mxu0
        %v4020 = vadd.f32 %v3247, %v4019
        %v4021 = vpop.f32.mrf.mxu0
        %v4022 = vadd.f32 %v3252, %v4021
        %4023 = vmatmul.bf16.gmra.mxu0 %v3516
        %v4024 = vpop.f32.mrf.mxu0
        %v4025 = vadd.f32 %v3257, %v4024
        %v4026 = vpop.f32.mrf.mxu0
        %v4027 = vadd.f32 %v3262, %v4026
        %4028 = vdwg.mxu0
        %4029 = vmatpush.bf16.msra.mxu0 %v2975
        %4030 = vmatpush.bf16.msra.mxu0 %v2973
        %4031 = vmatpush.bf16.msra.mxu0 %v2971
        %4032 = vmatpush.bf16.msra.mxu0 %v2969
        %4033 = vmatpush.bf16.msra.mxu0 %v2967
        %4034 = vmatpush.bf16.msra.mxu0 %v2965
        %4035 = vmatpush.bf16.msra.mxu0 %v2963
        %4036 = vmatpush.bf16.msra.mxu0 %v2961
        %4037 = vmatmul.bf16.gmra.mxu0 %v3457
        %v4038 = vpop.f32.mrf.mxu0
        %v4039 = vadd.f32 %v3950, %v4038
        %v4040 = vpop.f32.mrf.mxu0
        %v4041 = vadd.f32 %v3952, %v4040
        %4042 = vmatmul.bf16.gmra.mxu0 %v3461
        %v4043 = vpop.f32.mrf.mxu0
        %v4044 = vadd.f32 %v3955, %v4043
        %v4045 = vpop.f32.mrf.mxu0
        %v4046 = vadd.f32 %v3957, %v4045
        %4047 = vmatmul.bf16.gmra.mxu0 %v3465
        %v4048 = vpop.f32.mrf.mxu0
        %v4049 = vadd.f32 %v3960, %v4048
        %v4050 = vpop.f32.mrf.mxu0
        %v4051 = vadd.f32 %v3962, %v4050
        %4052 = vmatmul.bf16.gmra.mxu0 %v3469
        %v4053 = vpop.f32.mrf.mxu0
        %v4054 = vadd.f32 %v3965, %v4053
        %v4055 = vpop.f32.mrf.mxu0
        %v4056 = vadd.f32 %v3967, %v4055
        %4057 = vmatmul.bf16.gmra.mxu0 %v3473
        %v4058 = vpop.f32.mrf.mxu0
        %v4059 = vadd.f32 %v3970, %v4058
        %v4060 = vpop.f32.mrf.mxu0
        %v4061 = vadd.f32 %v3972, %v4060
        %4062 = vmatmul.bf16.gmra.mxu0 %v3477
        %v4063 = vpop.f32.mrf.mxu0
        %v4064 = vadd.f32 %v3975, %v4063
        %v4065 = vpop.f32.mrf.mxu0
        %v4066 = vadd.f32 %v3977, %v4065
        %4067 = vmatmul.bf16.gmra.mxu0 %v3481
        %v4068 = vpop.f32.mrf.mxu0
        %v4069 = vadd.f32 %v3980, %v4068
        %v4070 = vpop.f32.mrf.mxu0
        %v4071 = vadd.f32 %v3982, %v4070
        %4072 = vmatmul.bf16.gmra.mxu0 %v3485
        %v4073 = vpop.f32.mrf.mxu0
        %v4074 = vadd.f32 %v3985, %v4073
        %v4075 = vpop.f32.mrf.mxu0
        %v4076 = vadd.f32 %v3987, %v4075
        %4077 = vmatmul.bf16.gmra.mxu0 %v3489
        %v4078 = vpop.f32.mrf.mxu0
        %v4079 = vadd.f32 %v3990, %v4078
        %v4080 = vpop.f32.mrf.mxu0
        %v4081 = vadd.f32 %v3992, %v4080
        %4082 = vmatmul.bf16.gmra.mxu0 %v3493
        %v4083 = vpop.f32.mrf.mxu0
        %v4084 = vadd.f32 %v3995, %v4083
        %v4085 = vpop.f32.mrf.mxu0
        %v4086 = vadd.f32 %v3997, %v4085
        %4087 = vmatmul.bf16.gmra.mxu0 %v3497
        %v4088 = vpop.f32.mrf.mxu0
        %v4089 = vadd.f32 %v4000, %v4088
        %v4090 = vpop.f32.mrf.mxu0
        %v4091 = vadd.f32 %v4002, %v4090
        %4092 = vmatmul.bf16.gmra.mxu0 %v3501
        %v4093 = vpop.f32.mrf.mxu0
        %v4094 = vadd.f32 %v4005, %v4093
        %v4095 = vpop.f32.mrf.mxu0
        %v4096 = vadd.f32 %v4007, %v4095
        %4097 = vmatmul.bf16.gmra.mxu0 %v3505
        %v4098 = vpop.f32.mrf.mxu0
        %v4099 = vadd.f32 %v4010, %v4098
        %v4100 = vpop.f32.mrf.mxu0
        %v4101 = vadd.f32 %v4012, %v4100
        %4102 = vmatmul.bf16.gmra.mxu0 %v3509
        %v4103 = vpop.f32.mrf.mxu0
        %v4104 = vadd.f32 %v4015, %v4103
        %v4105 = vpop.f32.mrf.mxu0
        %v4106 = vadd.f32 %v4017, %v4105
        %4107 = vmatmul.bf16.gmra.mxu0 %v3513
        %v4108 = vpop.f32.mrf.mxu0
        %v4109 = vadd.f32 %v4020, %v4108
        %v4110 = vpop.f32.mrf.mxu0
        %v4111 = vadd.f32 %v4022, %v4110
        %4112 = vmatmul.bf16.gmra.mxu0 %v3517
        %v4113 = vpop.f32.mrf.mxu0
        %v4114 = vadd.f32 %v4025, %v4113
        %v4115 = vpop.f32.mrf.mxu0
        %v4116 = vadd.f32 %v4027, %v4115
        %4117 = vdwg.mxu0
        %4118 = vmatpush.bf16.msra.mxu0 %v2991
        %4119 = vmatpush.bf16.msra.mxu0 %v2989
        %4120 = vmatpush.bf16.msra.mxu0 %v2987
        %4121 = vmatpush.bf16.msra.mxu0 %v2985
        %4122 = vmatpush.bf16.msra.mxu0 %v2983
        %4123 = vmatpush.bf16.msra.mxu0 %v2981
        %4124 = vmatpush.bf16.msra.mxu0 %v2979
        %4125 = vmatpush.bf16.msra.mxu0 %v2977
        %4126 = vmatmul.bf16.gmra.mxu0 %v3458
        %v4127 = vpop.f32.mrf.mxu0
        %v4128 = vadd.f32 %v4039, %v4127
        %v4129 = vpop.f32.mrf.mxu0
        %v4130 = vadd.f32 %v4041, %v4129
        %4131 = vmatmul.bf16.gmra.mxu0 %v3462
        %v4132 = vpop.f32.mrf.mxu0
        %v4133 = vadd.f32 %v4044, %v4132
        %v4134 = vpop.f32.mrf.mxu0
        %v4135 = vadd.f32 %v4046, %v4134
        %4136 = vmatmul.bf16.gmra.mxu0 %v3466
        %v4137 = vpop.f32.mrf.mxu0
        %v4138 = vadd.f32 %v4049, %v4137
        %v4139 = vpop.f32.mrf.mxu0
        %v4140 = vadd.f32 %v4051, %v4139
        %4141 = vmatmul.bf16.gmra.mxu0 %v3470
        %v4142 = vpop.f32.mrf.mxu0
        %v4143 = vadd.f32 %v4054, %v4142
        %v4144 = vpop.f32.mrf.mxu0
        %v4145 = vadd.f32 %v4056, %v4144
        %4146 = vmatmul.bf16.gmra.mxu0 %v3474
        %v4147 = vpop.f32.mrf.mxu0
        %v4148 = vadd.f32 %v4059, %v4147
        %v4149 = vpop.f32.mrf.mxu0
        %v4150 = vadd.f32 %v4061, %v4149
        %4151 = vmatmul.bf16.gmra.mxu0 %v3478
        %v4152 = vpop.f32.mrf.mxu0
        %v4153 = vadd.f32 %v4064, %v4152
        %v4154 = vpop.f32.mrf.mxu0
        %v4155 = vadd.f32 %v4066, %v4154
        %4156 = vmatmul.bf16.gmra.mxu0 %v3482
        %v4157 = vpop.f32.mrf.mxu0
        %v4158 = vadd.f32 %v4069, %v4157
        %v4159 = vpop.f32.mrf.mxu0
        %v4160 = vadd.f32 %v4071, %v4159
        %4161 = vmatmul.bf16.gmra.mxu0 %v3486
        %v4162 = vpop.f32.mrf.mxu0
        %v4163 = vadd.f32 %v4074, %v4162
        %v4164 = vpop.f32.mrf.mxu0
        %v4165 = vadd.f32 %v4076, %v4164
        %4166 = vmatmul.bf16.gmra.mxu0 %v3490
        %v4167 = vpop.f32.mrf.mxu0
        %v4168 = vadd.f32 %v4079, %v4167
        %v4169 = vpop.f32.mrf.mxu0
        %v4170 = vadd.f32 %v4081, %v4169
        %4171 = vmatmul.bf16.gmra.mxu0 %v3494
        %v4172 = vpop.f32.mrf.mxu0
        %v4173 = vadd.f32 %v4084, %v4172
        %v4174 = vpop.f32.mrf.mxu0
        %v4175 = vadd.f32 %v4086, %v4174
        %4176 = vmatmul.bf16.gmra.mxu0 %v3498
        %v4177 = vpop.f32.mrf.mxu0
        %v4178 = vadd.f32 %v4089, %v4177
        %v4179 = vpop.f32.mrf.mxu0
        %v4180 = vadd.f32 %v4091, %v4179
        %4181 = vmatmul.bf16.gmra.mxu0 %v3502
        %v4182 = vpop.f32.mrf.mxu0
        %v4183 = vadd.f32 %v4094, %v4182
        %v4184 = vpop.f32.mrf.mxu0
        %v4185 = vadd.f32 %v4096, %v4184
        %4186 = vmatmul.bf16.gmra.mxu0 %v3506
        %v4187 = vpop.f32.mrf.mxu0
        %v4188 = vadd.f32 %v4099, %v4187
        %v4189 = vpop.f32.mrf.mxu0
        %v4190 = vadd.f32 %v4101, %v4189
        %4191 = vmatmul.bf16.gmra.mxu0 %v3510
        %v4192 = vpop.f32.mrf.mxu0
        %v4193 = vadd.f32 %v4104, %v4192
        %v4194 = vpop.f32.mrf.mxu0
        %v4195 = vadd.f32 %v4106, %v4194
        %4196 = vmatmul.bf16.gmra.mxu0 %v3514
        %v4197 = vpop.f32.mrf.mxu0
        %v4198 = vadd.f32 %v4109, %v4197
        %v4199 = vpop.f32.mrf.mxu0
        %v4200 = vadd.f32 %v4111, %v4199
        %4201 = vmatmul.bf16.gmra.mxu0 %v3518
        %v4202 = vpop.f32.mrf.mxu0
        %v4203 = vadd.f32 %v4114, %v4202
        %v4204 = vpop.f32.mrf.mxu0
        %v4205 = vadd.f32 %v4116, %v4204
        %4206 = vdwg.mxu0
        %4207 = vmatpush.bf16.msra.mxu0 %v3007
        %4208 = vmatpush.bf16.msra.mxu0 %v3005
        %4209 = vmatpush.bf16.msra.mxu0 %v3003
        %4210 = vmatpush.bf16.msra.mxu0 %v3001
        %4211 = vmatpush.bf16.msra.mxu0 %v2999
        %4212 = vmatpush.bf16.msra.mxu0 %v2997
        %4213 = vmatpush.bf16.msra.mxu0 %v2995
        %4214 = vmatpush.bf16.msra.mxu0 %v2993
        %4215 = vmatmul.bf16.gmra.mxu0 %v3459
        %v4216 = vpop.f32.mrf.mxu0
        %v4217 = vadd.f32 %v4128, %v4216
        %v4218 = vpop.f32.mrf.mxu0
        %v4219 = vadd.f32 %v4130, %v4218
        %4220 = vmatmul.bf16.gmra.mxu0 %v3463
        %v4221 = vpop.f32.mrf.mxu0
        %v4222 = vadd.f32 %v4133, %v4221
        %v4223 = vpop.f32.mrf.mxu0
        %v4224 = vadd.f32 %v4135, %v4223
        %4225 = vmatmul.bf16.gmra.mxu0 %v3467
        %v4226 = vpop.f32.mrf.mxu0
        %v4227 = vadd.f32 %v4138, %v4226
        %v4228 = vpop.f32.mrf.mxu0
        %v4229 = vadd.f32 %v4140, %v4228
        %4230 = vmatmul.bf16.gmra.mxu0 %v3471
        %v4231 = vpop.f32.mrf.mxu0
        %v4232 = vadd.f32 %v4143, %v4231
        %v4233 = vpop.f32.mrf.mxu0
        %v4234 = vadd.f32 %v4145, %v4233
        %4235 = vmatmul.bf16.gmra.mxu0 %v3475
        %v4236 = vpop.f32.mrf.mxu0
        %v4237 = vadd.f32 %v4148, %v4236
        %v4238 = vpop.f32.mrf.mxu0
        %v4239 = vadd.f32 %v4150, %v4238
        %4240 = vmatmul.bf16.gmra.mxu0 %v3479
        %v4241 = vpop.f32.mrf.mxu0
        %v4242 = vadd.f32 %v4153, %v4241
        %v4243 = vpop.f32.mrf.mxu0
        %v4244 = vadd.f32 %v4155, %v4243
        %4245 = vmatmul.bf16.gmra.mxu0 %v3483
        %v4246 = vpop.f32.mrf.mxu0
        %v4247 = vadd.f32 %v4158, %v4246
        %v4248 = vpop.f32.mrf.mxu0
        %v4249 = vadd.f32 %v4160, %v4248
        %4250 = vmatmul.bf16.gmra.mxu0 %v3487
        %v4251 = vpop.f32.mrf.mxu0
        %v4252 = vadd.f32 %v4163, %v4251
        %v4253 = vpop.f32.mrf.mxu0
        %v4254 = vadd.f32 %v4165, %v4253
        %4255 = vmatmul.bf16.gmra.mxu0 %v3491
        %v4256 = vpop.f32.mrf.mxu0
        %v4257 = vadd.f32 %v4168, %v4256
        %v4258 = vpop.f32.mrf.mxu0
        %v4259 = vadd.f32 %v4170, %v4258
        %4260 = vmatmul.bf16.gmra.mxu0 %v3495
        %v4261 = vpop.f32.mrf.mxu0
        %v4262 = vadd.f32 %v4173, %v4261
        %v4263 = vpop.f32.mrf.mxu0
        %v4264 = vadd.f32 %v4175, %v4263
        %4265 = vmatmul.bf16.gmra.mxu0 %v3499
        %v4266 = vpop.f32.mrf.mxu0
        %v4267 = vadd.f32 %v4178, %v4266
        %v4268 = vpop.f32.mrf.mxu0
        %v4269 = vadd.f32 %v4180, %v4268
        %4270 = vmatmul.bf16.gmra.mxu0 %v3503
        %v4271 = vpop.f32.mrf.mxu0
        %v4272 = vadd.f32 %v4183, %v4271
        %v4273 = vpop.f32.mrf.mxu0
        %v4274 = vadd.f32 %v4185, %v4273
        %4275 = vmatmul.bf16.gmra.mxu0 %v3507
        %v4276 = vpop.f32.mrf.mxu0
        %v4277 = vadd.f32 %v4188, %v4276
        %v4278 = vpop.f32.mrf.mxu0
        %v4279 = vadd.f32 %v4190, %v4278
        %4280 = vmatmul.bf16.gmra.mxu0 %v3511
        %v4281 = vpop.f32.mrf.mxu0
        %v4282 = vadd.f32 %v4193, %v4281
        %v4283 = vpop.f32.mrf.mxu0
        %v4284 = vadd.f32 %v4195, %v4283
        %4285 = vmatmul.bf16.gmra.mxu0 %v3515
        %v4286 = vpop.f32.mrf.mxu0
        %v4287 = vadd.f32 %v4198, %v4286
        %v4288 = vpop.f32.mrf.mxu0
        %v4289 = vadd.f32 %v4200, %v4288
        %4290 = vmatmul.bf16.gmra.mxu0 %v3519
        %v4291 = vpop.f32.mrf.mxu0
        %v4292 = vadd.f32 %v4203, %v4291
        %v4293 = vpop.f32.mrf.mxu0
        %v4294 = vadd.f32 %v4205, %v4293
        %4295 = vdwg.mxu0
        %v4296 = vmax.f32 %v3861, 0.0
        %v4297 = vmax.f32 %v4217, 0.0
        %v4298 = vmax.f32 %v3863, 0.0
        %v4299 = vmax.f32 %v4219, 0.0
        %v4300 = vmax.f32 %v3866, 0.0
        %v4301 = vmax.f32 %v4222, 0.0
        %v4302 = vmax.f32 %v3868, 0.0
        %v4303 = vmax.f32 %v4224, 0.0
        %v4304 = vmax.f32 %v3871, 0.0
        %v4305 = vmax.f32 %v4227, 0.0
        %v4306 = vmax.f32 %v3873, 0.0
        %v4307 = vmax.f32 %v4229, 0.0
        %v4308 = vmax.f32 %v3876, 0.0
        %v4309 = vmax.f32 %v4232, 0.0
        %v4310 = vmax.f32 %v3878, 0.0
        %v4311 = vmax.f32 %v4234, 0.0
        %v4312 = vmax.f32 %v3881, 0.0
        %v4313 = vmax.f32 %v4237, 0.0
        %v4314 = vmax.f32 %v3883, 0.0
        %v4315 = vmax.f32 %v4239, 0.0
        %v4316 = vmax.f32 %v3886, 0.0
        %v4317 = vmax.f32 %v4242, 0.0
        %v4318 = vmax.f32 %v3888, 0.0
        %v4319 = vmax.f32 %v4244, 0.0
        %v4320 = vmax.f32 %v3891, 0.0
        %v4321 = vmax.f32 %v4247, 0.0
        %v4322 = vmax.f32 %v3893, 0.0
        %v4323 = vmax.f32 %v4249, 0.0
        %v4324 = vmax.f32 %v3896, 0.0
        %v4325 = vmax.f32 %v4252, 0.0
        %v4326 = vmax.f32 %v3898, 0.0
        %v4327 = vmax.f32 %v4254, 0.0
        %v4328 = vmax.f32 %v3901, 0.0
        %v4329 = vmax.f32 %v4257, 0.0
        %v4330 = vmax.f32 %v3903, 0.0
        %v4331 = vmax.f32 %v4259, 0.0
        %v4332 = vmax.f32 %v3906, 0.0
        %v4333 = vmax.f32 %v4262, 0.0
        %v4334 = vmax.f32 %v3908, 0.0
        %v4335 = vmax.f32 %v4264, 0.0
        %v4336 = vmax.f32 %v3911, 0.0
        %v4337 = vmax.f32 %v4267, 0.0
        %v4338 = vmax.f32 %v3913, 0.0
        %v4339 = vmax.f32 %v4269, 0.0
        %v4340 = vmax.f32 %v3916, 0.0
        %v4341 = vmax.f32 %v4272, 0.0
        %v4342 = vmax.f32 %v3918, 0.0
        %v4343 = vmax.f32 %v4274, 0.0
        %v4344 = vmax.f32 %v3921, 0.0
        %v4345 = vmax.f32 %v4277, 0.0
        %v4346 = vmax.f32 %v3923, 0.0
        %v4347 = vmax.f32 %v4279, 0.0
        %v4348 = vmax.f32 %v3926, 0.0
        %v4349 = vmax.f32 %v4282, 0.0
        %v4350 = vmax.f32 %v3928, 0.0
        %v4351 = vmax.f32 %v4284, 0.0
        %v4352 = vmax.f32 %v3931, 0.0
        %v4353 = vmax.f32 %v4287, 0.0
        %v4354 = vmax.f32 %v3933, 0.0
        %v4355 = vmax.f32 %v4289, 0.0
        %v4356 = vmax.f32 %v3936, 0.0
        %v4357 = vmax.f32 %v4292, 0.0
        %v4358 = vmax.f32 %v3938, 0.0
        %v4359 = vmax.f32 %v4294, 0.0
        %v4360 = vpack.c.bf16 %v4298, %v4296
        %v4361 = vpack.c.bf16 %v4299, %v4297
        %v4362 = vpack.c.bf16 %v4302, %v4300
        %v4363 = vpack.c.bf16 %v4303, %v4301
        %v4364 = vpack.c.bf16 %v4306, %v4304
        %v4365 = vpack.c.bf16 %v4307, %v4305
        %v4366 = vpack.c.bf16 %v4310, %v4308
        %v4367 = vpack.c.bf16 %v4311, %v4309
        %v4368 = vpack.c.bf16 %v4314, %v4312
        %v4369 = vpack.c.bf16 %v4315, %v4313
        %v4370 = vpack.c.bf16 %v4318, %v4316
        %v4371 = vpack.c.bf16 %v4319, %v4317
        %v4372 = vpack.c.bf16 %v4322, %v4320
        %v4373 = vpack.c.bf16 %v4323, %v4321
        %v4374 = vpack.c.bf16 %v4326, %v4324
        %v4375 = vpack.c.bf16 %v4327, %v4325
        %v4376 = vpack.c.bf16 %v4330, %v4328
        %v4377 = vpack.c.bf16 %v4331, %v4329
        %v4378 = vpack.c.bf16 %v4334, %v4332
        %v4379 = vpack.c.bf16 %v4335, %v4333
        %v4380 = vpack.c.bf16 %v4338, %v4336
        %v4381 = vpack.c.bf16 %v4339, %v4337
        %v4382 = vpack.c.bf16 %v4342, %v4340
        %v4383 = vpack.c.bf16 %v4343, %v4341
        %v4384 = vpack.c.bf16 %v4346, %v4344
        %v4385 = vpack.c.bf16 %v4347, %v4345
        %v4386 = vpack.c.bf16 %v4350, %v4348
        %v4387 = vpack.c.bf16 %v4351, %v4349
        %v4388 = vpack.c.bf16 %v4354, %v4352
        %v4389 = vpack.c.bf16 %v4355, %v4353
        %v4390 = vpack.c.bf16 %v4358, %v4356
        %v4391 = vpack.c.bf16 %v4359, %v4357
        %v4392 = vld [vmem:[#allocation5 + $0x9a0] sm:$0xff]
        %v4393 = vld [vmem:[#allocation5 + $0x9b0] sm:$0xff]
        %v4394 = vld [vmem:[#allocation5 + $0x9c0] sm:$0xff]
        %v4395 = vld [vmem:[#allocation5 + $0x9d0] sm:$0xff]
        %v4396 = vld [vmem:[#allocation5 + $0x9e0] sm:$0xff]
        %v4397 = vld [vmem:[#allocation5 + $0x9f0] sm:$0xff]
        %v4398 = vld [vmem:[#allocation5 + $0xa00] sm:$0xff]
        %v4399 = vld [vmem:[#allocation5 + $0xa10] sm:$0xff]
        %v4400 = vld [vmem:[#allocation5 + $0xa20] sm:$0xff]
        %v4401 = vld [vmem:[#allocation5 + $0xa30] sm:$0xff]
        %v4402 = vld [vmem:[#allocation5 + $0xa40] sm:$0xff]
        %v4403 = vld [vmem:[#allocation5 + $0xa50] sm:$0xff]
        %v4404 = vld [vmem:[#allocation5 + $0xa60] sm:$0xff]
        %v4405 = vld [vmem:[#allocation5 + $0xa70] sm:$0xff]
        %v4406 = vld [vmem:[#allocation5 + $0xa80] sm:$0xff]
        %v4407 = vld [vmem:[#allocation5 + $0xa90] sm:$0xff]
        %v4408 = vld [vmem:[%s2 + $0x4d0] sm:$0xff]
        %v4409 = vld [vmem:[%s2 + $0x4d8] sm:$0xff]
        %v4410 = vld [vmem:[%s2 + $0x4e0] sm:$0xff]
        %v4411 = vld [vmem:[%s2 + $0x4e8] sm:$0xff]
        %v4412 = vld [vmem:[%s2 + $0x4f0] sm:$0xff]
        %v4413 = vld [vmem:[%s2 + $0x4f8] sm:$0xff]
        %v4414 = vld [vmem:[%s2 + $0x500] sm:$0xff]
        %v4415 = vld [vmem:[%s2 + $0x508] sm:$0xff]
        %v4416 = vld [vmem:[%s2 + $0x510] sm:$0xff]
        %v4417 = vld [vmem:[%s2 + $0x518] sm:$0xff]
        %v4418 = vld [vmem:[%s2 + $0x520] sm:$0xff]
        %v4419 = vld [vmem:[%s2 + $0x528] sm:$0xff]
        %v4420 = vld [vmem:[%s2 + $0x530] sm:$0xff]
        %v4421 = vld [vmem:[%s2 + $0x538] sm:$0xff]
        %v4422 = vld [vmem:[%s2 + $0x540] sm:$0xff]
        %v4423 = vld [vmem:[%s2 + $0x548] sm:$0xff]
        %4425 = vset.pattern.permute.xlu0 0
        %4426 = vperm.xlu0 %4425, %v4408
        %v4427 = vpop.permute.xlu0 %4426
        %4430 = vset.pattern.permute.xlu0 0
        %4431 = vperm.xlu0 %4430, %v4409
        %v4432 = vpop.permute.xlu0 %4431
        %4435 = vset.pattern.permute.xlu0 0
        %4436 = vperm.xlu0 %4435, %v4410
        %v4437 = vpop.permute.xlu0 %4436
        %4440 = vset.pattern.permute.xlu0 0
        %4441 = vperm.xlu0 %4440, %v4411
        %v4442 = vpop.permute.xlu0 %4441
        %4445 = vset.pattern.permute.xlu0 0
        %4446 = vperm.xlu0 %4445, %v4412
        %v4447 = vpop.permute.xlu0 %4446
        %4450 = vset.pattern.permute.xlu0 0
        %4451 = vperm.xlu0 %4450, %v4413
        %v4452 = vpop.permute.xlu0 %4451
        %4455 = vset.pattern.permute.xlu0 0
        %4456 = vperm.xlu0 %4455, %v4414
        %v4457 = vpop.permute.xlu0 %4456
        %4460 = vset.pattern.permute.xlu0 0
        %4461 = vperm.xlu0 %4460, %v4415
        %v4462 = vpop.permute.xlu0 %4461
        %4465 = vset.pattern.permute.xlu0 0
        %4466 = vperm.xlu0 %4465, %v4416
        %v4467 = vpop.permute.xlu0 %4466
        %4470 = vset.pattern.permute.xlu0 0
        %4471 = vperm.xlu0 %4470, %v4417
        %v4472 = vpop.permute.xlu0 %4471
        %4475 = vset.pattern.permute.xlu0 0
        %4476 = vperm.xlu0 %4475, %v4418
        %v4477 = vpop.permute.xlu0 %4476
        %4480 = vset.pattern.permute.xlu0 0
        %4481 = vperm.xlu0 %4480, %v4419
        %v4482 = vpop.permute.xlu0 %4481
        %4485 = vset.pattern.permute.xlu0 0
        %4486 = vperm.xlu0 %4485, %v4420
        %v4487 = vpop.permute.xlu0 %4486
        %4490 = vset.pattern.permute.xlu0 0
        %4491 = vperm.xlu0 %4490, %v4421
        %v4492 = vpop.permute.xlu0 %4491
        %4495 = vset.pattern.permute.xlu0 0
        %4496 = vperm.xlu0 %4495, %v4422
        %v4497 = vpop.permute.xlu0 %4496
        %4500 = vset.pattern.permute.xlu0 0
        %4501 = vperm.xlu0 %4500, %v4423
        %v4502 = vpop.permute.xlu0 %4501
        %v4520 = vunpack.c.l.b16 %v4392
        %v4521 = vunpack.c.h.b16 %v4392
        %v4522 = vunpack.c.l.b16 %v4393
        %v4523 = vunpack.c.h.b16 %v4393
        %v4524 = vunpack.c.l.b16 %v4394
        %v4525 = vunpack.c.h.b16 %v4394
        %v4526 = vunpack.c.l.b16 %v4395
        %v4527 = vunpack.c.h.b16 %v4395
        %v4528 = vunpack.c.l.b16 %v4396
        %v4529 = vunpack.c.h.b16 %v4396
        %v4530 = vunpack.c.l.b16 %v4397
        %v4531 = vunpack.c.h.b16 %v4397
        %v4532 = vunpack.c.l.b16 %v4398
        %v4533 = vunpack.c.h.b16 %v4398
        %v4534 = vunpack.c.l.b16 %v4399
        %v4535 = vunpack.c.h.b16 %v4399
        %v4536 = vunpack.c.l.b16 %v4400
        %v4537 = vunpack.c.h.b16 %v4400
        %v4538 = vunpack.c.l.b16 %v4401
        %v4539 = vunpack.c.h.b16 %v4401
        %v4540 = vunpack.c.l.b16 %v4402
        %v4541 = vunpack.c.h.b16 %v4402
        %v4542 = vunpack.c.l.b16 %v4403
        %v4543 = vunpack.c.h.b16 %v4403
        %v4544 = vunpack.c.l.b16 %v4404
        %v4545 = vunpack.c.h.b16 %v4404
        %v4546 = vunpack.c.l.b16 %v4405
        %v4547 = vunpack.c.h.b16 %v4405
        %v4548 = vunpack.c.l.b16 %v4406
        %v4549 = vunpack.c.h.b16 %v4406
        %v4550 = vunpack.c.l.b16 %v4407
        %v4551 = vunpack.c.h.b16 %v4407
        %v4552 = vpack.c.b16 %v4522, %v4520
        %v4553 = vpack.c.b16 %v4523, %v4521
        %v4554 = vpack.c.b16 %v4526, %v4524
        %v4555 = vpack.c.b16 %v4527, %v4525
        %v4556 = vpack.c.b16 %v4530, %v4528
        %v4557 = vpack.c.b16 %v4531, %v4529
        %v4558 = vpack.c.b16 %v4534, %v4532
        %v4559 = vpack.c.b16 %v4535, %v4533
        %v4560 = vpack.c.b16 %v4538, %v4536
        %v4561 = vpack.c.b16 %v4539, %v4537
        %v4562 = vpack.c.b16 %v4542, %v4540
        %v4563 = vpack.c.b16 %v4543, %v4541
        %v4564 = vpack.c.b16 %v4546, %v4544
        %v4565 = vpack.c.b16 %v4547, %v4545
        %v4566 = vpack.c.b16 %v4550, %v4548
        %v4567 = vpack.c.b16 %v4551, %v4549
        %4584 = vmatpush.bf16.msra.mxu0 %v4374
        %4585 = vmatpush.bf16.msra.mxu0 %v4372
        %4586 = vmatpush.bf16.msra.mxu0 %v4370
        %4587 = vmatpush.bf16.msra.mxu0 %v4368
        %4588 = vmatpush.bf16.msra.mxu0 %v4366
        %4589 = vmatpush.bf16.msra.mxu0 %v4364
        %4590 = vmatpush.bf16.msra.mxu0 %v4362
        %4591 = vmatpush.bf16.msra.mxu0 %v4360
        %4592 = vmatmul.bf16.gmra.mxu0 %v4552
        %v4593 = vpop.f32.mrf.mxu0
        %v4594 = vadd.f32 %v4427, %v4593
        %v4595 = vpop.f32.mrf.mxu0
        %v4596 = vadd.f32 %v4432, %v4595
        %4597 = vmatmul.bf16.gmra.mxu0 %v4554
        %v4598 = vpop.f32.mrf.mxu0
        %v4599 = vadd.f32 %v4437, %v4598
        %v4600 = vpop.f32.mrf.mxu0
        %v4601 = vadd.f32 %v4442, %v4600
        %4602 = vmatmul.bf16.gmra.mxu0 %v4556
        %v4603 = vpop.f32.mrf.mxu0
        %v4604 = vadd.f32 %v4447, %v4603
        %v4605 = vpop.f32.mrf.mxu0
        %v4606 = vadd.f32 %v4452, %v4605
        %4607 = vmatmul.bf16.gmra.mxu0 %v4558
        %v4608 = vpop.f32.mrf.mxu0
        %v4609 = vadd.f32 %v4457, %v4608
        %v4610 = vpop.f32.mrf.mxu0
        %v4611 = vadd.f32 %v4462, %v4610
        %4612 = vmatmul.bf16.gmra.mxu0 %v4560
        %v4613 = vpop.f32.mrf.mxu0
        %v4614 = vadd.f32 %v4467, %v4613
        %v4615 = vpop.f32.mrf.mxu0
        %v4616 = vadd.f32 %v4472, %v4615
        %4617 = vmatmul.bf16.gmra.mxu0 %v4562
        %v4618 = vpop.f32.mrf.mxu0
        %v4619 = vadd.f32 %v4477, %v4618
        %v4620 = vpop.f32.mrf.mxu0
        %v4621 = vadd.f32 %v4482, %v4620
        %4622 = vmatmul.bf16.gmra.mxu0 %v4564
        %v4623 = vpop.f32.mrf.mxu0
        %v4624 = vadd.f32 %v4487, %v4623
        %v4625 = vpop.f32.mrf.mxu0
        %v4626 = vadd.f32 %v4492, %v4625
        %4627 = vmatmul.bf16.gmra.mxu0 %v4566
        %v4628 = vpop.f32.mrf.mxu0
        %v4629 = vadd.f32 %v4497, %v4628
        %v4630 = vpop.f32.mrf.mxu0
        %v4631 = vadd.f32 %v4502, %v4630
        %4632 = vdwg.mxu0
        %4633 = vmatpush.bf16.msra.mxu0 %v4390
        %4634 = vmatpush.bf16.msra.mxu0 %v4388
        %4635 = vmatpush.bf16.msra.mxu0 %v4386
        %4636 = vmatpush.bf16.msra.mxu0 %v4384
        %4637 = vmatpush.bf16.msra.mxu0 %v4382
        %4638 = vmatpush.bf16.msra.mxu0 %v4380
        %4639 = vmatpush.bf16.msra.mxu0 %v4378
        %4640 = vmatpush.bf16.msra.mxu0 %v4376
        %4641 = vmatmul.bf16.gmra.mxu0 %v4553
        %v4642 = vpop.f32.mrf.mxu0
        %v4643 = vadd.f32 %v4594, %v4642
        %v4644 = vpop.f32.mrf.mxu0
        %v4645 = vadd.f32 %v4596, %v4644
        %4646 = vmatmul.bf16.gmra.mxu0 %v4555
        %v4647 = vpop.f32.mrf.mxu0
        %v4648 = vadd.f32 %v4599, %v4647
        %v4649 = vpop.f32.mrf.mxu0
        %v4650 = vadd.f32 %v4601, %v4649
        %4651 = vmatmul.bf16.gmra.mxu0 %v4557
        %v4652 = vpop.f32.mrf.mxu0
        %v4653 = vadd.f32 %v4604, %v4652
        %v4654 = vpop.f32.mrf.mxu0
        %v4655 = vadd.f32 %v4606, %v4654
        %4656 = vmatmul.bf16.gmra.mxu0 %v4559
        %v4657 = vpop.f32.mrf.mxu0
        %v4658 = vadd.f32 %v4609, %v4657
        %v4659 = vpop.f32.mrf.mxu0
        %v4660 = vadd.f32 %v4611, %v4659
        %4661 = vmatmul.bf16.gmra.mxu0 %v4561
        %v4662 = vpop.f32.mrf.mxu0
        %v4663 = vadd.f32 %v4614, %v4662
        %v4664 = vpop.f32.mrf.mxu0
        %v4665 = vadd.f32 %v4616, %v4664
        %4666 = vmatmul.bf16.gmra.mxu0 %v4563
        %v4667 = vpop.f32.mrf.mxu0
        %v4668 = vadd.f32 %v4619, %v4667
        %v4669 = vpop.f32.mrf.mxu0
        %v4670 = vadd.f32 %v4621, %v4669
        %4671 = vmatmul.bf16.gmra.mxu0 %v4565
        %v4672 = vpop.f32.mrf.mxu0
        %v4673 = vadd.f32 %v4624, %v4672
        %v4674 = vpop.f32.mrf.mxu0
        %v4675 = vadd.f32 %v4626, %v4674
        %4676 = vmatmul.bf16.gmra.mxu0 %v4567
        %v4677 = vpop.f32.mrf.mxu0
        %v4678 = vadd.f32 %v4629, %v4677
        %v4679 = vpop.f32.mrf.mxu0
        %v4680 = vadd.f32 %v4631, %v4679
        %4681 = vdwg.mxu0
        %4682 = vmatpush.bf16.msra.mxu0 %v4375
        %4683 = vmatpush.bf16.msra.mxu0 %v4373
        %4684 = vmatpush.bf16.msra.mxu0 %v4371
        %4685 = vmatpush.bf16.msra.mxu0 %v4369
        %4686 = vmatpush.bf16.msra.mxu0 %v4367
        %4687 = vmatpush.bf16.msra.mxu0 %v4365
        %4688 = vmatpush.bf16.msra.mxu0 %v4363
        %4689 = vmatpush.bf16.msra.mxu0 %v4361
        %4690 = vmatmul.bf16.gmra.mxu0 %v4552
        %v4691 = vpop.f32.mrf.mxu0
        %v4692 = vadd.f32 %v4427, %v4691
        %v4693 = vpop.f32.mrf.mxu0
        %v4694 = vadd.f32 %v4432, %v4693
        %4695 = vmatmul.bf16.gmra.mxu0 %v4554
        %v4696 = vpop.f32.mrf.mxu0
        %v4697 = vadd.f32 %v4437, %v4696
        %v4698 = vpop.f32.mrf.mxu0
        %v4699 = vadd.f32 %v4442, %v4698
        %4700 = vmatmul.bf16.gmra.mxu0 %v4556
        %v4701 = vpop.f32.mrf.mxu0
        %v4702 = vadd.f32 %v4447, %v4701
        %v4703 = vpop.f32.mrf.mxu0
        %v4704 = vadd.f32 %v4452, %v4703
        %4705 = vmatmul.bf16.gmra.mxu0 %v4558
        %v4706 = vpop.f32.mrf.mxu0
        %v4707 = vadd.f32 %v4457, %v4706
        %v4708 = vpop.f32.mrf.mxu0
        %v4709 = vadd.f32 %v4462, %v4708
        %4710 = vmatmul.bf16.gmra.mxu0 %v4560
        %v4711 = vpop.f32.mrf.mxu0
        %v4712 = vadd.f32 %v4467, %v4711
        %v4713 = vpop.f32.mrf.mxu0
        %v4714 = vadd.f32 %v4472, %v4713
        %4715 = vmatmul.bf16.gmra.mxu0 %v4562
        %v4716 = vpop.f32.mrf.mxu0
        %v4717 = vadd.f32 %v4477, %v4716
        %v4718 = vpop.f32.mrf.mxu0
        %v4719 = vadd.f32 %v4482, %v4718
        %4720 = vmatmul.bf16.gmra.mxu0 %v4564
        %v4721 = vpop.f32.mrf.mxu0
        %v4722 = vadd.f32 %v4487, %v4721
        %v4723 = vpop.f32.mrf.mxu0
        %v4724 = vadd.f32 %v4492, %v4723
        %4725 = vmatmul.bf16.gmra.mxu0 %v4566
        %v4726 = vpop.f32.mrf.mxu0
        %v4727 = vadd.f32 %v4497, %v4726
        %v4728 = vpop.f32.mrf.mxu0
        %v4729 = vadd.f32 %v4502, %v4728
        %4730 = vdwg.mxu0
        %4731 = vmatpush.bf16.msra.mxu0 %v4391
        %4732 = vmatpush.bf16.msra.mxu0 %v4389
        %4733 = vmatpush.bf16.msra.mxu0 %v4387
        %4734 = vmatpush.bf16.msra.mxu0 %v4385
        %4735 = vmatpush.bf16.msra.mxu0 %v4383
        %4736 = vmatpush.bf16.msra.mxu0 %v4381
        %4737 = vmatpush.bf16.msra.mxu0 %v4379
        %4738 = vmatpush.bf16.msra.mxu0 %v4377
        %4739 = vmatmul.bf16.gmra.mxu0 %v4553
        %v4740 = vpop.f32.mrf.mxu0
        %v4741 = vadd.f32 %v4692, %v4740
        %v4742 = vpop.f32.mrf.mxu0
        %v4743 = vadd.f32 %v4694, %v4742
        %4744 = vmatmul.bf16.gmra.mxu0 %v4555
        %v4745 = vpop.f32.mrf.mxu0
        %v4746 = vadd.f32 %v4697, %v4745
        %v4747 = vpop.f32.mrf.mxu0
        %v4748 = vadd.f32 %v4699, %v4747
        %4749 = vmatmul.bf16.gmra.mxu0 %v4557
        %v4750 = vpop.f32.mrf.mxu0
        %v4751 = vadd.f32 %v4702, %v4750
        %v4752 = vpop.f32.mrf.mxu0
        %v4753 = vadd.f32 %v4704, %v4752
        %4754 = vmatmul.bf16.gmra.mxu0 %v4559
        %v4755 = vpop.f32.mrf.mxu0
        %v4756 = vadd.f32 %v4707, %v4755
        %v4757 = vpop.f32.mrf.mxu0
        %v4758 = vadd.f32 %v4709, %v4757
        %4759 = vmatmul.bf16.gmra.mxu0 %v4561
        %v4760 = vpop.f32.mrf.mxu0
        %v4761 = vadd.f32 %v4712, %v4760
        %v4762 = vpop.f32.mrf.mxu0
        %v4763 = vadd.f32 %v4714, %v4762
        %4764 = vmatmul.bf16.gmra.mxu0 %v4563
        %v4765 = vpop.f32.mrf.mxu0
        %v4766 = vadd.f32 %v4717, %v4765
        %v4767 = vpop.f32.mrf.mxu0
        %v4768 = vadd.f32 %v4719, %v4767
        %4769 = vmatmul.bf16.gmra.mxu0 %v4565
        %v4770 = vpop.f32.mrf.mxu0
        %v4771 = vadd.f32 %v4722, %v4770
        %v4772 = vpop.f32.mrf.mxu0
        %v4773 = vadd.f32 %v4724, %v4772
        %4774 = vmatmul.bf16.gmra.mxu0 %v4567
        %v4775 = vpop.f32.mrf.mxu0
        %v4776 = vadd.f32 %v4727, %v4775
        %v4777 = vpop.f32.mrf.mxu0
        %v4778 = vadd.f32 %v4729, %v4777
        %4779 = vdwg.mxu0
        %v4780 = vmax.f32 %v4643, 0.0
        %v4781 = vmax.f32 %v4741, 0.0
        %v4782 = vmax.f32 %v4645, 0.0
        %v4783 = vmax.f32 %v4743, 0.0
        %v4784 = vmax.f32 %v4648, 0.0
        %v4785 = vmax.f32 %v4746, 0.0
        %v4786 = vmax.f32 %v4650, 0.0
        %v4787 = vmax.f32 %v4748, 0.0
        %v4788 = vmax.f32 %v4653, 0.0
        %v4789 = vmax.f32 %v4751, 0.0
        %v4790 = vmax.f32 %v4655, 0.0
        %v4791 = vmax.f32 %v4753, 0.0
        %v4792 = vmax.f32 %v4658, 0.0
        %v4793 = vmax.f32 %v4756, 0.0
        %v4794 = vmax.f32 %v4660, 0.0
        %v4795 = vmax.f32 %v4758, 0.0
        %v4796 = vmax.f32 %v4663, 0.0
        %v4797 = vmax.f32 %v4761, 0.0
        %v4798 = vmax.f32 %v4665, 0.0
        %v4799 = vmax.f32 %v4763, 0.0
        %v4800 = vmax.f32 %v4668, 0.0
        %v4801 = vmax.f32 %v4766, 0.0
        %v4802 = vmax.f32 %v4670, 0.0
        %v4803 = vmax.f32 %v4768, 0.0
        %v4804 = vmax.f32 %v4673, 0.0
        %v4805 = vmax.f32 %v4771, 0.0
        %v4806 = vmax.f32 %v4675, 0.0
        %v4807 = vmax.f32 %v4773, 0.0
        %v4808 = vmax.f32 %v4678, 0.0
        %v4809 = vmax.f32 %v4776, 0.0
        %v4810 = vmax.f32 %v4680, 0.0
        %v4811 = vmax.f32 %v4778, 0.0
        %v4812 = vpack.c.bf16 %v4782, %v4780
        %v4813 = vpack.c.bf16 %v4783, %v4781
        %v4814 = vpack.c.bf16 %v4786, %v4784
        %v4815 = vpack.c.bf16 %v4787, %v4785
        %v4816 = vpack.c.bf16 %v4790, %v4788
        %v4817 = vpack.c.bf16 %v4791, %v4789
        %v4818 = vpack.c.bf16 %v4794, %v4792
        %v4819 = vpack.c.bf16 %v4795, %v4793
        %v4820 = vpack.c.bf16 %v4798, %v4796
        %v4821 = vpack.c.bf16 %v4799, %v4797
        %v4822 = vpack.c.bf16 %v4802, %v4800
        %v4823 = vpack.c.bf16 %v4803, %v4801
        %v4824 = vpack.c.bf16 %v4806, %v4804
        %v4825 = vpack.c.bf16 %v4807, %v4805
        %v4826 = vpack.c.bf16 %v4810, %v4808
        %v4827 = vpack.c.bf16 %v4811, %v4809
        %v4828 = vld [vmem:[#allocation5 + $0xaa0] sm:$0xf]
        %v4829 = vld [vmem:[#allocation5 + $0xab0] sm:$0xf]
        %v4830 = vld [vmem:[#allocation5 + $0xac0] sm:$0xf]
        %v4831 = vld [vmem:[#allocation5 + $0xad0] sm:$0xf]
        %v4832 = vld [vmem:[#allocation5 + $0xae0] sm:$0xf]
        %v4833 = vld [vmem:[#allocation5 + $0xaf0] sm:$0xf]
        %v4834 = vld [vmem:[#allocation5 + $0xb00] sm:$0xf]
        %v4835 = vld [vmem:[#allocation5 + $0xb10] sm:$0xf]
        %v4836 = vld [vmem:[%s2 + $0x550] sm:$0xff]
        %v4837 = vld [vmem:[%s2 + $0x558] sm:$0xff]
        %v4838 = vld [vmem:[%s2 + $0x560] sm:$0xff]
        %v4839 = vld [vmem:[%s2 + $0x568] sm:$0xff]
        %v4840 = vld [vmem:[%s2 + $0x570] sm:$0xff]
        %v4841 = vld [vmem:[%s2 + $0x578] sm:$0xff]
        %v4842 = vld [vmem:[%s2 + $0x580] sm:$0xff]
        %v4843 = vld [vmem:[%s2 + $0x588] sm:$0xff]
        %4845 = vset.pattern.permute.xlu0 0
        %4846 = vperm.xlu0 %4845, %v4836
        %v4847 = vpop.permute.xlu0 %4846
        %4850 = vset.pattern.permute.xlu0 0
        %4851 = vperm.xlu0 %4850, %v4837
        %v4852 = vpop.permute.xlu0 %4851
        %4855 = vset.pattern.permute.xlu0 0
        %4856 = vperm.xlu0 %4855, %v4838
        %v4857 = vpop.permute.xlu0 %4856
        %4860 = vset.pattern.permute.xlu0 0
        %4861 = vperm.xlu0 %4860, %v4839
        %v4862 = vpop.permute.xlu0 %4861
        %4865 = vset.pattern.permute.xlu0 0
        %4866 = vperm.xlu0 %4865, %v4840
        %v4867 = vpop.permute.xlu0 %4866
        %4870 = vset.pattern.permute.xlu0 0
        %4871 = vperm.xlu0 %4870, %v4841
        %v4872 = vpop.permute.xlu0 %4871
        %4875 = vset.pattern.permute.xlu0 0
        %4876 = vperm.xlu0 %4875, %v4842
        %v4877 = vpop.permute.xlu0 %4876
        %4880 = vset.pattern.permute.xlu0 0
        %4881 = vperm.xlu0 %4880, %v4843
        %v4882 = vpop.permute.xlu0 %4881
        %v4892 = vunpack.c.l.b16 %v4828
        %v4893 = vunpack.c.l.b16 %v4829
        %v4894 = vunpack.c.l.b16 %v4830
        %v4895 = vunpack.c.l.b16 %v4831
        %v4896 = vunpack.c.l.b16 %v4832
        %v4897 = vunpack.c.l.b16 %v4833
        %v4898 = vunpack.c.l.b16 %v4834
        %v4899 = vunpack.c.l.b16 %v4835
        %v4900 = vpack.c.b16 %v4893, %v4892
        %v4901 = vpack.c.b16 %v4895, %v4894
        %v4902 = vpack.c.b16 %v4897, %v4896
        %v4903 = vpack.c.b16 %v4899, %v4898
        %4908 = vmatpush.bf16.msra.mxu0 %v4826
        %4909 = vmatpush.bf16.msra.mxu0 %v4824
        %4910 = vmatpush.bf16.msra.mxu0 %v4822
        %4911 = vmatpush.bf16.msra.mxu0 %v4820
        %4912 = vmatpush.bf16.msra.mxu0 %v4818
        %4913 = vmatpush.bf16.msra.mxu0 %v4816
        %4914 = vmatpush.bf16.msra.mxu0 %v4814
        %4915 = vmatpush.bf16.msra.mxu0 %v4812
        %4916 = vmatmul.bf16.gmra.mxu0 %v4900
        %v4917 = vpop.f32.mrf.mxu0
        %v4918 = vadd.f32 %v4847, %v4917
        %v4919 = vpop.f32.mrf.mxu0
        %v4920 = vadd.f32 %v4852, %v4919
        %4921 = vmatmul.bf16.gmra.mxu0 %v4901
        %v4922 = vpop.f32.mrf.mxu0
        %v4923 = vadd.f32 %v4857, %v4922
        %v4924 = vpop.f32.mrf.mxu0
        %v4925 = vadd.f32 %v4862, %v4924
        %4926 = vmatmul.bf16.gmra.mxu0 %v4902
        %v4927 = vpop.f32.mrf.mxu0
        %v4928 = vadd.f32 %v4867, %v4927
        %v4929 = vpop.f32.mrf.mxu0
        %v4930 = vadd.f32 %v4872, %v4929
        %4931 = vmatmul.bf16.gmra.mxu0 %v4903
        %v4932 = vpop.f32.mrf.mxu0
        %v4933 = vadd.f32 %v4877, %v4932
        %v4934 = vpop.f32.mrf.mxu0
        %v4935 = vadd.f32 %v4882, %v4934
        %4936 = vdwg.mxu0
        %4937 = vmatpush.bf16.msra.mxu0 %v4827
        %4938 = vmatpush.bf16.msra.mxu0 %v4825
        %4939 = vmatpush.bf16.msra.mxu0 %v4823
        %4940 = vmatpush.bf16.msra.mxu0 %v4821
        %4941 = vmatpush.bf16.msra.mxu0 %v4819
        %4942 = vmatpush.bf16.msra.mxu0 %v4817
        %4943 = vmatpush.bf16.msra.mxu0 %v4815
        %4944 = vmatpush.bf16.msra.mxu0 %v4813
        %4945 = vmatmul.bf16.gmra.mxu0 %v4900
        %v4946 = vpop.f32.mrf.mxu0
        %v4947 = vadd.f32 %v4847, %v4946
        %v4948 = vpop.f32.mrf.mxu0
        %v4949 = vadd.f32 %v4852, %v4948
        %4950 = vmatmul.bf16.gmra.mxu0 %v4901
        %v4951 = vpop.f32.mrf.mxu0
        %v4952 = vadd.f32 %v4857, %v4951
        %v4953 = vpop.f32.mrf.mxu0
        %v4954 = vadd.f32 %v4862, %v4953
        %4955 = vmatmul.bf16.gmra.mxu0 %v4902
        %v4956 = vpop.f32.mrf.mxu0
        %v4957 = vadd.f32 %v4867, %v4956
        %v4958 = vpop.f32.mrf.mxu0
        %v4959 = vadd.f32 %v4872, %v4958
        %4960 = vmatmul.bf16.gmra.mxu0 %v4903
        %v4961 = vpop.f32.mrf.mxu0
        %v4962 = vadd.f32 %v4877, %v4961
        %v4963 = vpop.f32.mrf.mxu0
        %v4964 = vadd.f32 %v4882, %v4963
        %4965 = vdwg.mxu0
        %v4966 = vmax.f32 %v4918, 0.0
        %v4967 = vmax.f32 %v4947, 0.0
        %v4968 = vmax.f32 %v4920, 0.0
        %v4969 = vmax.f32 %v4949, 0.0
        %v4970 = vmax.f32 %v4923, 0.0
        %v4971 = vmax.f32 %v4952, 0.0
        %v4972 = vmax.f32 %v4925, 0.0
        %v4973 = vmax.f32 %v4954, 0.0
        %v4974 = vmax.f32 %v4928, 0.0
        %v4975 = vmax.f32 %v4957, 0.0
        %v4976 = vmax.f32 %v4930, 0.0
        %v4977 = vmax.f32 %v4959, 0.0
        %v4978 = vmax.f32 %v4933, 0.0
        %v4979 = vmax.f32 %v4962, 0.0
        %v4980 = vmax.f32 %v4935, 0.0
        %v4981 = vmax.f32 %v4964, 0.0
        %v4982 = vpack.c.bf16 %v4968, %v4966
        %v4983 = vpack.c.bf16 %v4969, %v4967
        %v4984 = vpack.c.bf16 %v4972, %v4970
        %v4985 = vpack.c.bf16 %v4973, %v4971
        %v4986 = vpack.c.bf16 %v4976, %v4974
        %v4987 = vpack.c.bf16 %v4977, %v4975
        %v4988 = vpack.c.bf16 %v4980, %v4978
        %v4989 = vpack.c.bf16 %v4981, %v4979
        %v4990 = vld [vmem:[#allocation5 + $0xb20] sm:$0xf]
        %v4991 = vld [vmem:[#allocation5 + $0xb30] sm:$0xf]
        %v4992 = vld [vmem:[#allocation5 + $0xb40] sm:$0xf]
        %v4993 = vld [vmem:[#allocation5 + $0xb50] sm:$0xf]
        %v4994 = vld [vmem:[%s2 + $0x590] sm:$0xff]
        %v4995 = vld [vmem:[%s2 + $0x598] sm:$0xff]
        %v4996 = vld [vmem:[%s2 + $0x5a0] sm:$0xff]
        %v4997 = vld [vmem:[%s2 + $0x5a8] sm:$0xff]
        %4999 = vset.pattern.permute.xlu0 0
        %5000 = vperm.xlu0 %4999, %v4994
        %v5001 = vpop.permute.xlu0 %5000
        %5004 = vset.pattern.permute.xlu0 0
        %5005 = vperm.xlu0 %5004, %v4995
        %v5006 = vpop.permute.xlu0 %5005
        %5009 = vset.pattern.permute.xlu0 0
        %5010 = vperm.xlu0 %5009, %v4996
        %v5011 = vpop.permute.xlu0 %5010
        %5014 = vset.pattern.permute.xlu0 0
        %5015 = vperm.xlu0 %5014, %v4997
        %v5016 = vpop.permute.xlu0 %5015
        %v5022 = vunpack.c.l.b16 %v4990
        %v5023 = vunpack.c.l.b16 %v4991
        %v5024 = vunpack.c.l.b16 %v4992
        %v5025 = vunpack.c.l.b16 %v4993
        %v5026 = vpack.c.b16 %v5023, %v5022
        %v5027 = vpack.c.b16 %v5025, %v5024
        %v5029 = vsel %vm607, %v5026, 0
        %v5032 = vsel %vm607, %v5027, 0
        %5034 = vmatpush.bf16.msra.mxu0 0
        %5035 = vmatpush.bf16.msra.mxu0 0
        %5036 = vmatpush.bf16.msra.mxu0 0
        %5037 = vmatpush.bf16.msra.mxu0 0
        %5038 = vmatpush.bf16.msra.mxu0 %v4988
        %5039 = vmatpush.bf16.msra.mxu0 %v4986
        %5040 = vmatpush.bf16.msra.mxu0 %v4984
        %5041 = vmatpush.bf16.msra.mxu0 %v4982
        %5042 = vmatmul.bf16.gmra.mxu0 %v5029
        %v5043 = vpop.f32.mrf.mxu0
        %v5044 = vadd.f32 %v5001, %v5043
        %v5045 = vpop.f32.mrf.mxu0
        %v5046 = vadd.f32 %v5006, %v5045
        %5047 = vmatmul.bf16.gmra.mxu0 %v5032
        %v5048 = vpop.f32.mrf.mxu0
        %v5049 = vadd.f32 %v5011, %v5048
        %v5050 = vpop.f32.mrf.mxu0
        %v5051 = vadd.f32 %v5016, %v5050
        %5052 = vdwg.mxu0
        %5053 = vmatpush.bf16.msra.mxu0 0
        %5054 = vmatpush.bf16.msra.mxu0 0
        %5055 = vmatpush.bf16.msra.mxu0 0
        %5056 = vmatpush.bf16.msra.mxu0 0
        %5057 = vmatpush.bf16.msra.mxu0 %v4989
        %5058 = vmatpush.bf16.msra.mxu0 %v4987
        %5059 = vmatpush.bf16.msra.mxu0 %v4985
        %5060 = vmatpush.bf16.msra.mxu0 %v4983
        %5061 = vmatmul.bf16.gmra.mxu0 %v5029
        %v5062 = vpop.f32.mrf.mxu0
        %v5063 = vadd.f32 %v5001, %v5062
        %v5064 = vpop.f32.mrf.mxu0
        %v5065 = vadd.f32 %v5006, %v5064
        %5066 = vmatmul.bf16.gmra.mxu0 %v5032
        %v5067 = vpop.f32.mrf.mxu0
        %v5068 = vadd.f32 %v5011, %v5067
        %v5069 = vpop.f32.mrf.mxu0
        %v5070 = vadd.f32 %v5016, %v5069
        %5071 = vdwg.mxu0
        %v5072 = vmax.f32 %v5044, 0.0
        %v5073 = vmax.f32 %v5063, 0.0
        %v5074 = vmax.f32 %v5046, 0.0
        %v5075 = vmax.f32 %v5065, 0.0
        %v5076 = vmax.f32 %v5049, 0.0
        %v5077 = vmax.f32 %v5068, 0.0
        %v5078 = vmax.f32 %v5051, 0.0
        %v5079 = vmax.f32 %v5070, 0.0
        %v5080 = vpack.c.bf16 %v5074, %v5072
        %v5081 = vpack.c.bf16 %v5075, %v5073
        %v5082 = vpack.c.bf16 %v5078, %v5076
        %v5083 = vpack.c.bf16 %v5079, %v5077
        %v5084 = vld [vmem:[#allocation5 + $0xb60] sm:$0x1]
        %v5085 = vld [vmem:[%s2 + $0x5b0] sm:$0x1]
        %5087 = vset.pattern.permute.xlu0 0
        %5088 = vperm.xlu0 %5087, %v5085
        %v5089 = vpop.permute.xlu0 %5088
        %vm5091 = vcmask 261120
        %v5093 = vsel %vm5091, %v5084, 0
        %5095 = vmatpush.bf16.msra.mxu0 0
        %5096 = vmatpush.bf16.msra.mxu0 0
        %5097 = vmatpush.bf16.msra.mxu0 0
        %5098 = vmatpush.bf16.msra.mxu0 0
        %5099 = vmatpush.bf16.msra.mxu0 0
        %5100 = vmatpush.bf16.msra.mxu0 0
        %5101 = vmatpush.bf16.msra.mxu0 %v5082
        %5102 = vmatpush.bf16.msra.mxu0 %v5080
        %5103 = vmatmul.bf16.gmra.mxu0 %v5093
        %v5104 = vpop.f32.mrf.mxu0
        %v5105 = vadd.f32 %v5089, %v5104
        %v5106 = vpop.f32.mrf.mxu0
        %5107 = vdwg.mxu0
        %5108 = vmatpush.bf16.msra.mxu0 0
        %5109 = vmatpush.bf16.msra.mxu0 0
        %5110 = vmatpush.bf16.msra.mxu0 0
        %5111 = vmatpush.bf16.msra.mxu0 0
        %5112 = vmatpush.bf16.msra.mxu0 0
        %5113 = vmatpush.bf16.msra.mxu0 0
        %5114 = vmatpush.bf16.msra.mxu0 %v5083
        %5115 = vmatpush.bf16.msra.mxu0 %v5081
        %5116 = vmatmul.bf16.gmra.mxu0 %v5093
        %v5117 = vpop.f32.mrf.mxu0
        %v5118 = vadd.f32 %v5089, %v5117
        %v5119 = vpop.f32.mrf.mxu0
        %5120 = vdwg.mxu0
        %v5121 = vxor.u32 %v5105, 2147483648
        %v5122 = vxor.u32 %v5118, 2147483648
        %v5123 = vmul.f32 %v5121, 1.442695
        %v5124 = vpow.pop %v5123
        %v5125 = vmul.f32 %v5122, 1.442695
        %v5126 = vpow.pop %v5125
        %v5127 = vadd.f32 %v5124, 1.0
        %v5128 = vadd.f32 %v5126, 1.0
        %v5129 = vrcp.pop %v5127
        %v5130 = vmul.f32 %v5127, %v5129
        %v5131 = vsub.f32 1.0, %v5130
        %v5132 = vmul.f32 %v5129, %v5131
        %v5133 = vadd.f32 %v5129, %v5132
        %vm5134 = vweird.f32 %v5127
        %vm5135 = vweird.f32 %v5129
        %vm5136 = vmor %vm5134, %vm5135
        %v5137 = vsel %vm5136, %v5129, %v5133
        %v5138 = vand.u32 2147483647, %v5127
        %vm5139 = vcmp.eq.f32.partialorder %v5138, 8.507059e+37
        %v5140 = vand.u32 %v5127, 2147483648
        %v5141 = vor.u32 1.1754944e-38, %v5140
        %v5142 = vsel %vm5139, %v5141, %v5137
        %v5143 = vmul.f32 1.0, %v5142
        %v5144 = vrcp.pop %v5128
        %v5145 = vmul.f32 %v5128, %v5144
        %v5146 = vsub.f32 1.0, %v5145
        %v5147 = vmul.f32 %v5144, %v5146
        %v5148 = vadd.f32 %v5144, %v5147
        %vm5149 = vweird.f32 %v5128
        %vm5150 = vweird.f32 %v5144
        %vm5151 = vmor %vm5149, %vm5150
        %v5152 = vsel %vm5151, %v5144, %v5148
        %v5153 = vand.u32 2147483647, %v5128
        %vm5154 = vcmp.eq.f32.partialorder %v5153, 8.507059e+37
        %v5155 = vand.u32 %v5128, 2147483648
        %v5156 = vor.u32 1.1754944e-38, %v5155
        %v5157 = vsel %vm5154, %v5156, %v5152
        %v5158 = vmul.f32 1.0, %v5157
        %v5161 = vrot.slane %v5158, 7
        %vm5162 = vcmask 1040384
        %v5163 = vsel %vm5162, %v5143, %v5161
        %v5165 = vlaneseq
        %vm5166 = vcmp.ge.s32.totalorder %v5165, 0
        %vm5167 = vcmp.lt.s32.totalorder %v5165, 256
        %vm5168 = vmand %vm5166, %vm5167
        %5169 = vst.msk [vmem:[%s205] sm:$0x3] %vm5168, %v5163
        %s5170 = sand.u32 %s97, 1
        %s5171 = scalar_lea.sflag [#allocation4], %s5170
        %s5172 = sand.u32 %s97, 1
        %s5173 = smul.addr %s5172, 2
        %s5174 = scalar_lea.vmem [#allocation7], %s5173
        // Predicated region
        $region41: #{_mlp_forward_impl.1} parent=31 // pred_check
          %p5175 = pneg %p107
        $region42: #{_mlp_forward_impl.1} parent=31 // pred_check_branch
          %5177 = sbr.rel (%p5175) target = $region44
        $region43: #{_mlp_forward_impl.1} parent=31 // pred_region
          %s5178 = smul.u32 2, %s21
          %5180 = vsyncadd %s5171, 0
          %s5181 = scalar_lea.hbm %s3, %s5178
          %s5183 = sshll.u32 %s5174, 4
          %s5184 = int_to_ptr.vmem [resolvable:$true] %s5183
          %s5185 = sshll.u32 %s5181, 4
          %s5186 = int_to_ptr.hbm [resolvable:$true] %s5185
          %5188 = dma.vmem_to_hbm [thread:$0]  %s5184, 32, %s5186, %s5171
        $region44: #{_mlp_forward_impl.1} parent=31 // pred_fallthru
          _
      $region32: #{_mlp_forward_impl.1} parent=5 // pred_fallthru
        _
      %p5189 = scmp.le.s32.totalorder 2, %s16
      // Predicated region
      $region45: #{_mlp_forward_impl.1} parent=5 // pred_check
        %p5190 = pneg %p5189
      $region46: #{_mlp_forward_impl.1} parent=5 // pred_check_branch
        %5192 = sbr.rel (%p5190) target = $region48
      $region47: #{_mlp_forward_impl.1} parent=5 // pred_region
        %s5193 = ssub.s32 %s16, 2
        // Predicated region
        $region49: #{_mlp_forward_impl.1} parent=47 // pred_check
          %p5194 = pneg %p113
        $region50: #{_mlp_forward_impl.1} parent=47 // pred_check_branch
          %5196 = sbr.rel (%p5194) target = $region52
        $region51: #{_mlp_forward_impl.1} parent=47 // pred_region
          %s5197 = sand.u32 %s98, 1
          %s5198 = scalar_lea.sflag [#allocation4], %s5197
          %s5199 = sand.u32 %s98, 1
          %s5200 = smul.addr %s5199, 2
          %s5201 = scalar_lea.vmem [#allocation7], %s5200
          %5203 = dma.done %s5198, 32
        $region52: #{_mlp_forward_impl.1} parent=47 // pred_fallthru
          _
      $region48: #{_mlp_forward_impl.1} parent=5 // pred_fallthru
        _
    $region6: #{_mlp_forward_impl.1} parent=1 // loop_footer
      %s20 = sadd.s32 1, %s16
    $region7: #{_mlp_forward_impl.1} parent=1 // loop_footer_branch
      %15 = sbr.rel target = $region3
    $region8: #{_mlp_forward_impl.1} parent=1 // loop_exit
      _
    %5204 = vsyncpa [#allocation3], 1
    %s5205 = scalar_lea.sflag [#allocation3], 1
    %5206 = vsyncpa %s5205, 1
    %5207 = vsyncpa [#allocation6], 1
    %5208 = vsyncpa [#allocation4], 1
    %s5209 = scalar_lea.sflag [#allocation4], 1
    %5210 = vsyncpa %s5209, 1

</llo_original>
